<compile_context>
chip_gen: v7x
topology: tpu7x:2x2x1
jax: 0.10.0
libtpu: 0.0.40
codegen_flags: <defaults>
</compile_context>

<pallas_src>
import functools

import jax
import jax.numpy as jnp
from jax.experimental import pallas as pl
from jax.experimental.pallas import tpu as pltpu

EPS = 1e-5  # PyTorch BatchNorm default eps


# --------------------------------------------------------------------------
# Fused kernel: backbone + projector + predictor for ONE view
# (student and teacher live in the column halves of every activation)
# --------------------------------------------------------------------------
def fedi_fused_kernel(patches_ref, conv_w_ref, fcw_ref, prw_ref, vec_ref,
                      out_ref, *, n, hw, prev, d):
    bf16 = jnp.bfloat16
    p2, d2 = 2 * prev, 2 * d

    vecs = vec_ref[...]                       # (9, width) f32, tiny, one load

    def bn(y, row, width):
        # one-pass training-mode BatchNorm (biased batch stats), f32 math
        g = vecs[row:row + 1, :width]
        b = vecs[row + 1:row + 2, :width]
        mean = jnp.mean(y, axis=0, keepdims=True)
        msq = jnp.mean(y * y, axis=0, keepdims=True)
        var = msq - mean * mean
        return (y - mean) * jax.lax.rsqrt(var + EPS) * g + b

    # ---- backbone: conv3x3 as im2col matmul (both branches in columns),
    #      BN2d (per-channel stats over N*H*W rows), ReLU, global-avg-pool
    y = jnp.dot(patches_ref[...], conv_w_ref[...],
                preferred_element_type=jnp.float32)            # (N*H*W, 2*prev)
    y = jnp.maximum(bn(y, 0, p2), 0.0)
    feat = jnp.mean(y.reshape(n, hw, p2), axis=1)              # (N, 2*prev)

    # ---- projector (encoder.fc): block-diagonal weights keep branches apart
    h = jnp.dot(feat.astype(bf16), fcw_ref[0:p2, :],
                preferred_element_type=jnp.float32)            # (N, 2*d)
    h = jnp.maximum(bn(h, 2, d2), 0.0)
    h = jnp.dot(h.astype(bf16), fcw_ref[p2:p2 + d2, :],
                preferred_element_type=jnp.float32)
    h = jnp.maximum(bn(h, 4, d2), 0.0)
    z = jnp.dot(h.astype(bf16), fcw_ref[p2 + d2:p2 + 2 * d2, :],
                preferred_element_type=jnp.float32)            # (N, 2*d)

    # ---- predictor, student columns only: Linear(no bias)/BN/ReLU + Linear(b)
    q = jnp.dot(z[:, :d].astype(bf16), prw_ref[0:d, :],
                preferred_element_type=jnp.float32)            # (N, d)
    q = jnp.maximum(bn(q, 6, d), 0.0)
    pz = jnp.dot(q.astype(bf16), prw_ref[d:2 * d, :],
                 preferred_element_type=jnp.float32) + vecs[8:9, :d]

    # lane-dense (N, 2*d) slab: [ predictor(student) | teacher encoder ]
    out_ref[...] = jnp.concatenate([pz, z[:, d:]], axis=-1)


# --------------------------------------------------------------------------
# Plain-JAX glue: layout + im2col (bf16; negligible bytes at this size)
# --------------------------------------------------------------------------
def im2col_3x3_same(x_nhwc):
    n, hh, ww, c = x_nhwc.shape
    xp = jnp.pad(x_nhwc, ((0, 0), (1, 1), (1, 1), (0, 0)))
    taps = []
    for ky in range(3):
        for kx in range(3):
            taps.append(xp[:, ky:ky + hh, kx:kx + ww, :])
    patches = jnp.concatenate(taps, axis=-1)          # (N, H, W, 9*C)
    return patches.reshape(n * hh * ww, 9 * c)


# --------------------------------------------------------------------------
# Full FeDi forward: one fused pallas_call over a 2-step view grid
# --------------------------------------------------------------------------
def fedi_forward(x1, x2, enc_params, pred_params, teacher_params):
    n, c, hh, ww = x1.shape
    hw = hh * ww
    nine_c = 9 * c
    prev = enc_params["conv_w"].shape[-1]
    d = pred_params["pr2_w"].shape[-1]
    p2, d2 = 2 * prev, 2 * d
    nhw = n * hw
    bf16, f32 = jnp.bfloat16, jnp.float32

    # ---- host-side im2col, bf16.
    # TODO(synk): at realistic resolutions, form the 3x3 taps in-kernel from a
    # padded VMEM activation block and tile nhw with an "arbitrary" grid axis
    # carrying streamed BN sum / sum-of-squares scratch (required to fit
    # v7x's 64 MiB VMEM); set vmem_limit_bytes when sizing those tiles.
    def to_patches(x):
        return im2col_3x3_same(jnp.transpose(x, (0, 2, 3, 1)).astype(bf16))

    patches = jnp.stack([to_patches(x1), to_patches(x2)])      # (2, nhw, 9C)

    # ---- fold student|teacher into the matmul output-feature (column) axis
    conv_w = jnp.concatenate(
        [enc_params["conv_w"].reshape(nine_c, prev),
         teacher_params["conv_w"].reshape(nine_c, prev)], axis=-1).astype(bf16)

    def block_diag(name):
        a, b = enc_params[name], teacher_params[name]
        top = jnp.concatenate([a, jnp.zeros_like(b)], axis=-1)
        bot = jnp.concatenate([jnp.zeros_like(a), b], axis=-1)
        return jnp.concatenate([top, bot], axis=0)

    fcw = jnp.concatenate([block_diag("fc1_w"),                 # (2*prev, 2*d)
                           block_diag("fc2_w"),                 # (2*d,   2*d)
                           block_diag("fc3_w")],                # (2*d,   2*d)
                          axis=0).astype(bf16)                  # (2p+4d, 2*d)
    prw = jnp.concatenate([pred_params["pr1_w"],
                           pred_params["pr2_w"]], axis=0).astype(bf16)  # (2d, d)

    # ---- pack all tiny BN gamma/beta + predictor bias into ONE f32 slab
    width = ((max(p2, d2) + 127) // 128) * 128

    def row(*vs):
        v = jnp.concatenate([x.reshape(-1) for x in vs])
        return jnp.pad(v, (0, width - v.shape[0]))

    vecs = jnp.stack([
        row(enc_params["bn2d_g"], teacher_params["bn2d_g"]),    # 0
        row(enc_params["bn2d_b"], teacher_params["bn2d_b"]),    # 1
        row(enc_params["fc1_g"], teacher_params["fc1_g"]),      # 2
        row(enc_params["fc1_b"], teacher_params["fc1_b"]),      # 3
        row(enc_params["fc2_g"], teacher_params["fc2_g"]),      # 4
        row(enc_params["fc2_b"], teacher_params["fc2_b"]),      # 5
        row(pred_params["pr1_g"]),                              # 6
        row(pred_params["pr1_b"]),                              # 7
        row(pred_params["pr2_b"]),                              # 8
    ]).astype(f32)                                              # (9, width)

    # ---- BlockSpecs: grid = (view,).  Shared params DMA'd once (same block
    # every step); only the per-view patches are re-fetched.
    def shared(arr):
        return pl.BlockSpec(arr.shape, lambda v, _nd=arr.ndim: (0,) * _nd)

    in_specs = [
        pl.BlockSpec((None, nhw, nine_c), lambda v: (v, 0, 0)),   # patches
        shared(conv_w), shared(fcw), shared(prw), shared(vecs),
    ]
    out_spec = pl.BlockSpec((None, n, d2), lambda v: (v, 0, 0))

    kern = functools.partial(fedi_fused_kernel, n=n, hw=hw, prev=prev, d=d)
    out = pl.pallas_call(
        kern,
        grid=(2,),                               # two views
        in_specs=in_specs,
        out_specs=out_spec,
        out_shape=jax.ShapeDtypeStruct((2, n, d2), f32),
        compiler_params=pltpu.CompilerParams(
            dimension_semantics=("parallel",)),  # shards across v7x's 2 TCs
    )(patches, conv_w, fcw, prw, vecs)

    # columns [:d] = predictor(encoder(x)) = z ; columns [d:] = teacher(x) = p
    z1 = out[0, :, :d]
    z2 = out[1, :, :d]
    p1 = jax.lax.stop_gradient(out[0, :, d:])   # teacher(x1), detached
    p2 = jax.lax.stop_gradient(out[1, :, d:])   # teacher(x2), detached
    return z1, z2, p1, p2


# --------------------------------------------------------------------------
# Deterministic parameter init
# --------------------------------------------------------------------------
def init_params(key, cin=4, prev_dim=32, pred_dim=64):
    ks = jax.random.split(key, 8)
    f32 = jnp.float32
    p = {
        # backbone
        "conv_w": 0.05 * jax.random.normal(ks[0], (3, 3, cin, prev_dim), f32),
        "bn2d_g": jnp.ones((1, prev_dim), f32),
        "bn2d_b": jnp.zeros((1, prev_dim), f32),
        # projector (encoder.fc): weights stored transposed (in, out)
        "fc1_w": 0.05 * jax.random.normal(ks[1], (prev_dim, pred_dim), f32),
        "fc1_g": jnp.ones((1, pred_dim), f32),
        "fc1_b": jnp.zeros((1, pred_dim), f32),
        "fc2_w": 0.05 * jax.random.normal(ks[2], (pred_dim, pred_dim), f32),
        "fc2_g": jnp.ones((1, pred_dim), f32),
        "fc2_b": jnp.zeros((1, pred_dim), f32),
        "fc3_w": 0.05 * jax.random.normal(ks[3], (pred_dim, pred_dim), f32),
    }
    pred = {
        "pr1_w": 0.05 * jax.random.normal(ks[4], (pred_dim, pred_dim), f32),
        "pr1_g": jnp.ones((1, pred_dim), f32),
        "pr1_b": jnp.zeros((1, pred_dim), f32),
        "pr2_w": 0.05 * jax.random.normal(ks[5], (pred_dim, pred_dim), f32),
        "pr2_b": 0.01 * jax.random.normal(ks[6], (1, pred_dim), f32),
    }
    # TODO(synk): zero_init_residual / num_classes=2048 of the real ResNet
    # base_encoder are moot here (fc is replaced; synthetic backbone has no
    # residual blocks).
    return p, pred


if __name__ == "__main__":
    key = jax.random.PRNGKey(0)
    k_p, k_x1, k_x2 = jax.random.split(key, 3)

    enc_params, pred_params = init_params(k_p, cin=4, prev_dim=32, pred_dim=64)
    teacher_params = dict(enc_params)  # deepcopy at init -> identical values

    # NCHW inputs, as the PyTorch module would receive
    x1 = jax.random.normal(k_x1, (8, 4, 16, 16), jnp.float32)
    x2 = jax.random.normal(k_x2, (8, 4, 16, 16), jnp.float32)

    fwd = jax.jit(fedi_forward)
    z1, z2, p1, p2 = fwd(x1, x2, enc_params, pred_params, teacher_params)
    jax.block_until_ready((z1, z2, p1, p2))

    assert z1.shape == (8, 64) and z2.shape == (8, 64)
    assert p1.shape == (8, 64) and p2.shape == (8, 64)
    assert bool(jnp.all(jnp.isfinite(z1)) & jnp.all(jnp.isfinite(p1)))
    print("KERNEL_OK")
</pallas_src>

<mosaic_0001>
module attributes {stable_mosaic.version = 11 : i64} {
  func.func @fedi_fused_kernel(%arg0: i32, %arg1: memref<1x2048x36xbf16, #tpu.memory_space<vmem>>, %arg2: memref<36x64xbf16, #tpu.memory_space<vmem>>, %arg3: memref<320x128xbf16, #tpu.memory_space<vmem>>, %arg4: memref<128x64xbf16, #tpu.memory_space<vmem>>, %arg5: memref<9x128xf32, #tpu.memory_space<vmem>>, %arg6: memref<1x8x128xf32, #tpu.memory_space<vmem>>) attributes {dimension_semantics = [#tpu.dimension_semantics<parallel>], iteration_bounds = array<i64: 2>, scalar_prefetch = 0 : i64, scratch_operands = 0 : i64, tpu.core_type = #tpu.core_type<tc>, window_params = [{transform_indices = @transform_0, window_bounds = array<i64: 1, 2048, 36>}, {pipeline_mode = #tpu.pipeline_mode<synchronous>, transform_indices = @transform_1, window_bounds = array<i64: 36, 64>}, {pipeline_mode = #tpu.pipeline_mode<synchronous>, transform_indices = @transform_2, window_bounds = array<i64: 320, 128>}, {pipeline_mode = #tpu.pipeline_mode<synchronous>, transform_indices = @transform_3, window_bounds = array<i64: 128, 64>}, {pipeline_mode = #tpu.pipeline_mode<synchronous>, transform_indices = @transform_4, window_bounds = array<i64: 9, 128>}, {transform_indices = @transform_5, window_bounds = array<i64: 1, 8, 128>}]} {
    %c0 = arith.constant 0 : index
    %c0_0 = arith.constant 0 : index
    %0 = vector.load %arg5[%c0, %c0_0] : memref<9x128xf32, #tpu.memory_space<vmem>>, vector<9x128xf32>
    %c0_1 = arith.constant 0 : index
    %c0_2 = arith.constant 0 : index
    %c0_3 = arith.constant 0 : index
    %1 = vector.load %arg1[%c0_1, %c0_2, %c0_3] : memref<1x2048x36xbf16, #tpu.memory_space<vmem>>, vector<1x2048x36xbf16>
    %2 = vector.shape_cast %1 : vector<1x2048x36xbf16> to vector<2048x36xbf16>
    %c0_4 = arith.constant 0 : index
    %c0_5 = arith.constant 0 : index
    %3 = vector.load %arg2[%c0_4, %c0_5] : memref<36x64xbf16, #tpu.memory_space<vmem>>, vector<36x64xbf16>
    %cst = arith.constant dense<0.000000e+00> : vector<2048x64xf32>
    %4 = tpu.matmul %2, %3, %cst {dimension_numbers = #tpu.dot_dimension_numbers<[1], [0], [0], [1], [0, 0, 1, 1], [], []>} : vector<2048x36xbf16>, vector<36x64xbf16>, vector<2048x64xf32> -> vector<2048x64xf32>
    %5 = vector.extract_strided_slice %0 {offsets = [0, 0], sizes = [1, 64], strides = [1, 1]} : vector<9x128xf32> to vector<1x64xf32>
    %6 = vector.extract_strided_slice %0 {offsets = [1, 0], sizes = [1, 64], strides = [1, 1]} : vector<9x128xf32> to vector<1x64xf32>
    %cst_6 = arith.constant dense<0.000000e+00> : vector<64xf32>
    %7 = vector.multi_reduction <add>, %4, %cst_6 [0] : vector<2048x64xf32> to vector<64xf32>
    %8 = vector.shape_cast %7 : vector<64xf32> to vector<1x64xf32>
    %cst_7 = arith.constant 2.048000e+03 : f32
    %9 = vector.broadcast %cst_7 : f32 to vector<1x64xf32>
    %10 = arith.divf %8, %9 : vector<1x64xf32>
    %11 = arith.mulf %4, %4 : vector<2048x64xf32>
    %cst_8 = arith.constant dense<0.000000e+00> : vector<64xf32>
    %12 = vector.multi_reduction <add>, %11, %cst_8 [0] : vector<2048x64xf32> to vector<64xf32>
    %13 = vector.shape_cast %12 : vector<64xf32> to vector<1x64xf32>
    %cst_9 = arith.constant 2.048000e+03 : f32
    %14 = vector.broadcast %cst_9 : f32 to vector<1x64xf32>
    %15 = arith.divf %13, %14 : vector<1x64xf32>
    %16 = arith.mulf %10, %10 : vector<1x64xf32>
    %17 = arith.subf %15, %16 : vector<1x64xf32>
    %18 = vector.broadcast %10 : vector<1x64xf32> to vector<2048x64xf32>
    %19 = arith.subf %4, %18 : vector<2048x64xf32>
    %cst_10 = arith.constant 9.99999974E-6 : f32
    %20 = vector.broadcast %cst_10 : f32 to vector<1x64xf32>
    %21 = arith.addf %17, %20 : vector<1x64xf32>
    %22 = math.rsqrt %21 : vector<1x64xf32>
    %23 = vector.broadcast %22 : vector<1x64xf32> to vector<2048x64xf32>
    %24 = arith.mulf %19, %23 : vector<2048x64xf32>
    %25 = vector.broadcast %5 : vector<1x64xf32> to vector<2048x64xf32>
    %26 = arith.mulf %24, %25 : vector<2048x64xf32>
    %27 = vector.broadcast %6 : vector<1x64xf32> to vector<2048x64xf32>
    %28 = arith.addf %26, %27 : vector<2048x64xf32>
    %cst_11 = arith.constant 0.000000e+00 : f32
    %29 = vector.broadcast %cst_11 : f32 to vector<2048x64xf32>
    %30 = arith.maximumf %28, %29 : vector<2048x64xf32>
    %31 = vector.shape_cast %30 : vector<2048x64xf32> to vector<8x256x64xf32>
    %cst_12 = arith.constant dense<0.000000e+00> : vector<8x64xf32>
    %32 = vector.multi_reduction <add>, %31, %cst_12 [1] : vector<8x256x64xf32> to vector<8x64xf32>
    %cst_13 = arith.constant 2.560000e+02 : f32
    %33 = vector.broadcast %cst_13 : f32 to vector<8x64xf32>
    %34 = arith.divf %32, %33 : vector<8x64xf32>
    %35 = arith.truncf %34 : vector<8x64xf32> to vector<8x64xbf16>
    %c0_14 = arith.constant 0 : index
    %c0_15 = arith.constant 0 : index
    %36 = vector.load %arg3[%c0_14, %c0_15] : memref<320x128xbf16, #tpu.memory_space<vmem>>, vector<64x128xbf16>
    %cst_16 = arith.constant dense<0.000000e+00> : vector<8x128xf32>
    %37 = tpu.matmul %35, %36, %cst_16 {dimension_numbers = #tpu.dot_dimension_numbers<[1], [0], [0], [1], [0, 0, 1, 1], [], []>} : vector<8x64xbf16>, vector<64x128xbf16>, vector<8x128xf32> -> vector<8x128xf32>
    %38 = vector.extract_strided_slice %0 {offsets = [2, 0], sizes = [1, 128], strides = [1, 1]} : vector<9x128xf32> to vector<1x128xf32>
    %39 = vector.extract_strided_slice %0 {offsets = [3, 0], sizes = [1, 128], strides = [1, 1]} : vector<9x128xf32> to vector<1x128xf32>
    %cst_17 = arith.constant dense<0.000000e+00> : vector<128xf32>
    %40 = vector.multi_reduction <add>, %37, %cst_17 [0] : vector<8x128xf32> to vector<128xf32>
    %41 = vector.shape_cast %40 : vector<128xf32> to vector<1x128xf32>
    %cst_18 = arith.constant 8.000000e+00 : f32
    %42 = vector.broadcast %cst_18 : f32 to vector<1x128xf32>
    %43 = arith.divf %41, %42 : vector<1x128xf32>
    %44 = arith.mulf %37, %37 : vector<8x128xf32>
    %cst_19 = arith.constant dense<0.000000e+00> : vector<128xf32>
    %45 = vector.multi_reduction <add>, %44, %cst_19 [0] : vector<8x128xf32> to vector<128xf32>
    %46 = vector.shape_cast %45 : vector<128xf32> to vector<1x128xf32>
    %cst_20 = arith.constant 8.000000e+00 : f32
    %47 = vector.broadcast %cst_20 : f32 to vector<1x128xf32>
    %48 = arith.divf %46, %47 : vector<1x128xf32>
    %49 = arith.mulf %43, %43 : vector<1x128xf32>
    %50 = arith.subf %48, %49 : vector<1x128xf32>
    %51 = vector.broadcast %43 : vector<1x128xf32> to vector<8x128xf32>
    %52 = arith.subf %37, %51 : vector<8x128xf32>
    %cst_21 = arith.constant 9.99999974E-6 : f32
    %53 = vector.broadcast %cst_21 : f32 to vector<1x128xf32>
    %54 = arith.addf %50, %53 : vector<1x128xf32>
    %55 = math.rsqrt %54 : vector<1x128xf32>
    %56 = vector.broadcast %55 : vector<1x128xf32> to vector<8x128xf32>
    %57 = arith.mulf %52, %56 : vector<8x128xf32>
    %58 = vector.broadcast %38 : vector<1x128xf32> to vector<8x128xf32>
    %59 = arith.mulf %57, %58 : vector<8x128xf32>
    %60 = vector.broadcast %39 : vector<1x128xf32> to vector<8x128xf32>
    %61 = arith.addf %59, %60 : vector<8x128xf32>
    %cst_22 = arith.constant 0.000000e+00 : f32
    %62 = vector.broadcast %cst_22 : f32 to vector<8x128xf32>
    %63 = arith.maximumf %61, %62 : vector<8x128xf32>
    %64 = arith.truncf %63 : vector<8x128xf32> to vector<8x128xbf16>
    %c64 = arith.constant 64 : index
    %c0_23 = arith.constant 0 : index
    %65 = vector.load %arg3[%c64, %c0_23] : memref<320x128xbf16, #tpu.memory_space<vmem>>, vector<128x128xbf16>
    %cst_24 = arith.constant dense<0.000000e+00> : vector<8x128xf32>
    %66 = tpu.matmul %64, %65, %cst_24 {dimension_numbers = #tpu.dot_dimension_numbers<[1], [0], [0], [1], [0, 0, 1, 1], [], []>} : vector<8x128xbf16>, vector<128x128xbf16>, vector<8x128xf32> -> vector<8x128xf32>
    %67 = vector.extract_strided_slice %0 {offsets = [4, 0], sizes = [1, 128], strides = [1, 1]} : vector<9x128xf32> to vector<1x128xf32>
    %68 = vector.extract_strided_slice %0 {offsets = [5, 0], sizes = [1, 128], strides = [1, 1]} : vector<9x128xf32> to vector<1x128xf32>
    %cst_25 = arith.constant dense<0.000000e+00> : vector<128xf32>
    %69 = vector.multi_reduction <add>, %66, %cst_25 [0] : vector<8x128xf32> to vector<128xf32>
    %70 = vector.shape_cast %69 : vector<128xf32> to vector<1x128xf32>
    %cst_26 = arith.constant 8.000000e+00 : f32
    %71 = vector.broadcast %cst_26 : f32 to vector<1x128xf32>
    %72 = arith.divf %70, %71 : vector<1x128xf32>
    %73 = arith.mulf %66, %66 : vector<8x128xf32>
    %cst_27 = arith.constant dense<0.000000e+00> : vector<128xf32>
    %74 = vector.multi_reduction <add>, %73, %cst_27 [0] : vector<8x128xf32> to vector<128xf32>
    %75 = vector.shape_cast %74 : vector<128xf32> to vector<1x128xf32>
    %cst_28 = arith.constant 8.000000e+00 : f32
    %76 = vector.broadcast %cst_28 : f32 to vector<1x128xf32>
    %77 = arith.divf %75, %76 : vector<1x128xf32>
    %78 = arith.mulf %72, %72 : vector<1x128xf32>
    %79 = arith.subf %77, %78 : vector<1x128xf32>
    %80 = vector.broadcast %72 : vector<1x128xf32> to vector<8x128xf32>
    %81 = arith.subf %66, %80 : vector<8x128xf32>
    %cst_29 = arith.constant 9.99999974E-6 : f32
    %82 = vector.broadcast %cst_29 : f32 to vector<1x128xf32>
    %83 = arith.addf %79, %82 : vector<1x128xf32>
    %84 = math.rsqrt %83 : vector<1x128xf32>
    %85 = vector.broadcast %84 : vector<1x128xf32> to vector<8x128xf32>
    %86 = arith.mulf %81, %85 : vector<8x128xf32>
    %87 = vector.broadcast %67 : vector<1x128xf32> to vector<8x128xf32>
    %88 = arith.mulf %86, %87 : vector<8x128xf32>
    %89 = vector.broadcast %68 : vector<1x128xf32> to vector<8x128xf32>
    %90 = arith.addf %88, %89 : vector<8x128xf32>
    %cst_30 = arith.constant 0.000000e+00 : f32
    %91 = vector.broadcast %cst_30 : f32 to vector<8x128xf32>
    %92 = arith.maximumf %90, %91 : vector<8x128xf32>
    %93 = arith.truncf %92 : vector<8x128xf32> to vector<8x128xbf16>
    %c192 = arith.constant 192 : index
    %c0_31 = arith.constant 0 : index
    %94 = vector.load %arg3[%c192, %c0_31] : memref<320x128xbf16, #tpu.memory_space<vmem>>, vector<128x128xbf16>
    %cst_32 = arith.constant dense<0.000000e+00> : vector<8x128xf32>
    %95 = tpu.matmul %93, %94, %cst_32 {dimension_numbers = #tpu.dot_dimension_numbers<[1], [0], [0], [1], [0, 0, 1, 1], [], []>} : vector<8x128xbf16>, vector<128x128xbf16>, vector<8x128xf32> -> vector<8x128xf32>
    %96 = vector.extract_strided_slice %95 {offsets = [0, 0], sizes = [8, 64], strides = [1, 1]} : vector<8x128xf32> to vector<8x64xf32>
    %97 = arith.truncf %96 : vector<8x64xf32> to vector<8x64xbf16>
    %c0_33 = arith.constant 0 : index
    %c0_34 = arith.constant 0 : index
    %98 = vector.load %arg4[%c0_33, %c0_34] : memref<128x64xbf16, #tpu.memory_space<vmem>>, vector<64x64xbf16>
    %cst_35 = arith.constant dense<0.000000e+00> : vector<8x64xf32>
    %99 = tpu.matmul %97, %98, %cst_35 {dimension_numbers = #tpu.dot_dimension_numbers<[1], [0], [0], [1], [0, 0, 1, 1], [], []>} : vector<8x64xbf16>, vector<64x64xbf16>, vector<8x64xf32> -> vector<8x64xf32>
    %100 = vector.extract_strided_slice %0 {offsets = [6, 0], sizes = [1, 64], strides = [1, 1]} : vector<9x128xf32> to vector<1x64xf32>
    %101 = vector.extract_strided_slice %0 {offsets = [7, 0], sizes = [1, 64], strides = [1, 1]} : vector<9x128xf32> to vector<1x64xf32>
    %cst_36 = arith.constant dense<0.000000e+00> : vector<64xf32>
    %102 = vector.multi_reduction <add>, %99, %cst_36 [0] : vector<8x64xf32> to vector<64xf32>
    %103 = vector.shape_cast %102 : vector<64xf32> to vector<1x64xf32>
    %cst_37 = arith.constant 8.000000e+00 : f32
    %104 = vector.broadcast %cst_37 : f32 to vector<1x64xf32>
    %105 = arith.divf %103, %104 : vector<1x64xf32>
    %106 = arith.mulf %99, %99 : vector<8x64xf32>
    %cst_38 = arith.constant dense<0.000000e+00> : vector<64xf32>
    %107 = vector.multi_reduction <add>, %106, %cst_38 [0] : vector<8x64xf32> to vector<64xf32>
    %108 = vector.shape_cast %107 : vector<64xf32> to vector<1x64xf32>
    %cst_39 = arith.constant 8.000000e+00 : f32
    %109 = vector.broadcast %cst_39 : f32 to vector<1x64xf32>
    %110 = arith.divf %108, %109 : vector<1x64xf32>
    %111 = arith.mulf %105, %105 : vector<1x64xf32>
    %112 = arith.subf %110, %111 : vector<1x64xf32>
    %113 = vector.broadcast %105 : vector<1x64xf32> to vector<8x64xf32>
    %114 = arith.subf %99, %113 : vector<8x64xf32>
    %cst_40 = arith.constant 9.99999974E-6 : f32
    %115 = vector.broadcast %cst_40 : f32 to vector<1x64xf32>
    %116 = arith.addf %112, %115 : vector<1x64xf32>
    %117 = math.rsqrt %116 : vector<1x64xf32>
    %118 = vector.broadcast %117 : vector<1x64xf32> to vector<8x64xf32>
    %119 = arith.mulf %114, %118 : vector<8x64xf32>
    %120 = vector.broadcast %100 : vector<1x64xf32> to vector<8x64xf32>
    %121 = arith.mulf %119, %120 : vector<8x64xf32>
    %122 = vector.broadcast %101 : vector<1x64xf32> to vector<8x64xf32>
    %123 = arith.addf %121, %122 : vector<8x64xf32>
    %cst_41 = arith.constant 0.000000e+00 : f32
    %124 = vector.broadcast %cst_41 : f32 to vector<8x64xf32>
    %125 = arith.maximumf %123, %124 : vector<8x64xf32>
    %126 = arith.truncf %125 : vector<8x64xf32> to vector<8x64xbf16>
    %c64_42 = arith.constant 64 : index
    %c0_43 = arith.constant 0 : index
    %127 = vector.load %arg4[%c64_42, %c0_43] : memref<128x64xbf16, #tpu.memory_space<vmem>>, vector<64x64xbf16>
    %cst_44 = arith.constant dense<0.000000e+00> : vector<8x64xf32>
    %128 = tpu.matmul %126, %127, %cst_44 {dimension_numbers = #tpu.dot_dimension_numbers<[1], [0], [0], [1], [0, 0, 1, 1], [], []>} : vector<8x64xbf16>, vector<64x64xbf16>, vector<8x64xf32> -> vector<8x64xf32>
    %129 = vector.extract_strided_slice %0 {offsets = [8, 0], sizes = [1, 64], strides = [1, 1]} : vector<9x128xf32> to vector<1x64xf32>
    %130 = vector.broadcast %129 : vector<1x64xf32> to vector<8x64xf32>
    %131 = arith.addf %128, %130 : vector<8x64xf32>
    %132 = vector.extract_strided_slice %95 {offsets = [0, 64], sizes = [8, 64], strides = [1, 1]} : vector<8x128xf32> to vector<8x64xf32>
    %133 = tpu.concatenate %131, %132 in 1 : vector<8x64xf32>, vector<8x64xf32> -> vector<8x128xf32>
    %c0_45 = arith.constant 0 : index
    %c0_46 = arith.constant 0 : index
    %c0_47 = arith.constant 0 : index
    %134 = vector.load %arg6[%c0_45, %c0_46, %c0_47] : memref<1x8x128xf32, #tpu.memory_space<vmem>>, vector<1x8x128xf32>
    %135 = vector.shape_cast %134 : vector<1x8x128xf32> to vector<8x128xf32>
    %136 = vector.shape_cast %133 : vector<8x128xf32> to vector<1x8x128xf32>
    tpu.vector_store %arg6[%c0_45, %c0_46, %c0_47], %136 {strides = array<i32>} : memref<1x8x128xf32, #tpu.memory_space<vmem>>, vector<1x8x128xf32>,
    return
  }
  func.func @transform_0(%arg0: i32) -> (i32, i32, i32) {
    %c0_i32 = arith.constant 0 : i32
    %c0_i32_0 = arith.constant 0 : i32
    %c0_i32_1 = arith.constant 0 : i32
    return %arg0, %c0_i32, %c0_i32_0 : i32, i32, i32
  }
  func.func @transform_1(%arg0: i32) -> (i32, i32) {
    %c0_i32 = arith.constant 0 : i32
    %c0_i32_0 = arith.constant 0 : i32
    %c0_i32_1 = arith.constant 0 : i32
    return %c0_i32, %c0_i32_0 : i32, i32
  }
  func.func @transform_2(%arg0: i32) -> (i32, i32) {
    %c0_i32 = arith.constant 0 : i32
    %c0_i32_0 = arith.constant 0 : i32
    %c0_i32_1 = arith.constant 0 : i32
    return %c0_i32, %c0_i32_0 : i32, i32
  }
  func.func @transform_3(%arg0: i32) -> (i32, i32) {
    %c0_i32 = arith.constant 0 : i32
    %c0_i32_0 = arith.constant 0 : i32
    %c0_i32_1 = arith.constant 0 : i32
    return %c0_i32, %c0_i32_0 : i32, i32
  }
  func.func @transform_4(%arg0: i32) -> (i32, i32) {
    %c0_i32 = arith.constant 0 : i32
    %c0_i32_0 = arith.constant 0 : i32
    %c0_i32_1 = arith.constant 0 : i32
    return %c0_i32, %c0_i32_0 : i32, i32
  }
  func.func @transform_5(%arg0: i32) -> (i32, i32, i32) {
    %c0_i32 = arith.constant 0 : i32
    %c0_i32_0 = arith.constant 0 : i32
    %c0_i32_1 = arith.constant 0 : i32
    return %arg0, %c0_i32, %c0_i32_0 : i32, i32, i32
  }
}

</mosaic_0001>

<llo_original>
// kernel: fedi_forward.1
$region0: #{fedi_forward.1}
  #allocation0 [shape = 'u32[]', space=smem, size = 0x4, offset = 0x4, fixed_abs, tag = 'smem constant byte address 0x4 - core index']
  #allocation1 [shape = 'u32[144,128]{1,0:T(1,128)}', space=vmem, size = 0x12000, scoped, tag = 'internal scratch']
  %s0 = inlined_call_operand.vmem [shape: bf16[2,2048,36], index: 0, kind: input, shape index: {}]
  %s1 = inlined_call_operand.vmem [shape: bf16[36,64], index: 1, kind: input, shape index: {}]
  %s2 = inlined_call_operand.vmem [shape: bf16[320,128], index: 2, kind: input, shape index: {}]
  %s3 = inlined_call_operand.vmem [shape: bf16[128,64], index: 3, kind: input, shape index: {}]
  %s4 = inlined_call_operand.vmem [shape: f32[9,128], index: 4, kind: input, shape index: {}]
  %s5 = inlined_call_operand.vmem [shape: f32[2,8,128], index: 5, kind: output, shape index: {}]
  %s6 = sld [smem:[#allocation0]]
  $region53: #{fedi_forward.1} parent=0
    _
  %s8 = ssub.s32 1, %s6
  %s9 = scalar_select 0, %s8, %s6
  loop: start=0, step=1, limit=4
  $region2: #{fedi_forward.1} parent=0 // loop_pre_header
    _
  $region3: #{fedi_forward.1} parent=0 // loop_header
    %s11 = sphi 0, %s15
    %p12 = scmp.ge.s32.totalorder %s11, 4
    %s21 = sphi 0, %s23
    %s24 = sphi 0, %s21
    %s25 = sphi 0, %s24
    %s41 = sphi 0, %s25
    %s45 = sphi 0, %s45
    %s47 = sphi 0, %s45
    %s48 = sphi 0, %s47
    %s62 = sphi 0, %s48
    %s66 = sphi 0, %s66
    %s68 = sphi 0, %s66
    %s69 = sphi 0, %s68
    %s83 = sphi 0, %s69
    %s87 = sphi 0, %s87
    %s89 = sphi 0, %s87
    %s90 = sphi 0, %s89
    %s104 = sphi 0, %s90
    %s108 = sphi 0, %s108
    %s110 = sphi 0, %s108
    %s111 = sphi 0, %s110
    %s125 = sphi 0, %s111
    %s131 = sphi 0, %s133
    %s134 = sphi 0, %s131
    %s135 = sphi 0, %s134
    %s151 = sphi 0, %s135
  $region4: #{fedi_forward.1} parent=0 // loop_header_branch
    %14 = sbr.rel (%p12) target = $region8
  $region5: #{fedi_forward.1} parent=0 // loop_body
    %s16 = ssub.s32 %s11, 1
    %s17 = ssub.s32 %s11, 2
    %s18 = sadd.s32 %s11, 1
    %s19 = ssub.s32 %s11, %s18
    %p20 = scmp.eq.s32.totalorder %s19, 0
    %s22 = sadd.s32 %s21, 1
    %s23 = scalar_select %p20, %s21, %s22
    %p26 = pneg %p20
    %p27 = scmp.eq.s32.totalorder %s11, 1
    %p28 = por %p26, %p27
    %p29 = scmp.ne.s32.totalorder %s21, %s24
    %p30 = scmp.eq.s32.totalorder %s11, 0
    %p31 = por %p29, %p30
    %p32 = scmp.ne.s32.totalorder %s21, %s24
    %p33 = scmp.eq.s32.totalorder %s16, 1
    %p34 = por %p32, %p33
    %p35 = scmp.ne.s32.totalorder %s24, %s25
    %p36 = scmp.eq.s32.totalorder %s16, 0
    %p37 = por %p35, %p36
    %p38 = scmp.ne.s32.totalorder %s24, %s25
    %p39 = scmp.eq.s32.totalorder %s17, 1
    %p40 = por %p38, %p39
    %p42 = scmp.ne.s32.totalorder %s25, %s41
    %p43 = scmp.eq.s32.totalorder %s17, 0
    %p44 = por %p42, %p43
    %s46 = sadd.s32 %s45, 1
    %p49 = scmp.eq.s32.totalorder %s11, 1
    %p50 = scmp.ne.s32.totalorder %s45, %s47
    %p51 = scmp.eq.s32.totalorder %s11, 0
    %p52 = por %p50, %p51
    %p53 = scmp.ne.s32.totalorder %s45, %s47
    %p54 = scmp.eq.s32.totalorder %s16, 1
    %p55 = por %p53, %p54
    %p56 = scmp.ne.s32.totalorder %s47, %s48
    %p57 = scmp.eq.s32.totalorder %s16, 0
    %p58 = por %p56, %p57
    %p59 = scmp.ne.s32.totalorder %s47, %s48
    %p60 = scmp.eq.s32.totalorder %s17, 1
    %p61 = por %p59, %p60
    %p63 = scmp.ne.s32.totalorder %s48, %s62
    %p64 = scmp.eq.s32.totalorder %s17, 0
    %p65 = por %p63, %p64
    %s67 = sadd.s32 %s66, 1
    %p70 = scmp.eq.s32.totalorder %s11, 1
    %p71 = scmp.ne.s32.totalorder %s66, %s68
    %p72 = scmp.eq.s32.totalorder %s11, 0
    %p73 = por %p71, %p72
    %p74 = scmp.ne.s32.totalorder %s66, %s68
    %p75 = scmp.eq.s32.totalorder %s16, 1
    %p76 = por %p74, %p75
    %p77 = scmp.ne.s32.totalorder %s68, %s69
    %p78 = scmp.eq.s32.totalorder %s16, 0
    %p79 = por %p77, %p78
    %p80 = scmp.ne.s32.totalorder %s68, %s69
    %p81 = scmp.eq.s32.totalorder %s17, 1
    %p82 = por %p80, %p81
    %p84 = scmp.ne.s32.totalorder %s69, %s83
    %p85 = scmp.eq.s32.totalorder %s17, 0
    %p86 = por %p84, %p85
    %s88 = sadd.s32 %s87, 1
    %p91 = scmp.eq.s32.totalorder %s11, 1
    %p92 = scmp.ne.s32.totalorder %s87, %s89
    %p93 = scmp.eq.s32.totalorder %s11, 0
    %p94 = por %p92, %p93
    %p95 = scmp.ne.s32.totalorder %s87, %s89
    %p96 = scmp.eq.s32.totalorder %s16, 1
    %p97 = por %p95, %p96
    %p98 = scmp.ne.s32.totalorder %s89, %s90
    %p99 = scmp.eq.s32.totalorder %s16, 0
    %p100 = por %p98, %p99
    %p101 = scmp.ne.s32.totalorder %s89, %s90
    %p102 = scmp.eq.s32.totalorder %s17, 1
    %p103 = por %p101, %p102
    %p105 = scmp.ne.s32.totalorder %s90, %s104
    %p106 = scmp.eq.s32.totalorder %s17, 0
    %p107 = por %p105, %p106
    %s109 = sadd.s32 %s108, 1
    %p112 = scmp.eq.s32.totalorder %s11, 1
    %p113 = scmp.ne.s32.totalorder %s108, %s110
    %p114 = scmp.eq.s32.totalorder %s11, 0
    %p115 = por %p113, %p114
    %p116 = scmp.ne.s32.totalorder %s108, %s110
    %p117 = scmp.eq.s32.totalorder %s16, 1
    %p118 = por %p116, %p117
    %p119 = scmp.ne.s32.totalorder %s110, %s111
    %p120 = scmp.eq.s32.totalorder %s16, 0
    %p121 = por %p119, %p120
    %p122 = scmp.ne.s32.totalorder %s110, %s111
    %p123 = scmp.eq.s32.totalorder %s17, 1
    %p124 = por %p122, %p123
    %p126 = scmp.ne.s32.totalorder %s111, %s125
    %p127 = scmp.eq.s32.totalorder %s17, 0
    %p128 = por %p126, %p127
    %s129 = ssub.s32 %s11, %s18
    %p130 = scmp.eq.s32.totalorder %s129, 0
    %s132 = sadd.s32 %s131, 1
    %s133 = scalar_select %p130, %s131, %s132
    %p136 = pneg %p130
    %p137 = scmp.eq.s32.totalorder %s11, 1
    %p138 = por %p136, %p137
    %p139 = scmp.ne.s32.totalorder %s131, %s134
    %p140 = scmp.eq.s32.totalorder %s11, 0
    %p141 = por %p139, %p140
    %p142 = scmp.ne.s32.totalorder %s131, %s134
    %p143 = scmp.eq.s32.totalorder %s16, 1
    %p144 = por %p142, %p143
    %p145 = scmp.ne.s32.totalorder %s134, %s135
    %p146 = scmp.eq.s32.totalorder %s16, 0
    %p147 = por %p145, %p146
    %p148 = scmp.ne.s32.totalorder %s134, %s135
    %p149 = scmp.eq.s32.totalorder %s17, 1
    %p150 = por %p148, %p149
    %p152 = scmp.ne.s32.totalorder %s135, %s151
    %p153 = scmp.eq.s32.totalorder %s17, 0
    %p154 = por %p152, %p153
    %p155 = scmp.le.s32.totalorder 1, %s11
    %p156 = scmp.lt.s32.totalorder %s11, 3
    %p157 = pnand %p155, %p156
    %p158 = pneg %p157
    // Predicated region
    $region9: #{fedi_forward.1} parent=5 // pred_check
      _
    $region10: #{fedi_forward.1} parent=5 // pred_check_branch
      %160 = sbr.rel (%p157) target = $region12
    $region11: #{fedi_forward.1} parent=5 // pred_region
      %s161 = ssub.s32 %s11, 1
      // Predicated region
      $region13: #{fedi_forward.1} parent=11 // pred_check
        %p162 = pneg %p58
      $region14: #{fedi_forward.1} parent=11 // pred_check_branch
        %164 = sbr.rel (%p162) target = $region16
      $region15: #{fedi_forward.1} parent=11 // pred_region
        _
      $region16: #{fedi_forward.1} parent=11 // pred_fallthru
        _
      // Predicated region
      $region17: #{fedi_forward.1} parent=11 // pred_check
        %p165 = pneg %p79
      $region18: #{fedi_forward.1} parent=11 // pred_check_branch
        %167 = sbr.rel (%p165) target = $region20
      $region19: #{fedi_forward.1} parent=11 // pred_region
        _
      $region20: #{fedi_forward.1} parent=11 // pred_fallthru
        _
      // Predicated region
      $region21: #{fedi_forward.1} parent=11 // pred_check
        %p168 = pneg %p100
      $region22: #{fedi_forward.1} parent=11 // pred_check_branch
        %170 = sbr.rel (%p168) target = $region24
      $region23: #{fedi_forward.1} parent=11 // pred_region
        _
      $region24: #{fedi_forward.1} parent=11 // pred_fallthru
        _
      // Predicated region
      $region25: #{fedi_forward.1} parent=11 // pred_check
        %p171 = pneg %p121
      $region26: #{fedi_forward.1} parent=11 // pred_check_branch
        %173 = sbr.rel (%p171) target = $region28
      $region27: #{fedi_forward.1} parent=11 // pred_region
        _
      $region28: #{fedi_forward.1} parent=11 // pred_fallthru
        _
    $region12: #{fedi_forward.1} parent=5 // pred_fallthru
      _
    %p174 = scmp.lt.s32.totalorder %s11, 2
    // Predicated region
    $region29: #{fedi_forward.1} parent=5 // pred_check
      %p175 = pneg %p174
    $region30: #{fedi_forward.1} parent=5 // pred_check_branch
      %177 = sbr.rel (%p175) target = $region32
    $region31: #{fedi_forward.1} parent=5 // pred_region
      // Predicated region
      $region33: #{fedi_forward.1} parent=31 // pred_check
        %p178 = pneg %p31
      $region34: #{fedi_forward.1} parent=31 // pred_check_branch
        %180 = sbr.rel (%p178) target = $region36
      $region35: #{fedi_forward.1} parent=31 // pred_region
        %p181 = scmp.lt.s32.totalorder %s11, 1
        %s182 = scalar_select %p181, %s11, 1
        %s183 = smul.addr %s182, 256
        %s184 = smul.addr %s183, 4
        %s185 = scalar_lea.vmem %s0, %s184
      $region36: #{fedi_forward.1} parent=31 // pred_fallthru
        _
    $region32: #{fedi_forward.1} parent=5 // pred_fallthru
      _
    %p186 = scmp.le.s32.totalorder 1, %s11
    %p187 = scmp.lt.s32.totalorder %s11, 3
    %p188 = pnand %p186, %p187
    %p189 = pneg %p188
    // Predicated region
    $region37: #{fedi_forward.1} parent=5 // pred_check
      _
    $region38: #{fedi_forward.1} parent=5 // pred_check_branch
      %191 = sbr.rel (%p188) target = $region40
    $region39: #{fedi_forward.1} parent=5 // pred_region
      %s192 = ssub.s32 %s11, 1
      %p193 = scmp.lt.s32.totalorder %s16, 1
      %s194 = scalar_select %p193, %s16, 1
      %s195 = smul.addr %s194, 256
      %s196 = smul.addr %s195, 4
      %s197 = scalar_lea.vmem %s0, %s196
      %p198 = pneg %p37
      %p199 = pneg %p34
      %p200 = pneg %p58
      %p201 = pneg %p55
      %p202 = pneg %p79
      %p203 = pneg %p76
      %p204 = pneg %p100
      %p205 = pneg %p97
      %p206 = pneg %p121
      %p207 = pneg %p118
      %p208 = pneg %p147
      %p209 = pneg %p144
      %p210 = scmp.lt.s32.totalorder %s16, 1
      %s211 = scalar_select %p210, %s16, 1
      %s212 = smul.addr %s211, 8
      %s213 = scalar_lea.vmem %s5, %s212
      %p214 = scmp.lt.s32.totalorder %s16, 1
      %s215 = scalar_select %p214, %s16, 1
      %s216 = smul.addr %s215, 256
      %s217 = smul.addr %s216, 4
      %s218 = scalar_lea.vmem %s0, %s217
      %p219 = scmp.lt.s32.totalorder %s16, 1
      %s220 = scalar_select %p219, %s16, 1
      %s221 = smul.addr %s220, 8
      %s222 = scalar_lea.vmem %s5, %s221
      %v224 = vld [vmem:[%s4] sm:$0xff]
      %v225 = vld [vmem:[%s4 + $0x8] sm:$0x1]
      %v226 = vld [vmem:[%s218] sm:$0xf]
      %v227 = vld [vmem:[%s218 + $0x4] sm:$0xf]
      %v228 = vld [vmem:[%s218 + $0x8] sm:$0xf]
      %v229 = vld [vmem:[%s218 + $0xc] sm:$0xf]
      %v230 = vld [vmem:[%s218 + $0x10] sm:$0xf]
      %v231 = vld [vmem:[%s218 + $0x14] sm:$0xf]
      %v232 = vld [vmem:[%s218 + $0x18] sm:$0xf]
      %v233 = vld [vmem:[%s218 + $0x1c] sm:$0xf]
      %v234 = vld [vmem:[%s218 + $0x20] sm:$0xf]
      %v235 = vld [vmem:[%s218 + $0x24] sm:$0xf]
      %v236 = vld [vmem:[%s218 + $0x28] sm:$0xf]
      %v237 = vld [vmem:[%s218 + $0x2c] sm:$0xf]
      %v238 = vld [vmem:[%s218 + $0x30] sm:$0xf]
      %v239 = vld [vmem:[%s218 + $0x34] sm:$0xf]
      %v240 = vld [vmem:[%s218 + $0x38] sm:$0xf]
      %v241 = vld [vmem:[%s218 + $0x3c] sm:$0xf]
      %v242 = vld [vmem:[%s218 + $0x40] sm:$0xf]
      %v243 = vld [vmem:[%s218 + $0x44] sm:$0xf]
      %v244 = vld [vmem:[%s218 + $0x48] sm:$0xf]
      %v245 = vld [vmem:[%s218 + $0x4c] sm:$0xf]
      %v246 = vld [vmem:[%s218 + $0x50] sm:$0xf]
      %v247 = vld [vmem:[%s218 + $0x54] sm:$0xf]
      %v248 = vld [vmem:[%s218 + $0x58] sm:$0xf]
      %v249 = vld [vmem:[%s218 + $0x5c] sm:$0xf]
      %v250 = vld [vmem:[%s218 + $0x60] sm:$0xf]
      %v251 = vld [vmem:[%s218 + $0x64] sm:$0xf]
      %v252 = vld [vmem:[%s218 + $0x68] sm:$0xf]
      %v253 = vld [vmem:[%s218 + $0x6c] sm:$0xf]
      %v254 = vld [vmem:[%s218 + $0x70] sm:$0xf]
      %v255 = vld [vmem:[%s218 + $0x74] sm:$0xf]
      %v256 = vld [vmem:[%s218 + $0x78] sm:$0xf]
      %v257 = vld [vmem:[%s218 + $0x7c] sm:$0xf]
      %v258 = vld [vmem:[%s218 + $0x80] sm:$0xf]
      %v259 = vld [vmem:[%s218 + $0x84] sm:$0xf]
      %v260 = vld [vmem:[%s218 + $0x88] sm:$0xf]
      %v261 = vld [vmem:[%s218 + $0x8c] sm:$0xf]
      %v262 = vld [vmem:[%s218 + $0x90] sm:$0xf]
      %v263 = vld [vmem:[%s218 + $0x94] sm:$0xf]
      %v264 = vld [vmem:[%s218 + $0x98] sm:$0xf]
      %v265 = vld [vmem:[%s218 + $0x9c] sm:$0xf]
      %v266 = vld [vmem:[%s218 + $0xa0] sm:$0xf]
      %v267 = vld [vmem:[%s218 + $0xa4] sm:$0xf]
      %v268 = vld [vmem:[%s218 + $0xa8] sm:$0xf]
      %v269 = vld [vmem:[%s218 + $0xac] sm:$0xf]
      %v270 = vld [vmem:[%s218 + $0xb0] sm:$0xf]
      %v271 = vld [vmem:[%s218 + $0xb4] sm:$0xf]
      %v272 = vld [vmem:[%s218 + $0xb8] sm:$0xf]
      %v273 = vld [vmem:[%s218 + $0xbc] sm:$0xf]
      %v274 = vld [vmem:[%s218 + $0xc0] sm:$0xf]
      %v275 = vld [vmem:[%s218 + $0xc4] sm:$0xf]
      %v276 = vld [vmem:[%s218 + $0xc8] sm:$0xf]
      %v277 = vld [vmem:[%s218 + $0xcc] sm:$0xf]
      %v278 = vld [vmem:[%s218 + $0xd0] sm:$0xf]
      %v279 = vld [vmem:[%s218 + $0xd4] sm:$0xf]
      %v280 = vld [vmem:[%s218 + $0xd8] sm:$0xf]
      %v281 = vld [vmem:[%s218 + $0xdc] sm:$0xf]
      %v282 = vld [vmem:[%s218 + $0xe0] sm:$0xf]
      %v283 = vld [vmem:[%s218 + $0xe4] sm:$0xf]
      %v284 = vld [vmem:[%s218 + $0xe8] sm:$0xf]
      %v285 = vld [vmem:[%s218 + $0xec] sm:$0xf]
      %v286 = vld [vmem:[%s218 + $0xf0] sm:$0xf]
      %v287 = vld [vmem:[%s218 + $0xf4] sm:$0xf]
      %v288 = vld [vmem:[%s218 + $0xf8] sm:$0xf]
      %v289 = vld [vmem:[%s218 + $0xfc] sm:$0xf]
      %v290 = vld [vmem:[%s218 + $0x100] sm:$0xf]
      %v291 = vld [vmem:[%s218 + $0x104] sm:$0xf]
      %v292 = vld [vmem:[%s218 + $0x108] sm:$0xf]
      %v293 = vld [vmem:[%s218 + $0x10c] sm:$0xf]
      %v294 = vld [vmem:[%s218 + $0x110] sm:$0xf]
      %v295 = vld [vmem:[%s218 + $0x114] sm:$0xf]
      %v296 = vld [vmem:[%s218 + $0x118] sm:$0xf]
      %v297 = vld [vmem:[%s218 + $0x11c] sm:$0xf]
      %v298 = vld [vmem:[%s218 + $0x120] sm:$0xf]
      %v299 = vld [vmem:[%s218 + $0x124] sm:$0xf]
      %v300 = vld [vmem:[%s218 + $0x128] sm:$0xf]
      %v301 = vld [vmem:[%s218 + $0x12c] sm:$0xf]
      %v302 = vld [vmem:[%s218 + $0x130] sm:$0xf]
      %v303 = vld [vmem:[%s218 + $0x134] sm:$0xf]
      %v304 = vld [vmem:[%s218 + $0x138] sm:$0xf]
      %v305 = vld [vmem:[%s218 + $0x13c] sm:$0xf]
      %v306 = vld [vmem:[%s218 + $0x140] sm:$0xf]
      %v307 = vld [vmem:[%s218 + $0x144] sm:$0xf]
      %v308 = vld [vmem:[%s218 + $0x148] sm:$0xf]
      %v309 = vld [vmem:[%s218 + $0x14c] sm:$0xf]
      %v310 = vld [vmem:[%s218 + $0x150] sm:$0xf]
      %v311 = vld [vmem:[%s218 + $0x154] sm:$0xf]
      %v312 = vld [vmem:[%s218 + $0x158] sm:$0xf]
      %v313 = vld [vmem:[%s218 + $0x15c] sm:$0xf]
      %v314 = vld [vmem:[%s218 + $0x160] sm:$0xf]
      %v315 = vld [vmem:[%s218 + $0x164] sm:$0xf]
      %v316 = vld [vmem:[%s218 + $0x168] sm:$0xf]
      %v317 = vld [vmem:[%s218 + $0x16c] sm:$0xf]
      %v318 = vld [vmem:[%s218 + $0x170] sm:$0xf]
      %v319 = vld [vmem:[%s218 + $0x174] sm:$0xf]
      %v320 = vld [vmem:[%s218 + $0x178] sm:$0xf]
      %v321 = vld [vmem:[%s218 + $0x17c] sm:$0xf]
      %v322 = vld [vmem:[%s218 + $0x180] sm:$0xf]
      %v323 = vld [vmem:[%s218 + $0x184] sm:$0xf]
      %v324 = vld [vmem:[%s218 + $0x188] sm:$0xf]
      %v325 = vld [vmem:[%s218 + $0x18c] sm:$0xf]
      %v326 = vld [vmem:[%s218 + $0x190] sm:$0xf]
      %v327 = vld [vmem:[%s218 + $0x194] sm:$0xf]
      %v328 = vld [vmem:[%s218 + $0x198] sm:$0xf]
      %v329 = vld [vmem:[%s218 + $0x19c] sm:$0xf]
      %v330 = vld [vmem:[%s218 + $0x1a0] sm:$0xf]
      %v331 = vld [vmem:[%s218 + $0x1a4] sm:$0xf]
      %v332 = vld [vmem:[%s218 + $0x1a8] sm:$0xf]
      %v333 = vld [vmem:[%s218 + $0x1ac] sm:$0xf]
      %v334 = vld [vmem:[%s218 + $0x1b0] sm:$0xf]
      %v335 = vld [vmem:[%s218 + $0x1b4] sm:$0xf]
      %v336 = vld [vmem:[%s218 + $0x1b8] sm:$0xf]
      %v337 = vld [vmem:[%s218 + $0x1bc] sm:$0xf]
      %v338 = vld [vmem:[%s218 + $0x1c0] sm:$0xf]
      %v339 = vld [vmem:[%s218 + $0x1c4] sm:$0xf]
      %v340 = vld [vmem:[%s218 + $0x1c8] sm:$0xf]
      %v341 = vld [vmem:[%s218 + $0x1cc] sm:$0xf]
      %v342 = vld [vmem:[%s218 + $0x1d0] sm:$0xf]
      %v343 = vld [vmem:[%s218 + $0x1d4] sm:$0xf]
      %v344 = vld [vmem:[%s218 + $0x1d8] sm:$0xf]
      %v345 = vld [vmem:[%s218 + $0x1dc] sm:$0xf]
      %v346 = vld [vmem:[%s218 + $0x1e0] sm:$0xf]
      %v347 = vld [vmem:[%s218 + $0x1e4] sm:$0xf]
      %v348 = vld [vmem:[%s218 + $0x1e8] sm:$0xf]
      %v349 = vld [vmem:[%s218 + $0x1ec] sm:$0xf]
      %v350 = vld [vmem:[%s218 + $0x1f0] sm:$0xf]
      %v351 = vld [vmem:[%s218 + $0x1f4] sm:$0xf]
      %v352 = vld [vmem:[%s218 + $0x1f8] sm:$0xf]
      %v353 = vld [vmem:[%s218 + $0x1fc] sm:$0xf]
      %v354 = vld [vmem:[%s218 + $0x200] sm:$0xf]
      %v355 = vld [vmem:[%s218 + $0x204] sm:$0xf]
      %v356 = vld [vmem:[%s218 + $0x208] sm:$0xf]
      %v357 = vld [vmem:[%s218 + $0x20c] sm:$0xf]
      %v358 = vld [vmem:[%s218 + $0x210] sm:$0xf]
      %v359 = vld [vmem:[%s218 + $0x214] sm:$0xf]
      %v360 = vld [vmem:[%s218 + $0x218] sm:$0xf]
      %v361 = vld [vmem:[%s218 + $0x21c] sm:$0xf]
      %v362 = vld [vmem:[%s218 + $0x220] sm:$0xf]
      %v363 = vld [vmem:[%s218 + $0x224] sm:$0xf]
      %v364 = vld [vmem:[%s218 + $0x228] sm:$0xf]
      %v365 = vld [vmem:[%s218 + $0x22c] sm:$0xf]
      %v366 = vld [vmem:[%s218 + $0x230] sm:$0xf]
      %v367 = vld [vmem:[%s218 + $0x234] sm:$0xf]
      %v368 = vld [vmem:[%s218 + $0x238] sm:$0xf]
      %v369 = vld [vmem:[%s218 + $0x23c] sm:$0xf]
      %v370 = vld [vmem:[%s218 + $0x240] sm:$0xf]
      %v371 = vld [vmem:[%s218 + $0x244] sm:$0xf]
      %v372 = vld [vmem:[%s218 + $0x248] sm:$0xf]
      %v373 = vld [vmem:[%s218 + $0x24c] sm:$0xf]
      %v374 = vld [vmem:[%s218 + $0x250] sm:$0xf]
      %v375 = vld [vmem:[%s218 + $0x254] sm:$0xf]
      %v376 = vld [vmem:[%s218 + $0x258] sm:$0xf]
      %v377 = vld [vmem:[%s218 + $0x25c] sm:$0xf]
      %v378 = vld [vmem:[%s218 + $0x260] sm:$0xf]
      %v379 = vld [vmem:[%s218 + $0x264] sm:$0xf]
      %v380 = vld [vmem:[%s218 + $0x268] sm:$0xf]
      %v381 = vld [vmem:[%s218 + $0x26c] sm:$0xf]
      %v382 = vld [vmem:[%s218 + $0x270] sm:$0xf]
      %v383 = vld [vmem:[%s218 + $0x274] sm:$0xf]
      %v384 = vld [vmem:[%s218 + $0x278] sm:$0xf]
      %v385 = vld [vmem:[%s218 + $0x27c] sm:$0xf]
      %v386 = vld [vmem:[%s218 + $0x280] sm:$0xf]
      %v387 = vld [vmem:[%s218 + $0x284] sm:$0xf]
      %v388 = vld [vmem:[%s218 + $0x288] sm:$0xf]
      %v389 = vld [vmem:[%s218 + $0x28c] sm:$0xf]
      %v390 = vld [vmem:[%s218 + $0x290] sm:$0xf]
      %v391 = vld [vmem:[%s218 + $0x294] sm:$0xf]
      %v392 = vld [vmem:[%s218 + $0x298] sm:$0xf]
      %v393 = vld [vmem:[%s218 + $0x29c] sm:$0xf]
      %v394 = vld [vmem:[%s218 + $0x2a0] sm:$0xf]
      %v395 = vld [vmem:[%s218 + $0x2a4] sm:$0xf]
      %v396 = vld [vmem:[%s218 + $0x2a8] sm:$0xf]
      %v397 = vld [vmem:[%s218 + $0x2ac] sm:$0xf]
      %v398 = vld [vmem:[%s218 + $0x2b0] sm:$0xf]
      %v399 = vld [vmem:[%s218 + $0x2b4] sm:$0xf]
      %v400 = vld [vmem:[%s218 + $0x2b8] sm:$0xf]
      %v401 = vld [vmem:[%s218 + $0x2bc] sm:$0xf]
      %v402 = vld [vmem:[%s218 + $0x2c0] sm:$0xf]
      %v403 = vld [vmem:[%s218 + $0x2c4] sm:$0xf]
      %v404 = vld [vmem:[%s218 + $0x2c8] sm:$0xf]
      %v405 = vld [vmem:[%s218 + $0x2cc] sm:$0xf]
      %v406 = vld [vmem:[%s218 + $0x2d0] sm:$0xf]
      %v407 = vld [vmem:[%s218 + $0x2d4] sm:$0xf]
      %v408 = vld [vmem:[%s218 + $0x2d8] sm:$0xf]
      %v409 = vld [vmem:[%s218 + $0x2dc] sm:$0xf]
      %v410 = vld [vmem:[%s218 + $0x2e0] sm:$0xf]
      %v411 = vld [vmem:[%s218 + $0x2e4] sm:$0xf]
      %v412 = vld [vmem:[%s218 + $0x2e8] sm:$0xf]
      %v413 = vld [vmem:[%s218 + $0x2ec] sm:$0xf]
      %v414 = vld [vmem:[%s218 + $0x2f0] sm:$0xf]
      %v415 = vld [vmem:[%s218 + $0x2f4] sm:$0xf]
      %v416 = vld [vmem:[%s218 + $0x2f8] sm:$0xf]
      %v417 = vld [vmem:[%s218 + $0x2fc] sm:$0xf]
      %v418 = vld [vmem:[%s218 + $0x300] sm:$0xf]
      %v419 = vld [vmem:[%s218 + $0x304] sm:$0xf]
      %v420 = vld [vmem:[%s218 + $0x308] sm:$0xf]
      %v421 = vld [vmem:[%s218 + $0x30c] sm:$0xf]
      %v422 = vld [vmem:[%s218 + $0x310] sm:$0xf]
      %v423 = vld [vmem:[%s218 + $0x314] sm:$0xf]
      %v424 = vld [vmem:[%s218 + $0x318] sm:$0xf]
      %v425 = vld [vmem:[%s218 + $0x31c] sm:$0xf]
      %v426 = vld [vmem:[%s218 + $0x320] sm:$0xf]
      %v427 = vld [vmem:[%s218 + $0x324] sm:$0xf]
      %v428 = vld [vmem:[%s218 + $0x328] sm:$0xf]
      %v429 = vld [vmem:[%s218 + $0x32c] sm:$0xf]
      %v430 = vld [vmem:[%s218 + $0x330] sm:$0xf]
      %v431 = vld [vmem:[%s218 + $0x334] sm:$0xf]
      %v432 = vld [vmem:[%s218 + $0x338] sm:$0xf]
      %v433 = vld [vmem:[%s218 + $0x33c] sm:$0xf]
      %v434 = vld [vmem:[%s218 + $0x340] sm:$0xf]
      %v435 = vld [vmem:[%s218 + $0x344] sm:$0xf]
      %v436 = vld [vmem:[%s218 + $0x348] sm:$0xf]
      %v437 = vld [vmem:[%s218 + $0x34c] sm:$0xf]
      %v438 = vld [vmem:[%s218 + $0x350] sm:$0xf]
      %v439 = vld [vmem:[%s218 + $0x354] sm:$0xf]
      %v440 = vld [vmem:[%s218 + $0x358] sm:$0xf]
      %v441 = vld [vmem:[%s218 + $0x35c] sm:$0xf]
      %v442 = vld [vmem:[%s218 + $0x360] sm:$0xf]
      %v443 = vld [vmem:[%s218 + $0x364] sm:$0xf]
      %v444 = vld [vmem:[%s218 + $0x368] sm:$0xf]
      %v445 = vld [vmem:[%s218 + $0x36c] sm:$0xf]
      %v446 = vld [vmem:[%s218 + $0x370] sm:$0xf]
      %v447 = vld [vmem:[%s218 + $0x374] sm:$0xf]
      %v448 = vld [vmem:[%s218 + $0x378] sm:$0xf]
      %v449 = vld [vmem:[%s218 + $0x37c] sm:$0xf]
      %v450 = vld [vmem:[%s218 + $0x380] sm:$0xf]
      %v451 = vld [vmem:[%s218 + $0x384] sm:$0xf]
      %v452 = vld [vmem:[%s218 + $0x388] sm:$0xf]
      %v453 = vld [vmem:[%s218 + $0x38c] sm:$0xf]
      %v454 = vld [vmem:[%s218 + $0x390] sm:$0xf]
      %v455 = vld [vmem:[%s218 + $0x394] sm:$0xf]
      %v456 = vld [vmem:[%s218 + $0x398] sm:$0xf]
      %v457 = vld [vmem:[%s218 + $0x39c] sm:$0xf]
      %v458 = vld [vmem:[%s218 + $0x3a0] sm:$0xf]
      %v459 = vld [vmem:[%s218 + $0x3a4] sm:$0xf]
      %v460 = vld [vmem:[%s218 + $0x3a8] sm:$0xf]
      %v461 = vld [vmem:[%s218 + $0x3ac] sm:$0xf]
      %v462 = vld [vmem:[%s218 + $0x3b0] sm:$0xf]
      %v463 = vld [vmem:[%s218 + $0x3b4] sm:$0xf]
      %v464 = vld [vmem:[%s218 + $0x3b8] sm:$0xf]
      %v465 = vld [vmem:[%s218 + $0x3bc] sm:$0xf]
      %v466 = vld [vmem:[%s218 + $0x3c0] sm:$0xf]
      %v467 = vld [vmem:[%s218 + $0x3c4] sm:$0xf]
      %v468 = vld [vmem:[%s218 + $0x3c8] sm:$0xf]
      %v469 = vld [vmem:[%s218 + $0x3cc] sm:$0xf]
      %v470 = vld [vmem:[%s218 + $0x3d0] sm:$0xf]
      %v471 = vld [vmem:[%s218 + $0x3d4] sm:$0xf]
      %v472 = vld [vmem:[%s218 + $0x3d8] sm:$0xf]
      %v473 = vld [vmem:[%s218 + $0x3dc] sm:$0xf]
      %v474 = vld [vmem:[%s218 + $0x3e0] sm:$0xf]
      %v475 = vld [vmem:[%s218 + $0x3e4] sm:$0xf]
      %v476 = vld [vmem:[%s218 + $0x3e8] sm:$0xf]
      %v477 = vld [vmem:[%s218 + $0x3ec] sm:$0xf]
      %v478 = vld [vmem:[%s218 + $0x3f0] sm:$0xf]
      %v479 = vld [vmem:[%s218 + $0x3f4] sm:$0xf]
      %v480 = vld [vmem:[%s218 + $0x3f8] sm:$0xf]
      %v481 = vld [vmem:[%s218 + $0x3fc] sm:$0xf]
      %v482 = vld [vmem:[%s1] sm:$0xf]
      %v483 = vld [vmem:[%s1 + $0x4] sm:$0xf]
      %v484 = vld [vmem:[%s1 + $0x8] sm:$0xf]
      %v485 = vld [vmem:[%s1 + $0xc] sm:$0xf]
      %v486 = vld [vmem:[%s1 + $0x10] sm:$0x3]
      %v743 = vunpack.c.l.b16 %v226
      %v744 = vunpack.c.l.b16 %v227
      %v745 = vunpack.c.l.b16 %v228
      %v746 = vunpack.c.l.b16 %v229
      %v747 = vunpack.c.l.b16 %v230
      %v748 = vunpack.c.l.b16 %v231
      %v749 = vunpack.c.l.b16 %v232
      %v750 = vunpack.c.l.b16 %v233
      %v751 = vunpack.c.l.b16 %v234
      %v752 = vunpack.c.l.b16 %v235
      %v753 = vunpack.c.l.b16 %v236
      %v754 = vunpack.c.l.b16 %v237
      %v755 = vunpack.c.l.b16 %v238
      %v756 = vunpack.c.l.b16 %v239
      %v757 = vunpack.c.l.b16 %v240
      %v758 = vunpack.c.l.b16 %v241
      %v759 = vunpack.c.l.b16 %v242
      %v760 = vunpack.c.l.b16 %v243
      %v761 = vunpack.c.l.b16 %v244
      %v762 = vunpack.c.l.b16 %v245
      %v763 = vunpack.c.l.b16 %v246
      %v764 = vunpack.c.l.b16 %v247
      %v765 = vunpack.c.l.b16 %v248
      %v766 = vunpack.c.l.b16 %v249
      %v767 = vunpack.c.l.b16 %v250
      %v768 = vunpack.c.l.b16 %v251
      %v769 = vunpack.c.l.b16 %v252
      %v770 = vunpack.c.l.b16 %v253
      %v771 = vunpack.c.l.b16 %v254
      %v772 = vunpack.c.l.b16 %v255
      %v773 = vunpack.c.l.b16 %v256
      %v774 = vunpack.c.l.b16 %v257
      %v775 = vunpack.c.l.b16 %v258
      %v776 = vunpack.c.l.b16 %v259
      %v777 = vunpack.c.l.b16 %v260
      %v778 = vunpack.c.l.b16 %v261
      %v779 = vunpack.c.l.b16 %v262
      %v780 = vunpack.c.l.b16 %v263
      %v781 = vunpack.c.l.b16 %v264
      %v782 = vunpack.c.l.b16 %v265
      %v783 = vunpack.c.l.b16 %v266
      %v784 = vunpack.c.l.b16 %v267
      %v785 = vunpack.c.l.b16 %v268
      %v786 = vunpack.c.l.b16 %v269
      %v787 = vunpack.c.l.b16 %v270
      %v788 = vunpack.c.l.b16 %v271
      %v789 = vunpack.c.l.b16 %v272
      %v790 = vunpack.c.l.b16 %v273
      %v791 = vunpack.c.l.b16 %v274
      %v792 = vunpack.c.l.b16 %v275
      %v793 = vunpack.c.l.b16 %v276
      %v794 = vunpack.c.l.b16 %v277
      %v795 = vunpack.c.l.b16 %v278
      %v796 = vunpack.c.l.b16 %v279
      %v797 = vunpack.c.l.b16 %v280
      %v798 = vunpack.c.l.b16 %v281
      %v799 = vunpack.c.l.b16 %v282
      %v800 = vunpack.c.l.b16 %v283
      %v801 = vunpack.c.l.b16 %v284
      %v802 = vunpack.c.l.b16 %v285
      %v803 = vunpack.c.l.b16 %v286
      %v804 = vunpack.c.l.b16 %v287
      %v805 = vunpack.c.l.b16 %v288
      %v806 = vunpack.c.l.b16 %v289
      %v807 = vunpack.c.l.b16 %v290
      %v808 = vunpack.c.l.b16 %v291
      %v809 = vunpack.c.l.b16 %v292
      %v810 = vunpack.c.l.b16 %v293
      %v811 = vunpack.c.l.b16 %v294
      %v812 = vunpack.c.l.b16 %v295
      %v813 = vunpack.c.l.b16 %v296
      %v814 = vunpack.c.l.b16 %v297
      %v815 = vunpack.c.l.b16 %v298
      %v816 = vunpack.c.l.b16 %v299
      %v817 = vunpack.c.l.b16 %v300
      %v818 = vunpack.c.l.b16 %v301
      %v819 = vunpack.c.l.b16 %v302
      %v820 = vunpack.c.l.b16 %v303
      %v821 = vunpack.c.l.b16 %v304
      %v822 = vunpack.c.l.b16 %v305
      %v823 = vunpack.c.l.b16 %v306
      %v824 = vunpack.c.l.b16 %v307
      %v825 = vunpack.c.l.b16 %v308
      %v826 = vunpack.c.l.b16 %v309
      %v827 = vunpack.c.l.b16 %v310
      %v828 = vunpack.c.l.b16 %v311
      %v829 = vunpack.c.l.b16 %v312
      %v830 = vunpack.c.l.b16 %v313
      %v831 = vunpack.c.l.b16 %v314
      %v832 = vunpack.c.l.b16 %v315
      %v833 = vunpack.c.l.b16 %v316
      %v834 = vunpack.c.l.b16 %v317
      %v835 = vunpack.c.l.b16 %v318
      %v836 = vunpack.c.l.b16 %v319
      %v837 = vunpack.c.l.b16 %v320
      %v838 = vunpack.c.l.b16 %v321
      %v839 = vunpack.c.l.b16 %v322
      %v840 = vunpack.c.l.b16 %v323
      %v841 = vunpack.c.l.b16 %v324
      %v842 = vunpack.c.l.b16 %v325
      %v843 = vunpack.c.l.b16 %v326
      %v844 = vunpack.c.l.b16 %v327
      %v845 = vunpack.c.l.b16 %v328
      %v846 = vunpack.c.l.b16 %v329
      %v847 = vunpack.c.l.b16 %v330
      %v848 = vunpack.c.l.b16 %v331
      %v849 = vunpack.c.l.b16 %v332
      %v850 = vunpack.c.l.b16 %v333
      %v851 = vunpack.c.l.b16 %v334
      %v852 = vunpack.c.l.b16 %v335
      %v853 = vunpack.c.l.b16 %v336
      %v854 = vunpack.c.l.b16 %v337
      %v855 = vunpack.c.l.b16 %v338
      %v856 = vunpack.c.l.b16 %v339
      %v857 = vunpack.c.l.b16 %v340
      %v858 = vunpack.c.l.b16 %v341
      %v859 = vunpack.c.l.b16 %v342
      %v860 = vunpack.c.l.b16 %v343
      %v861 = vunpack.c.l.b16 %v344
      %v862 = vunpack.c.l.b16 %v345
      %v863 = vunpack.c.l.b16 %v346
      %v864 = vunpack.c.l.b16 %v347
      %v865 = vunpack.c.l.b16 %v348
      %v866 = vunpack.c.l.b16 %v349
      %v867 = vunpack.c.l.b16 %v350
      %v868 = vunpack.c.l.b16 %v351
      %v869 = vunpack.c.l.b16 %v352
      %v870 = vunpack.c.l.b16 %v353
      %v871 = vunpack.c.l.b16 %v354
      %v872 = vunpack.c.l.b16 %v355
      %v873 = vunpack.c.l.b16 %v356
      %v874 = vunpack.c.l.b16 %v357
      %v875 = vunpack.c.l.b16 %v358
      %v876 = vunpack.c.l.b16 %v359
      %v877 = vunpack.c.l.b16 %v360
      %v878 = vunpack.c.l.b16 %v361
      %v879 = vunpack.c.l.b16 %v362
      %v880 = vunpack.c.l.b16 %v363
      %v881 = vunpack.c.l.b16 %v364
      %v882 = vunpack.c.l.b16 %v365
      %v883 = vunpack.c.l.b16 %v366
      %v884 = vunpack.c.l.b16 %v367
      %v885 = vunpack.c.l.b16 %v368
      %v886 = vunpack.c.l.b16 %v369
      %v887 = vunpack.c.l.b16 %v370
      %v888 = vunpack.c.l.b16 %v371
      %v889 = vunpack.c.l.b16 %v372
      %v890 = vunpack.c.l.b16 %v373
      %v891 = vunpack.c.l.b16 %v374
      %v892 = vunpack.c.l.b16 %v375
      %v893 = vunpack.c.l.b16 %v376
      %v894 = vunpack.c.l.b16 %v377
      %v895 = vunpack.c.l.b16 %v378
      %v896 = vunpack.c.l.b16 %v379
      %v897 = vunpack.c.l.b16 %v380
      %v898 = vunpack.c.l.b16 %v381
      %v899 = vunpack.c.l.b16 %v382
      %v900 = vunpack.c.l.b16 %v383
      %v901 = vunpack.c.l.b16 %v384
      %v902 = vunpack.c.l.b16 %v385
      %v903 = vunpack.c.l.b16 %v386
      %v904 = vunpack.c.l.b16 %v387
      %v905 = vunpack.c.l.b16 %v388
      %v906 = vunpack.c.l.b16 %v389
      %v907 = vunpack.c.l.b16 %v390
      %v908 = vunpack.c.l.b16 %v391
      %v909 = vunpack.c.l.b16 %v392
      %v910 = vunpack.c.l.b16 %v393
      %v911 = vunpack.c.l.b16 %v394
      %v912 = vunpack.c.l.b16 %v395
      %v913 = vunpack.c.l.b16 %v396
      %v914 = vunpack.c.l.b16 %v397
      %v915 = vunpack.c.l.b16 %v398
      %v916 = vunpack.c.l.b16 %v399
      %v917 = vunpack.c.l.b16 %v400
      %v918 = vunpack.c.l.b16 %v401
      %v919 = vunpack.c.l.b16 %v402
      %v920 = vunpack.c.l.b16 %v403
      %v921 = vunpack.c.l.b16 %v404
      %v922 = vunpack.c.l.b16 %v405
      %v923 = vunpack.c.l.b16 %v406
      %v924 = vunpack.c.l.b16 %v407
      %v925 = vunpack.c.l.b16 %v408
      %v926 = vunpack.c.l.b16 %v409
      %v927 = vunpack.c.l.b16 %v410
      %v928 = vunpack.c.l.b16 %v411
      %v929 = vunpack.c.l.b16 %v412
      %v930 = vunpack.c.l.b16 %v413
      %v931 = vunpack.c.l.b16 %v414
      %v932 = vunpack.c.l.b16 %v415
      %v933 = vunpack.c.l.b16 %v416
      %v934 = vunpack.c.l.b16 %v417
      %v935 = vunpack.c.l.b16 %v418
      %v936 = vunpack.c.l.b16 %v419
      %v937 = vunpack.c.l.b16 %v420
      %v938 = vunpack.c.l.b16 %v421
      %v939 = vunpack.c.l.b16 %v422
      %v940 = vunpack.c.l.b16 %v423
      %v941 = vunpack.c.l.b16 %v424
      %v942 = vunpack.c.l.b16 %v425
      %v943 = vunpack.c.l.b16 %v426
      %v944 = vunpack.c.l.b16 %v427
      %v945 = vunpack.c.l.b16 %v428
      %v946 = vunpack.c.l.b16 %v429
      %v947 = vunpack.c.l.b16 %v430
      %v948 = vunpack.c.l.b16 %v431
      %v949 = vunpack.c.l.b16 %v432
      %v950 = vunpack.c.l.b16 %v433
      %v951 = vunpack.c.l.b16 %v434
      %v952 = vunpack.c.l.b16 %v435
      %v953 = vunpack.c.l.b16 %v436
      %v954 = vunpack.c.l.b16 %v437
      %v955 = vunpack.c.l.b16 %v438
      %v956 = vunpack.c.l.b16 %v439
      %v957 = vunpack.c.l.b16 %v440
      %v958 = vunpack.c.l.b16 %v441
      %v959 = vunpack.c.l.b16 %v442
      %v960 = vunpack.c.l.b16 %v443
      %v961 = vunpack.c.l.b16 %v444
      %v962 = vunpack.c.l.b16 %v445
      %v963 = vunpack.c.l.b16 %v446
      %v964 = vunpack.c.l.b16 %v447
      %v965 = vunpack.c.l.b16 %v448
      %v966 = vunpack.c.l.b16 %v449
      %v967 = vunpack.c.l.b16 %v450
      %v968 = vunpack.c.l.b16 %v451
      %v969 = vunpack.c.l.b16 %v452
      %v970 = vunpack.c.l.b16 %v453
      %v971 = vunpack.c.l.b16 %v454
      %v972 = vunpack.c.l.b16 %v455
      %v973 = vunpack.c.l.b16 %v456
      %v974 = vunpack.c.l.b16 %v457
      %v975 = vunpack.c.l.b16 %v458
      %v976 = vunpack.c.l.b16 %v459
      %v977 = vunpack.c.l.b16 %v460
      %v978 = vunpack.c.l.b16 %v461
      %v979 = vunpack.c.l.b16 %v462
      %v980 = vunpack.c.l.b16 %v463
      %v981 = vunpack.c.l.b16 %v464
      %v982 = vunpack.c.l.b16 %v465
      %v983 = vunpack.c.l.b16 %v466
      %v984 = vunpack.c.l.b16 %v467
      %v985 = vunpack.c.l.b16 %v468
      %v986 = vunpack.c.l.b16 %v469
      %v987 = vunpack.c.l.b16 %v470
      %v988 = vunpack.c.l.b16 %v471
      %v989 = vunpack.c.l.b16 %v472
      %v990 = vunpack.c.l.b16 %v473
      %v991 = vunpack.c.l.b16 %v474
      %v992 = vunpack.c.l.b16 %v475
      %v993 = vunpack.c.l.b16 %v476
      %v994 = vunpack.c.l.b16 %v477
      %v995 = vunpack.c.l.b16 %v478
      %v996 = vunpack.c.l.b16 %v479
      %v997 = vunpack.c.l.b16 %v480
      %v998 = vunpack.c.l.b16 %v481
      %v999 = vpack.c.b16 %v744, %v743
      %v1000 = vpack.c.b16 %v746, %v745
      %v1001 = vpack.c.b16 %v748, %v747
      %v1002 = vpack.c.b16 %v750, %v749
      %v1003 = vpack.c.b16 %v752, %v751
      %v1004 = vpack.c.b16 %v754, %v753
      %v1005 = vpack.c.b16 %v756, %v755
      %v1006 = vpack.c.b16 %v758, %v757
      %v1007 = vpack.c.b16 %v760, %v759
      %v1008 = vpack.c.b16 %v762, %v761
      %v1009 = vpack.c.b16 %v764, %v763
      %v1010 = vpack.c.b16 %v766, %v765
      %v1011 = vpack.c.b16 %v768, %v767
      %v1012 = vpack.c.b16 %v770, %v769
      %v1013 = vpack.c.b16 %v772, %v771
      %v1014 = vpack.c.b16 %v774, %v773
      %v1015 = vpack.c.b16 %v776, %v775
      %v1016 = vpack.c.b16 %v778, %v777
      %v1017 = vpack.c.b16 %v780, %v779
      %v1018 = vpack.c.b16 %v782, %v781
      %v1019 = vpack.c.b16 %v784, %v783
      %v1020 = vpack.c.b16 %v786, %v785
      %v1021 = vpack.c.b16 %v788, %v787
      %v1022 = vpack.c.b16 %v790, %v789
      %v1023 = vpack.c.b16 %v792, %v791
      %v1024 = vpack.c.b16 %v794, %v793
      %v1025 = vpack.c.b16 %v796, %v795
      %v1026 = vpack.c.b16 %v798, %v797
      %v1027 = vpack.c.b16 %v800, %v799
      %v1028 = vpack.c.b16 %v802, %v801
      %v1029 = vpack.c.b16 %v804, %v803
      %v1030 = vpack.c.b16 %v806, %v805
      %v1031 = vpack.c.b16 %v808, %v807
      %v1032 = vpack.c.b16 %v810, %v809
      %v1033 = vpack.c.b16 %v812, %v811
      %v1034 = vpack.c.b16 %v814, %v813
      %v1035 = vpack.c.b16 %v816, %v815
      %v1036 = vpack.c.b16 %v818, %v817
      %v1037 = vpack.c.b16 %v820, %v819
      %v1038 = vpack.c.b16 %v822, %v821
      %v1039 = vpack.c.b16 %v824, %v823
      %v1040 = vpack.c.b16 %v826, %v825
      %v1041 = vpack.c.b16 %v828, %v827
      %v1042 = vpack.c.b16 %v830, %v829
      %v1043 = vpack.c.b16 %v832, %v831
      %v1044 = vpack.c.b16 %v834, %v833
      %v1045 = vpack.c.b16 %v836, %v835
      %v1046 = vpack.c.b16 %v838, %v837
      %v1047 = vpack.c.b16 %v840, %v839
      %v1048 = vpack.c.b16 %v842, %v841
      %v1049 = vpack.c.b16 %v844, %v843
      %v1050 = vpack.c.b16 %v846, %v845
      %v1051 = vpack.c.b16 %v848, %v847
      %v1052 = vpack.c.b16 %v850, %v849
      %v1053 = vpack.c.b16 %v852, %v851
      %v1054 = vpack.c.b16 %v854, %v853
      %v1055 = vpack.c.b16 %v856, %v855
      %v1056 = vpack.c.b16 %v858, %v857
      %v1057 = vpack.c.b16 %v860, %v859
      %v1058 = vpack.c.b16 %v862, %v861
      %v1059 = vpack.c.b16 %v864, %v863
      %v1060 = vpack.c.b16 %v866, %v865
      %v1061 = vpack.c.b16 %v868, %v867
      %v1062 = vpack.c.b16 %v870, %v869
      %v1063 = vpack.c.b16 %v872, %v871
      %v1064 = vpack.c.b16 %v874, %v873
      %v1065 = vpack.c.b16 %v876, %v875
      %v1066 = vpack.c.b16 %v878, %v877
      %v1067 = vpack.c.b16 %v880, %v879
      %v1068 = vpack.c.b16 %v882, %v881
      %v1069 = vpack.c.b16 %v884, %v883
      %v1070 = vpack.c.b16 %v886, %v885
      %v1071 = vpack.c.b16 %v888, %v887
      %v1072 = vpack.c.b16 %v890, %v889
      %v1073 = vpack.c.b16 %v892, %v891
      %v1074 = vpack.c.b16 %v894, %v893
      %v1075 = vpack.c.b16 %v896, %v895
      %v1076 = vpack.c.b16 %v898, %v897
      %v1077 = vpack.c.b16 %v900, %v899
      %v1078 = vpack.c.b16 %v902, %v901
      %v1079 = vpack.c.b16 %v904, %v903
      %v1080 = vpack.c.b16 %v906, %v905
      %v1081 = vpack.c.b16 %v908, %v907
      %v1082 = vpack.c.b16 %v910, %v909
      %v1083 = vpack.c.b16 %v912, %v911
      %v1084 = vpack.c.b16 %v914, %v913
      %v1085 = vpack.c.b16 %v916, %v915
      %v1086 = vpack.c.b16 %v918, %v917
      %v1087 = vpack.c.b16 %v920, %v919
      %v1088 = vpack.c.b16 %v922, %v921
      %v1089 = vpack.c.b16 %v924, %v923
      %v1090 = vpack.c.b16 %v926, %v925
      %v1091 = vpack.c.b16 %v928, %v927
      %v1092 = vpack.c.b16 %v930, %v929
      %v1093 = vpack.c.b16 %v932, %v931
      %v1094 = vpack.c.b16 %v934, %v933
      %v1095 = vpack.c.b16 %v936, %v935
      %v1096 = vpack.c.b16 %v938, %v937
      %v1097 = vpack.c.b16 %v940, %v939
      %v1098 = vpack.c.b16 %v942, %v941
      %v1099 = vpack.c.b16 %v944, %v943
      %v1100 = vpack.c.b16 %v946, %v945
      %v1101 = vpack.c.b16 %v948, %v947
      %v1102 = vpack.c.b16 %v950, %v949
      %v1103 = vpack.c.b16 %v952, %v951
      %v1104 = vpack.c.b16 %v954, %v953
      %v1105 = vpack.c.b16 %v956, %v955
      %v1106 = vpack.c.b16 %v958, %v957
      %v1107 = vpack.c.b16 %v960, %v959
      %v1108 = vpack.c.b16 %v962, %v961
      %v1109 = vpack.c.b16 %v964, %v963
      %v1110 = vpack.c.b16 %v966, %v965
      %v1111 = vpack.c.b16 %v968, %v967
      %v1112 = vpack.c.b16 %v970, %v969
      %v1113 = vpack.c.b16 %v972, %v971
      %v1114 = vpack.c.b16 %v974, %v973
      %v1115 = vpack.c.b16 %v976, %v975
      %v1116 = vpack.c.b16 %v978, %v977
      %v1117 = vpack.c.b16 %v980, %v979
      %v1118 = vpack.c.b16 %v982, %v981
      %v1119 = vpack.c.b16 %v984, %v983
      %v1120 = vpack.c.b16 %v986, %v985
      %v1121 = vpack.c.b16 %v988, %v987
      %v1122 = vpack.c.b16 %v990, %v989
      %v1123 = vpack.c.b16 %v992, %v991
      %v1124 = vpack.c.b16 %v994, %v993
      %v1125 = vpack.c.b16 %v996, %v995
      %v1126 = vpack.c.b16 %v998, %v997
      %v1132 = vunpack.c.l.b16 %v482
      %v1133 = vunpack.c.l.b16 %v483
      %v1134 = vunpack.c.l.b16 %v484
      %v1135 = vunpack.c.l.b16 %v485
      %v1136 = vunpack.c.l.b16 %v486
      %v1137 = vpack.c.b16 %v1133, %v1132
      %v1138 = vpack.c.b16 %v1135, %v1134
      %v1139 = vpack.c.b16 %v1136, %v1136
      %vm1142 = vcmask 293888
      %v1144 = vsel %vm1142, %v999, 0
      %v1147 = vsel %vm1142, %v1000, 0
      %v1150 = vsel %vm1142, %v1001, 0
      %v1153 = vsel %vm1142, %v1002, 0
      %v1156 = vsel %vm1142, %v1003, 0
      %v1159 = vsel %vm1142, %v1004, 0
      %v1162 = vsel %vm1142, %v1005, 0
      %v1165 = vsel %vm1142, %v1006, 0
      %v1168 = vsel %vm1142, %v1007, 0
      %v1171 = vsel %vm1142, %v1008, 0
      %v1174 = vsel %vm1142, %v1009, 0
      %v1177 = vsel %vm1142, %v1010, 0
      %v1180 = vsel %vm1142, %v1011, 0
      %v1183 = vsel %vm1142, %v1012, 0
      %v1186 = vsel %vm1142, %v1013, 0
      %v1189 = vsel %vm1142, %v1014, 0
      %v1192 = vsel %vm1142, %v1015, 0
      %v1195 = vsel %vm1142, %v1016, 0
      %v1198 = vsel %vm1142, %v1017, 0
      %v1201 = vsel %vm1142, %v1018, 0
      %v1204 = vsel %vm1142, %v1019, 0
      %v1207 = vsel %vm1142, %v1020, 0
      %v1210 = vsel %vm1142, %v1021, 0
      %v1213 = vsel %vm1142, %v1022, 0
      %v1216 = vsel %vm1142, %v1023, 0
      %v1219 = vsel %vm1142, %v1024, 0
      %v1222 = vsel %vm1142, %v1025, 0
      %v1225 = vsel %vm1142, %v1026, 0
      %v1228 = vsel %vm1142, %v1027, 0
      %v1231 = vsel %vm1142, %v1028, 0
      %v1234 = vsel %vm1142, %v1029, 0
      %v1237 = vsel %vm1142, %v1030, 0
      %v1240 = vsel %vm1142, %v1031, 0
      %v1243 = vsel %vm1142, %v1032, 0
      %v1246 = vsel %vm1142, %v1033, 0
      %v1249 = vsel %vm1142, %v1034, 0
      %v1252 = vsel %vm1142, %v1035, 0
      %v1255 = vsel %vm1142, %v1036, 0
      %v1258 = vsel %vm1142, %v1037, 0
      %v1261 = vsel %vm1142, %v1038, 0
      %v1264 = vsel %vm1142, %v1039, 0
      %v1267 = vsel %vm1142, %v1040, 0
      %v1270 = vsel %vm1142, %v1041, 0
      %v1273 = vsel %vm1142, %v1042, 0
      %v1276 = vsel %vm1142, %v1043, 0
      %v1279 = vsel %vm1142, %v1044, 0
      %v1282 = vsel %vm1142, %v1045, 0
      %v1285 = vsel %vm1142, %v1046, 0
      %v1288 = vsel %vm1142, %v1047, 0
      %v1291 = vsel %vm1142, %v1048, 0
      %v1294 = vsel %vm1142, %v1049, 0
      %v1297 = vsel %vm1142, %v1050, 0
      %v1300 = vsel %vm1142, %v1051, 0
      %v1303 = vsel %vm1142, %v1052, 0
      %v1306 = vsel %vm1142, %v1053, 0
      %v1309 = vsel %vm1142, %v1054, 0
      %v1312 = vsel %vm1142, %v1055, 0
      %v1315 = vsel %vm1142, %v1056, 0
      %v1318 = vsel %vm1142, %v1057, 0
      %v1321 = vsel %vm1142, %v1058, 0
      %v1324 = vsel %vm1142, %v1059, 0
      %v1327 = vsel %vm1142, %v1060, 0
      %v1330 = vsel %vm1142, %v1061, 0
      %v1333 = vsel %vm1142, %v1062, 0
      %v1336 = vsel %vm1142, %v1063, 0
      %v1339 = vsel %vm1142, %v1064, 0
      %v1342 = vsel %vm1142, %v1065, 0
      %v1345 = vsel %vm1142, %v1066, 0
      %v1348 = vsel %vm1142, %v1067, 0
      %v1351 = vsel %vm1142, %v1068, 0
      %v1354 = vsel %vm1142, %v1069, 0
      %v1357 = vsel %vm1142, %v1070, 0
      %v1360 = vsel %vm1142, %v1071, 0
      %v1363 = vsel %vm1142, %v1072, 0
      %v1366 = vsel %vm1142, %v1073, 0
      %v1369 = vsel %vm1142, %v1074, 0
      %v1372 = vsel %vm1142, %v1075, 0
      %v1375 = vsel %vm1142, %v1076, 0
      %v1378 = vsel %vm1142, %v1077, 0
      %v1381 = vsel %vm1142, %v1078, 0
      %v1384 = vsel %vm1142, %v1079, 0
      %v1387 = vsel %vm1142, %v1080, 0
      %v1390 = vsel %vm1142, %v1081, 0
      %v1393 = vsel %vm1142, %v1082, 0
      %v1396 = vsel %vm1142, %v1083, 0
      %v1399 = vsel %vm1142, %v1084, 0
      %v1402 = vsel %vm1142, %v1085, 0
      %v1405 = vsel %vm1142, %v1086, 0
      %v1408 = vsel %vm1142, %v1087, 0
      %v1411 = vsel %vm1142, %v1088, 0
      %v1414 = vsel %vm1142, %v1089, 0
      %v1417 = vsel %vm1142, %v1090, 0
      %v1420 = vsel %vm1142, %v1091, 0
      %v1423 = vsel %vm1142, %v1092, 0
      %v1426 = vsel %vm1142, %v1093, 0
      %v1429 = vsel %vm1142, %v1094, 0
      %v1432 = vsel %vm1142, %v1095, 0
      %v1435 = vsel %vm1142, %v1096, 0
      %v1438 = vsel %vm1142, %v1097, 0
      %v1441 = vsel %vm1142, %v1098, 0
      %v1444 = vsel %vm1142, %v1099, 0
      %v1447 = vsel %vm1142, %v1100, 0
      %v1450 = vsel %vm1142, %v1101, 0
      %v1453 = vsel %vm1142, %v1102, 0
      %v1456 = vsel %vm1142, %v1103, 0
      %v1459 = vsel %vm1142, %v1104, 0
      %v1462 = vsel %vm1142, %v1105, 0
      %v1465 = vsel %vm1142, %v1106, 0
      %v1468 = vsel %vm1142, %v1107, 0
      %v1471 = vsel %vm1142, %v1108, 0
      %v1474 = vsel %vm1142, %v1109, 0
      %v1477 = vsel %vm1142, %v1110, 0
      %v1480 = vsel %vm1142, %v1111, 0
      %v1483 = vsel %vm1142, %v1112, 0
      %v1486 = vsel %vm1142, %v1113, 0
      %v1489 = vsel %vm1142, %v1114, 0
      %v1492 = vsel %vm1142, %v1115, 0
      %v1495 = vsel %vm1142, %v1116, 0
      %v1498 = vsel %vm1142, %v1117, 0
      %v1501 = vsel %vm1142, %v1118, 0
      %v1504 = vsel %vm1142, %v1119, 0
      %v1507 = vsel %vm1142, %v1120, 0
      %v1510 = vsel %vm1142, %v1121, 0
      %v1513 = vsel %vm1142, %v1122, 0
      %v1516 = vsel %vm1142, %v1123, 0
      %v1519 = vsel %vm1142, %v1124, 0
      %v1522 = vsel %vm1142, %v1125, 0
      %v1525 = vsel %vm1142, %v1126, 0
      %vm1527 = vcmask 1041408
      %v1529 = vsel %vm1527, %v1139, 0
      %1531 = vmatprep.subr.bf16.mxu0 0
      %1532 = vmatpush1.bf16.msra.mxu0 %v1137
      %1533 = vmatprep.subr.bf16.mxu0 0
      %1534 = vmatpush1.bf16.msra.mxu0 %v1138
      %1535 = vmatprep.subr.bf16.mxu0 0
      %1536 = vmatpush1.bf16.msra.mxu0 %v1529
      %1537 = vmatprep.subr.bf16.mxu0 0
      %1538 = vmatpush1.bf16.msra.mxu0 0
      %1539 = vmatprep.subr.bf16.mxu0 0
      %1540 = vmatpush1.bf16.msra.mxu0 0
      %1541 = vmatprep.subr.bf16.mxu0 0
      %1542 = vmatpush1.bf16.msra.mxu0 0
      %1543 = vmatprep.subr.bf16.mxu0 0
      %1544 = vmatpush1.bf16.msra.mxu0 0
      %1545 = vmatprep.subr.bf16.mxu0 0
      %1546 = vmatpush1.bf16.msra.mxu0 0
      %1547 = vmatprep.subr.bf16.mxu0 0
      %1548 = vmatpush1.bf16.msra.mxu0 0
      %1549 = vmatprep.subr.bf16.mxu0 0
      %1550 = vmatpush1.bf16.msra.mxu0 0
      %1551 = vmatprep.subr.bf16.mxu0 0
      %1552 = vmatpush1.bf16.msra.mxu0 0
      %1553 = vmatprep.subr.bf16.mxu0 0
      %1554 = vmatpush1.bf16.msra.mxu0 0
      %1555 = vmatprep.subr.bf16.mxu0 0
      %1556 = vmatpush1.bf16.msra.mxu0 0
      %1557 = vmatprep.subr.bf16.mxu0 0
      %1558 = vmatpush1.bf16.msra.mxu0 0
      %1559 = vmatprep.subr.bf16.mxu0 0
      %1560 = vmatpush1.bf16.msra.mxu0 0
      %1561 = vmatprep.subr.bf16.mxu0 0
      %1562 = vmatpush1.bf16.msra.mxu0 0
      %1563 = vmatprep.mubr.bf16.mxu0 0
      %1564 = vmatmul.mubr.bf16.gmra.mrb[0].mxu0 %v1144
      %v1565 = vpop.f32.mrb[0].mxu0
      %v1566 = vadd.f32 0.0, %v1565
      %v1567 = vpop.f32.mrb[0].mxu0
      %v1568 = vpop.f32.mrb[0].mxu0
      %v1569 = vadd.f32 0.0, %v1568
      %v1570 = vpop.f32.mrb[0].mxu0
      %1571 = vmatprep.mubr.bf16.mxu0 0
      %1572 = vmatmul.mubr.bf16.gmra.mrb[0].mxu0 %v1147
      %v1573 = vpop.f32.mrb[0].mxu0
      %v1574 = vadd.f32 0.0, %v1573
      %v1575 = vpop.f32.mrb[0].mxu0
      %v1576 = vpop.f32.mrb[0].mxu0
      %v1577 = vadd.f32 0.0, %v1576
      %v1578 = vpop.f32.mrb[0].mxu0
      %1579 = vmatprep.mubr.bf16.mxu0 0
      %1580 = vmatmul.mubr.bf16.gmra.mrb[0].mxu0 %v1150
      %v1581 = vpop.f32.mrb[0].mxu0
      %v1582 = vadd.f32 0.0, %v1581
      %v1583 = vpop.f32.mrb[0].mxu0
      %v1584 = vpop.f32.mrb[0].mxu0
      %v1585 = vadd.f32 0.0, %v1584
      %v1586 = vpop.f32.mrb[0].mxu0
      %1587 = vmatprep.mubr.bf16.mxu0 0
      %1588 = vmatmul.mubr.bf16.gmra.mrb[0].mxu0 %v1153
      %v1589 = vpop.f32.mrb[0].mxu0
      %v1590 = vadd.f32 0.0, %v1589
      %v1591 = vpop.f32.mrb[0].mxu0
      %v1592 = vpop.f32.mrb[0].mxu0
      %v1593 = vadd.f32 0.0, %v1592
      %v1594 = vpop.f32.mrb[0].mxu0
      %1595 = vmatprep.mubr.bf16.mxu0 0
      %1596 = vmatmul.mubr.bf16.gmra.mrb[0].mxu0 %v1156
      %v1597 = vpop.f32.mrb[0].mxu0
      %v1598 = vadd.f32 0.0, %v1597
      %v1599 = vpop.f32.mrb[0].mxu0
      %v1600 = vpop.f32.mrb[0].mxu0
      %v1601 = vadd.f32 0.0, %v1600
      %v1602 = vpop.f32.mrb[0].mxu0
      %1603 = vmatprep.mubr.bf16.mxu0 0
      %1604 = vmatmul.mubr.bf16.gmra.mrb[0].mxu0 %v1159
      %v1605 = vpop.f32.mrb[0].mxu0
      %v1606 = vadd.f32 0.0, %v1605
      %v1607 = vpop.f32.mrb[0].mxu0
      %v1608 = vpop.f32.mrb[0].mxu0
      %v1609 = vadd.f32 0.0, %v1608
      %v1610 = vpop.f32.mrb[0].mxu0
      %1611 = vmatprep.mubr.bf16.mxu0 0
      %1612 = vmatmul.mubr.bf16.gmra.mrb[0].mxu0 %v1162
      %v1613 = vpop.f32.mrb[0].mxu0
      %v1614 = vadd.f32 0.0, %v1613
      %v1615 = vpop.f32.mrb[0].mxu0
      %v1616 = vpop.f32.mrb[0].mxu0
      %v1617 = vadd.f32 0.0, %v1616
      %v1618 = vpop.f32.mrb[0].mxu0
      %1619 = vmatprep.mubr.bf16.mxu0 0
      %1620 = vmatmul.mubr.bf16.gmra.mrb[0].mxu0 %v1165
      %v1621 = vpop.f32.mrb[0].mxu0
      %v1622 = vadd.f32 0.0, %v1621
      %v1623 = vpop.f32.mrb[0].mxu0
      %v1624 = vpop.f32.mrb[0].mxu0
      %v1625 = vadd.f32 0.0, %v1624
      %v1626 = vpop.f32.mrb[0].mxu0
      %1627 = vmatprep.mubr.bf16.mxu0 0
      %1628 = vmatmul.mubr.bf16.gmra.mrb[0].mxu0 %v1168
      %v1629 = vpop.f32.mrb[0].mxu0
      %v1630 = vadd.f32 0.0, %v1629
      %v1631 = vpop.f32.mrb[0].mxu0
      %v1632 = vpop.f32.mrb[0].mxu0
      %v1633 = vadd.f32 0.0, %v1632
      %v1634 = vpop.f32.mrb[0].mxu0
      %1635 = vmatprep.mubr.bf16.mxu0 0
      %1636 = vmatmul.mubr.bf16.gmra.mrb[0].mxu0 %v1171
      %v1637 = vpop.f32.mrb[0].mxu0
      %v1638 = vadd.f32 0.0, %v1637
      %v1639 = vpop.f32.mrb[0].mxu0
      %v1640 = vpop.f32.mrb[0].mxu0
      %v1641 = vadd.f32 0.0, %v1640
      %v1642 = vpop.f32.mrb[0].mxu0
      %1643 = vmatprep.mubr.bf16.mxu0 0
      %1644 = vmatmul.mubr.bf16.gmra.mrb[0].mxu0 %v1174
      %v1645 = vpop.f32.mrb[0].mxu0
      %v1646 = vadd.f32 0.0, %v1645
      %v1647 = vpop.f32.mrb[0].mxu0
      %v1648 = vpop.f32.mrb[0].mxu0
      %v1649 = vadd.f32 0.0, %v1648
      %v1650 = vpop.f32.mrb[0].mxu0
      %1651 = vmatprep.mubr.bf16.mxu0 0
      %1652 = vmatmul.mubr.bf16.gmra.mrb[0].mxu0 %v1177
      %v1653 = vpop.f32.mrb[0].mxu0
      %v1654 = vadd.f32 0.0, %v1653
      %v1655 = vpop.f32.mrb[0].mxu0
      %v1656 = vpop.f32.mrb[0].mxu0
      %v1657 = vadd.f32 0.0, %v1656
      %v1658 = vpop.f32.mrb[0].mxu0
      %1659 = vmatprep.mubr.bf16.mxu0 0
      %1660 = vmatmul.mubr.bf16.gmra.mrb[0].mxu0 %v1180
      %v1661 = vpop.f32.mrb[0].mxu0
      %v1662 = vadd.f32 0.0, %v1661
      %v1663 = vpop.f32.mrb[0].mxu0
      %v1664 = vpop.f32.mrb[0].mxu0
      %v1665 = vadd.f32 0.0, %v1664
      %v1666 = vpop.f32.mrb[0].mxu0
      %1667 = vmatprep.mubr.bf16.mxu0 0
      %1668 = vmatmul.mubr.bf16.gmra.mrb[0].mxu0 %v1183
      %v1669 = vpop.f32.mrb[0].mxu0
      %v1670 = vadd.f32 0.0, %v1669
      %v1671 = vpop.f32.mrb[0].mxu0
      %v1672 = vpop.f32.mrb[0].mxu0
      %v1673 = vadd.f32 0.0, %v1672
      %v1674 = vpop.f32.mrb[0].mxu0
      %1675 = vmatprep.mubr.bf16.mxu0 0
      %1676 = vmatmul.mubr.bf16.gmra.mrb[0].mxu0 %v1186
      %v1677 = vpop.f32.mrb[0].mxu0
      %v1678 = vadd.f32 0.0, %v1677
      %v1679 = vpop.f32.mrb[0].mxu0
      %v1680 = vpop.f32.mrb[0].mxu0
      %v1681 = vadd.f32 0.0, %v1680
      %v1682 = vpop.f32.mrb[0].mxu0
      %1683 = vmatprep.mubr.bf16.mxu0 0
      %1684 = vmatmul.mubr.bf16.gmra.mrb[0].mxu0 %v1189
      %v1685 = vpop.f32.mrb[0].mxu0
      %v1686 = vadd.f32 0.0, %v1685
      %v1687 = vpop.f32.mrb[0].mxu0
      %v1688 = vpop.f32.mrb[0].mxu0
      %v1689 = vadd.f32 0.0, %v1688
      %v1690 = vpop.f32.mrb[0].mxu0
      %1691 = vmatprep.mubr.bf16.mxu0 0
      %1692 = vmatmul.mubr.bf16.gmra.mrb[0].mxu0 %v1192
      %v1693 = vpop.f32.mrb[0].mxu0
      %v1694 = vadd.f32 0.0, %v1693
      %v1695 = vpop.f32.mrb[0].mxu0
      %v1696 = vpop.f32.mrb[0].mxu0
      %v1697 = vadd.f32 0.0, %v1696
      %v1698 = vpop.f32.mrb[0].mxu0
      %1699 = vmatprep.mubr.bf16.mxu0 0
      %1700 = vmatmul.mubr.bf16.gmra.mrb[0].mxu0 %v1195
      %v1701 = vpop.f32.mrb[0].mxu0
      %v1702 = vadd.f32 0.0, %v1701
      %v1703 = vpop.f32.mrb[0].mxu0
      %v1704 = vpop.f32.mrb[0].mxu0
      %v1705 = vadd.f32 0.0, %v1704
      %v1706 = vpop.f32.mrb[0].mxu0
      %1707 = vmatprep.mubr.bf16.mxu0 0
      %1708 = vmatmul.mubr.bf16.gmra.mrb[0].mxu0 %v1198
      %v1709 = vpop.f32.mrb[0].mxu0
      %v1710 = vadd.f32 0.0, %v1709
      %v1711 = vpop.f32.mrb[0].mxu0
      %v1712 = vpop.f32.mrb[0].mxu0
      %v1713 = vadd.f32 0.0, %v1712
      %v1714 = vpop.f32.mrb[0].mxu0
      %1715 = vmatprep.mubr.bf16.mxu0 0
      %1716 = vmatmul.mubr.bf16.gmra.mrb[0].mxu0 %v1201
      %v1717 = vpop.f32.mrb[0].mxu0
      %v1718 = vadd.f32 0.0, %v1717
      %v1719 = vpop.f32.mrb[0].mxu0
      %v1720 = vpop.f32.mrb[0].mxu0
      %v1721 = vadd.f32 0.0, %v1720
      %v1722 = vpop.f32.mrb[0].mxu0
      %1723 = vmatprep.mubr.bf16.mxu0 0
      %1724 = vmatmul.mubr.bf16.gmra.mrb[0].mxu0 %v1204
      %v1725 = vpop.f32.mrb[0].mxu0
      %v1726 = vadd.f32 0.0, %v1725
      %v1727 = vpop.f32.mrb[0].mxu0
      %v1728 = vpop.f32.mrb[0].mxu0
      %v1729 = vadd.f32 0.0, %v1728
      %v1730 = vpop.f32.mrb[0].mxu0
      %1731 = vmatprep.mubr.bf16.mxu0 0
      %1732 = vmatmul.mubr.bf16.gmra.mrb[0].mxu0 %v1207
      %v1733 = vpop.f32.mrb[0].mxu0
      %v1734 = vadd.f32 0.0, %v1733
      %v1735 = vpop.f32.mrb[0].mxu0
      %v1736 = vpop.f32.mrb[0].mxu0
      %v1737 = vadd.f32 0.0, %v1736
      %v1738 = vpop.f32.mrb[0].mxu0
      %1739 = vmatprep.mubr.bf16.mxu0 0
      %1740 = vmatmul.mubr.bf16.gmra.mrb[0].mxu0 %v1210
      %v1741 = vpop.f32.mrb[0].mxu0
      %v1742 = vadd.f32 0.0, %v1741
      %v1743 = vpop.f32.mrb[0].mxu0
      %v1744 = vpop.f32.mrb[0].mxu0
      %v1745 = vadd.f32 0.0, %v1744
      %v1746 = vpop.f32.mrb[0].mxu0
      %1747 = vmatprep.mubr.bf16.mxu0 0
      %1748 = vmatmul.mubr.bf16.gmra.mrb[0].mxu0 %v1213
      %v1749 = vpop.f32.mrb[0].mxu0
      %v1750 = vadd.f32 0.0, %v1749
      %v1751 = vpop.f32.mrb[0].mxu0
      %v1752 = vpop.f32.mrb[0].mxu0
      %v1753 = vadd.f32 0.0, %v1752
      %v1754 = vpop.f32.mrb[0].mxu0
      %1755 = vmatprep.mubr.bf16.mxu0 0
      %1756 = vmatmul.mubr.bf16.gmra.mrb[0].mxu0 %v1216
      %v1757 = vpop.f32.mrb[0].mxu0
      %v1758 = vadd.f32 0.0, %v1757
      %v1759 = vpop.f32.mrb[0].mxu0
      %v1760 = vpop.f32.mrb[0].mxu0
      %v1761 = vadd.f32 0.0, %v1760
      %v1762 = vpop.f32.mrb[0].mxu0
      %1763 = vmatprep.mubr.bf16.mxu0 0
      %1764 = vmatmul.mubr.bf16.gmra.mrb[0].mxu0 %v1219
      %v1765 = vpop.f32.mrb[0].mxu0
      %v1766 = vadd.f32 0.0, %v1765
      %v1767 = vpop.f32.mrb[0].mxu0
      %v1768 = vpop.f32.mrb[0].mxu0
      %v1769 = vadd.f32 0.0, %v1768
      %v1770 = vpop.f32.mrb[0].mxu0
      %1771 = vmatprep.mubr.bf16.mxu0 0
      %1772 = vmatmul.mubr.bf16.gmra.mrb[0].mxu0 %v1222
      %v1773 = vpop.f32.mrb[0].mxu0
      %v1774 = vadd.f32 0.0, %v1773
      %v1775 = vpop.f32.mrb[0].mxu0
      %v1776 = vpop.f32.mrb[0].mxu0
      %v1777 = vadd.f32 0.0, %v1776
      %v1778 = vpop.f32.mrb[0].mxu0
      %1779 = vmatprep.mubr.bf16.mxu0 0
      %1780 = vmatmul.mubr.bf16.gmra.mrb[0].mxu0 %v1225
      %v1781 = vpop.f32.mrb[0].mxu0
      %v1782 = vadd.f32 0.0, %v1781
      %v1783 = vpop.f32.mrb[0].mxu0
      %v1784 = vpop.f32.mrb[0].mxu0
      %v1785 = vadd.f32 0.0, %v1784
      %v1786 = vpop.f32.mrb[0].mxu0
      %1787 = vmatprep.mubr.bf16.mxu0 0
      %1788 = vmatmul.mubr.bf16.gmra.mrb[0].mxu0 %v1228
      %v1789 = vpop.f32.mrb[0].mxu0
      %v1790 = vadd.f32 0.0, %v1789
      %v1791 = vpop.f32.mrb[0].mxu0
      %v1792 = vpop.f32.mrb[0].mxu0
      %v1793 = vadd.f32 0.0, %v1792
      %v1794 = vpop.f32.mrb[0].mxu0
      %1795 = vmatprep.mubr.bf16.mxu0 0
      %1796 = vmatmul.mubr.bf16.gmra.mrb[0].mxu0 %v1231
      %v1797 = vpop.f32.mrb[0].mxu0
      %v1798 = vadd.f32 0.0, %v1797
      %v1799 = vpop.f32.mrb[0].mxu0
      %v1800 = vpop.f32.mrb[0].mxu0
      %v1801 = vadd.f32 0.0, %v1800
      %v1802 = vpop.f32.mrb[0].mxu0
      %1803 = vmatprep.mubr.bf16.mxu0 0
      %1804 = vmatmul.mubr.bf16.gmra.mrb[0].mxu0 %v1234
      %v1805 = vpop.f32.mrb[0].mxu0
      %v1806 = vadd.f32 0.0, %v1805
      %v1807 = vpop.f32.mrb[0].mxu0
      %v1808 = vpop.f32.mrb[0].mxu0
      %v1809 = vadd.f32 0.0, %v1808
      %v1810 = vpop.f32.mrb[0].mxu0
      %1811 = vmatprep.mubr.bf16.mxu0 0
      %1812 = vmatmul.mubr.bf16.gmra.mrb[0].mxu0 %v1237
      %v1813 = vpop.f32.mrb[0].mxu0
      %v1814 = vadd.f32 0.0, %v1813
      %v1815 = vpop.f32.mrb[0].mxu0
      %v1816 = vpop.f32.mrb[0].mxu0
      %v1817 = vadd.f32 0.0, %v1816
      %v1818 = vpop.f32.mrb[0].mxu0
      %1819 = vmatprep.mubr.bf16.mxu0 0
      %1820 = vmatmul.mubr.bf16.gmra.mrb[0].mxu0 %v1240
      %v1821 = vpop.f32.mrb[0].mxu0
      %v1822 = vadd.f32 0.0, %v1821
      %v1823 = vpop.f32.mrb[0].mxu0
      %v1824 = vpop.f32.mrb[0].mxu0
      %v1825 = vadd.f32 0.0, %v1824
      %v1826 = vpop.f32.mrb[0].mxu0
      %1827 = vmatprep.mubr.bf16.mxu0 0
      %1828 = vmatmul.mubr.bf16.gmra.mrb[0].mxu0 %v1243
      %v1829 = vpop.f32.mrb[0].mxu0
      %v1830 = vadd.f32 0.0, %v1829
      %v1831 = vpop.f32.mrb[0].mxu0
      %v1832 = vpop.f32.mrb[0].mxu0
      %v1833 = vadd.f32 0.0, %v1832
      %v1834 = vpop.f32.mrb[0].mxu0
      %1835 = vmatprep.mubr.bf16.mxu0 0
      %1836 = vmatmul.mubr.bf16.gmra.mrb[0].mxu0 %v1246
      %v1837 = vpop.f32.mrb[0].mxu0
      %v1838 = vadd.f32 0.0, %v1837
      %v1839 = vpop.f32.mrb[0].mxu0
      %v1840 = vpop.f32.mrb[0].mxu0
      %v1841 = vadd.f32 0.0, %v1840
      %v1842 = vpop.f32.mrb[0].mxu0
      %1843 = vmatprep.mubr.bf16.mxu0 0
      %1844 = vmatmul.mubr.bf16.gmra.mrb[0].mxu0 %v1249
      %v1845 = vpop.f32.mrb[0].mxu0
      %v1846 = vadd.f32 0.0, %v1845
      %v1847 = vpop.f32.mrb[0].mxu0
      %v1848 = vpop.f32.mrb[0].mxu0
      %v1849 = vadd.f32 0.0, %v1848
      %v1850 = vpop.f32.mrb[0].mxu0
      %1851 = vmatprep.mubr.bf16.mxu0 0
      %1852 = vmatmul.mubr.bf16.gmra.mrb[0].mxu0 %v1252
      %v1853 = vpop.f32.mrb[0].mxu0
      %v1854 = vadd.f32 0.0, %v1853
      %v1855 = vpop.f32.mrb[0].mxu0
      %v1856 = vpop.f32.mrb[0].mxu0
      %v1857 = vadd.f32 0.0, %v1856
      %v1858 = vpop.f32.mrb[0].mxu0
      %1859 = vmatprep.mubr.bf16.mxu0 0
      %1860 = vmatmul.mubr.bf16.gmra.mrb[0].mxu0 %v1255
      %v1861 = vpop.f32.mrb[0].mxu0
      %v1862 = vadd.f32 0.0, %v1861
      %v1863 = vpop.f32.mrb[0].mxu0
      %v1864 = vpop.f32.mrb[0].mxu0
      %v1865 = vadd.f32 0.0, %v1864
      %v1866 = vpop.f32.mrb[0].mxu0
      %1867 = vmatprep.mubr.bf16.mxu0 0
      %1868 = vmatmul.mubr.bf16.gmra.mrb[0].mxu0 %v1258
      %v1869 = vpop.f32.mrb[0].mxu0
      %v1870 = vadd.f32 0.0, %v1869
      %v1871 = vpop.f32.mrb[0].mxu0
      %v1872 = vpop.f32.mrb[0].mxu0
      %v1873 = vadd.f32 0.0, %v1872
      %v1874 = vpop.f32.mrb[0].mxu0
      %1875 = vmatprep.mubr.bf16.mxu0 0
      %1876 = vmatmul.mubr.bf16.gmra.mrb[0].mxu0 %v1261
      %v1877 = vpop.f32.mrb[0].mxu0
      %v1878 = vadd.f32 0.0, %v1877
      %v1879 = vpop.f32.mrb[0].mxu0
      %v1880 = vpop.f32.mrb[0].mxu0
      %v1881 = vadd.f32 0.0, %v1880
      %v1882 = vpop.f32.mrb[0].mxu0
      %1883 = vmatprep.mubr.bf16.mxu0 0
      %1884 = vmatmul.mubr.bf16.gmra.mrb[0].mxu0 %v1264
      %v1885 = vpop.f32.mrb[0].mxu0
      %v1886 = vadd.f32 0.0, %v1885
      %v1887 = vpop.f32.mrb[0].mxu0
      %v1888 = vpop.f32.mrb[0].mxu0
      %v1889 = vadd.f32 0.0, %v1888
      %v1890 = vpop.f32.mrb[0].mxu0
      %1891 = vmatprep.mubr.bf16.mxu0 0
      %1892 = vmatmul.mubr.bf16.gmra.mrb[0].mxu0 %v1267
      %v1893 = vpop.f32.mrb[0].mxu0
      %v1894 = vadd.f32 0.0, %v1893
      %v1895 = vpop.f32.mrb[0].mxu0
      %v1896 = vpop.f32.mrb[0].mxu0
      %v1897 = vadd.f32 0.0, %v1896
      %v1898 = vpop.f32.mrb[0].mxu0
      %1899 = vmatprep.mubr.bf16.mxu0 0
      %1900 = vmatmul.mubr.bf16.gmra.mrb[0].mxu0 %v1270
      %v1901 = vpop.f32.mrb[0].mxu0
      %v1902 = vadd.f32 0.0, %v1901
      %v1903 = vpop.f32.mrb[0].mxu0
      %v1904 = vpop.f32.mrb[0].mxu0
      %v1905 = vadd.f32 0.0, %v1904
      %v1906 = vpop.f32.mrb[0].mxu0
      %1907 = vmatprep.mubr.bf16.mxu0 0
      %1908 = vmatmul.mubr.bf16.gmra.mrb[0].mxu0 %v1273
      %v1909 = vpop.f32.mrb[0].mxu0
      %v1910 = vadd.f32 0.0, %v1909
      %v1911 = vpop.f32.mrb[0].mxu0
      %v1912 = vpop.f32.mrb[0].mxu0
      %v1913 = vadd.f32 0.0, %v1912
      %v1914 = vpop.f32.mrb[0].mxu0
      %1915 = vmatprep.mubr.bf16.mxu0 0
      %1916 = vmatmul.mubr.bf16.gmra.mrb[0].mxu0 %v1276
      %v1917 = vpop.f32.mrb[0].mxu0
      %v1918 = vadd.f32 0.0, %v1917
      %v1919 = vpop.f32.mrb[0].mxu0
      %v1920 = vpop.f32.mrb[0].mxu0
      %v1921 = vadd.f32 0.0, %v1920
      %v1922 = vpop.f32.mrb[0].mxu0
      %1923 = vmatprep.mubr.bf16.mxu0 0
      %1924 = vmatmul.mubr.bf16.gmra.mrb[0].mxu0 %v1279
      %v1925 = vpop.f32.mrb[0].mxu0
      %v1926 = vadd.f32 0.0, %v1925
      %v1927 = vpop.f32.mrb[0].mxu0
      %v1928 = vpop.f32.mrb[0].mxu0
      %v1929 = vadd.f32 0.0, %v1928
      %v1930 = vpop.f32.mrb[0].mxu0
      %1931 = vmatprep.mubr.bf16.mxu0 0
      %1932 = vmatmul.mubr.bf16.gmra.mrb[0].mxu0 %v1282
      %v1933 = vpop.f32.mrb[0].mxu0
      %v1934 = vadd.f32 0.0, %v1933
      %v1935 = vpop.f32.mrb[0].mxu0
      %v1936 = vpop.f32.mrb[0].mxu0
      %v1937 = vadd.f32 0.0, %v1936
      %v1938 = vpop.f32.mrb[0].mxu0
      %1939 = vmatprep.mubr.bf16.mxu0 0
      %1940 = vmatmul.mubr.bf16.gmra.mrb[0].mxu0 %v1285
      %v1941 = vpop.f32.mrb[0].mxu0
      %v1942 = vadd.f32 0.0, %v1941
      %v1943 = vpop.f32.mrb[0].mxu0
      %v1944 = vpop.f32.mrb[0].mxu0
      %v1945 = vadd.f32 0.0, %v1944
      %v1946 = vpop.f32.mrb[0].mxu0
      %1947 = vmatprep.mubr.bf16.mxu0 0
      %1948 = vmatmul.mubr.bf16.gmra.mrb[0].mxu0 %v1288
      %v1949 = vpop.f32.mrb[0].mxu0
      %v1950 = vadd.f32 0.0, %v1949
      %v1951 = vpop.f32.mrb[0].mxu0
      %v1952 = vpop.f32.mrb[0].mxu0
      %v1953 = vadd.f32 0.0, %v1952
      %v1954 = vpop.f32.mrb[0].mxu0
      %1955 = vmatprep.mubr.bf16.mxu0 0
      %1956 = vmatmul.mubr.bf16.gmra.mrb[0].mxu0 %v1291
      %v1957 = vpop.f32.mrb[0].mxu0
      %v1958 = vadd.f32 0.0, %v1957
      %v1959 = vpop.f32.mrb[0].mxu0
      %v1960 = vpop.f32.mrb[0].mxu0
      %v1961 = vadd.f32 0.0, %v1960
      %v1962 = vpop.f32.mrb[0].mxu0
      %1963 = vmatprep.mubr.bf16.mxu0 0
      %1964 = vmatmul.mubr.bf16.gmra.mrb[0].mxu0 %v1294
      %v1965 = vpop.f32.mrb[0].mxu0
      %v1966 = vadd.f32 0.0, %v1965
      %v1967 = vpop.f32.mrb[0].mxu0
      %v1968 = vpop.f32.mrb[0].mxu0
      %v1969 = vadd.f32 0.0, %v1968
      %v1970 = vpop.f32.mrb[0].mxu0
      %1971 = vmatprep.mubr.bf16.mxu0 0
      %1972 = vmatmul.mubr.bf16.gmra.mrb[0].mxu0 %v1297
      %v1973 = vpop.f32.mrb[0].mxu0
      %v1974 = vadd.f32 0.0, %v1973
      %v1975 = vpop.f32.mrb[0].mxu0
      %v1976 = vpop.f32.mrb[0].mxu0
      %v1977 = vadd.f32 0.0, %v1976
      %v1978 = vpop.f32.mrb[0].mxu0
      %1979 = vmatprep.mubr.bf16.mxu0 0
      %1980 = vmatmul.mubr.bf16.gmra.mrb[0].mxu0 %v1300
      %v1981 = vpop.f32.mrb[0].mxu0
      %v1982 = vadd.f32 0.0, %v1981
      %v1983 = vpop.f32.mrb[0].mxu0
      %v1984 = vpop.f32.mrb[0].mxu0
      %v1985 = vadd.f32 0.0, %v1984
      %v1986 = vpop.f32.mrb[0].mxu0
      %1987 = vmatprep.mubr.bf16.mxu0 0
      %1988 = vmatmul.mubr.bf16.gmra.mrb[0].mxu0 %v1303
      %v1989 = vpop.f32.mrb[0].mxu0
      %v1990 = vadd.f32 0.0, %v1989
      %v1991 = vpop.f32.mrb[0].mxu0
      %v1992 = vpop.f32.mrb[0].mxu0
      %v1993 = vadd.f32 0.0, %v1992
      %v1994 = vpop.f32.mrb[0].mxu0
      %1995 = vmatprep.mubr.bf16.mxu0 0
      %1996 = vmatmul.mubr.bf16.gmra.mrb[0].mxu0 %v1306
      %v1997 = vpop.f32.mrb[0].mxu0
      %v1998 = vadd.f32 0.0, %v1997
      %v1999 = vpop.f32.mrb[0].mxu0
      %v2000 = vpop.f32.mrb[0].mxu0
      %v2001 = vadd.f32 0.0, %v2000
      %v2002 = vpop.f32.mrb[0].mxu0
      %2003 = vmatprep.mubr.bf16.mxu0 0
      %2004 = vmatmul.mubr.bf16.gmra.mrb[0].mxu0 %v1309
      %v2005 = vpop.f32.mrb[0].mxu0
      %v2006 = vadd.f32 0.0, %v2005
      %v2007 = vpop.f32.mrb[0].mxu0
      %v2008 = vpop.f32.mrb[0].mxu0
      %v2009 = vadd.f32 0.0, %v2008
      %v2010 = vpop.f32.mrb[0].mxu0
      %2011 = vmatprep.mubr.bf16.mxu0 0
      %2012 = vmatmul.mubr.bf16.gmra.mrb[0].mxu0 %v1312
      %v2013 = vpop.f32.mrb[0].mxu0
      %v2014 = vadd.f32 0.0, %v2013
      %v2015 = vpop.f32.mrb[0].mxu0
      %v2016 = vpop.f32.mrb[0].mxu0
      %v2017 = vadd.f32 0.0, %v2016
      %v2018 = vpop.f32.mrb[0].mxu0
      %2019 = vmatprep.mubr.bf16.mxu0 0
      %2020 = vmatmul.mubr.bf16.gmra.mrb[0].mxu0 %v1315
      %v2021 = vpop.f32.mrb[0].mxu0
      %v2022 = vadd.f32 0.0, %v2021
      %v2023 = vpop.f32.mrb[0].mxu0
      %v2024 = vpop.f32.mrb[0].mxu0
      %v2025 = vadd.f32 0.0, %v2024
      %v2026 = vpop.f32.mrb[0].mxu0
      %2027 = vmatprep.mubr.bf16.mxu0 0
      %2028 = vmatmul.mubr.bf16.gmra.mrb[0].mxu0 %v1318
      %v2029 = vpop.f32.mrb[0].mxu0
      %v2030 = vadd.f32 0.0, %v2029
      %v2031 = vpop.f32.mrb[0].mxu0
      %v2032 = vpop.f32.mrb[0].mxu0
      %v2033 = vadd.f32 0.0, %v2032
      %v2034 = vpop.f32.mrb[0].mxu0
      %2035 = vmatprep.mubr.bf16.mxu0 0
      %2036 = vmatmul.mubr.bf16.gmra.mrb[0].mxu0 %v1321
      %v2037 = vpop.f32.mrb[0].mxu0
      %v2038 = vadd.f32 0.0, %v2037
      %v2039 = vpop.f32.mrb[0].mxu0
      %v2040 = vpop.f32.mrb[0].mxu0
      %v2041 = vadd.f32 0.0, %v2040
      %v2042 = vpop.f32.mrb[0].mxu0
      %2043 = vmatprep.mubr.bf16.mxu0 0
      %2044 = vmatmul.mubr.bf16.gmra.mrb[0].mxu0 %v1324
      %v2045 = vpop.f32.mrb[0].mxu0
      %v2046 = vadd.f32 0.0, %v2045
      %v2047 = vpop.f32.mrb[0].mxu0
      %v2048 = vpop.f32.mrb[0].mxu0
      %v2049 = vadd.f32 0.0, %v2048
      %v2050 = vpop.f32.mrb[0].mxu0
      %2051 = vmatprep.mubr.bf16.mxu0 0
      %2052 = vmatmul.mubr.bf16.gmra.mrb[0].mxu0 %v1327
      %v2053 = vpop.f32.mrb[0].mxu0
      %v2054 = vadd.f32 0.0, %v2053
      %v2055 = vpop.f32.mrb[0].mxu0
      %v2056 = vpop.f32.mrb[0].mxu0
      %v2057 = vadd.f32 0.0, %v2056
      %v2058 = vpop.f32.mrb[0].mxu0
      %2059 = vmatprep.mubr.bf16.mxu0 0
      %2060 = vmatmul.mubr.bf16.gmra.mrb[0].mxu0 %v1330
      %v2061 = vpop.f32.mrb[0].mxu0
      %v2062 = vadd.f32 0.0, %v2061
      %v2063 = vpop.f32.mrb[0].mxu0
      %v2064 = vpop.f32.mrb[0].mxu0
      %v2065 = vadd.f32 0.0, %v2064
      %v2066 = vpop.f32.mrb[0].mxu0
      %2067 = vmatprep.mubr.bf16.mxu0 0
      %2068 = vmatmul.mubr.bf16.gmra.mrb[0].mxu0 %v1333
      %v2069 = vpop.f32.mrb[0].mxu0
      %v2070 = vadd.f32 0.0, %v2069
      %v2071 = vpop.f32.mrb[0].mxu0
      %v2072 = vpop.f32.mrb[0].mxu0
      %v2073 = vadd.f32 0.0, %v2072
      %v2074 = vpop.f32.mrb[0].mxu0
      %2075 = vmatprep.mubr.bf16.mxu0 0
      %2076 = vmatmul.mubr.bf16.gmra.mrb[0].mxu0 %v1336
      %v2077 = vpop.f32.mrb[0].mxu0
      %v2078 = vadd.f32 0.0, %v2077
      %v2079 = vpop.f32.mrb[0].mxu0
      %v2080 = vpop.f32.mrb[0].mxu0
      %v2081 = vadd.f32 0.0, %v2080
      %v2082 = vpop.f32.mrb[0].mxu0
      %2083 = vmatprep.mubr.bf16.mxu0 0
      %2084 = vmatmul.mubr.bf16.gmra.mrb[0].mxu0 %v1339
      %v2085 = vpop.f32.mrb[0].mxu0
      %v2086 = vadd.f32 0.0, %v2085
      %v2087 = vpop.f32.mrb[0].mxu0
      %v2088 = vpop.f32.mrb[0].mxu0
      %v2089 = vadd.f32 0.0, %v2088
      %v2090 = vpop.f32.mrb[0].mxu0
      %2091 = vmatprep.mubr.bf16.mxu0 0
      %2092 = vmatmul.mubr.bf16.gmra.mrb[0].mxu0 %v1342
      %v2093 = vpop.f32.mrb[0].mxu0
      %v2094 = vadd.f32 0.0, %v2093
      %v2095 = vpop.f32.mrb[0].mxu0
      %v2096 = vpop.f32.mrb[0].mxu0
      %v2097 = vadd.f32 0.0, %v2096
      %v2098 = vpop.f32.mrb[0].mxu0
      %2099 = vmatprep.mubr.bf16.mxu0 0
      %2100 = vmatmul.mubr.bf16.gmra.mrb[0].mxu0 %v1345
      %v2101 = vpop.f32.mrb[0].mxu0
      %v2102 = vadd.f32 0.0, %v2101
      %v2103 = vpop.f32.mrb[0].mxu0
      %v2104 = vpop.f32.mrb[0].mxu0
      %v2105 = vadd.f32 0.0, %v2104
      %v2106 = vpop.f32.mrb[0].mxu0
      %2107 = vmatprep.mubr.bf16.mxu0 0
      %2108 = vmatmul.mubr.bf16.gmra.mrb[0].mxu0 %v1348
      %v2109 = vpop.f32.mrb[0].mxu0
      %v2110 = vadd.f32 0.0, %v2109
      %v2111 = vpop.f32.mrb[0].mxu0
      %v2112 = vpop.f32.mrb[0].mxu0
      %v2113 = vadd.f32 0.0, %v2112
      %v2114 = vpop.f32.mrb[0].mxu0
      %2115 = vmatprep.mubr.bf16.mxu0 0
      %2116 = vmatmul.mubr.bf16.gmra.mrb[0].mxu0 %v1351
      %v2117 = vpop.f32.mrb[0].mxu0
      %v2118 = vadd.f32 0.0, %v2117
      %v2119 = vpop.f32.mrb[0].mxu0
      %v2120 = vpop.f32.mrb[0].mxu0
      %v2121 = vadd.f32 0.0, %v2120
      %v2122 = vpop.f32.mrb[0].mxu0
      %2123 = vmatprep.mubr.bf16.mxu0 0
      %2124 = vmatmul.mubr.bf16.gmra.mrb[0].mxu0 %v1354
      %v2125 = vpop.f32.mrb[0].mxu0
      %v2126 = vadd.f32 0.0, %v2125
      %v2127 = vpop.f32.mrb[0].mxu0
      %v2128 = vpop.f32.mrb[0].mxu0
      %v2129 = vadd.f32 0.0, %v2128
      %v2130 = vpop.f32.mrb[0].mxu0
      %2131 = vmatprep.mubr.bf16.mxu0 0
      %2132 = vmatmul.mubr.bf16.gmra.mrb[0].mxu0 %v1357
      %v2133 = vpop.f32.mrb[0].mxu0
      %v2134 = vadd.f32 0.0, %v2133
      %v2135 = vpop.f32.mrb[0].mxu0
      %v2136 = vpop.f32.mrb[0].mxu0
      %v2137 = vadd.f32 0.0, %v2136
      %v2138 = vpop.f32.mrb[0].mxu0
      %2139 = vmatprep.mubr.bf16.mxu0 0
      %2140 = vmatmul.mubr.bf16.gmra.mrb[0].mxu0 %v1360
      %v2141 = vpop.f32.mrb[0].mxu0
      %v2142 = vadd.f32 0.0, %v2141
      %v2143 = vpop.f32.mrb[0].mxu0
      %v2144 = vpop.f32.mrb[0].mxu0
      %v2145 = vadd.f32 0.0, %v2144
      %v2146 = vpop.f32.mrb[0].mxu0
      %2147 = vmatprep.mubr.bf16.mxu0 0
      %2148 = vmatmul.mubr.bf16.gmra.mrb[0].mxu0 %v1363
      %v2149 = vpop.f32.mrb[0].mxu0
      %v2150 = vadd.f32 0.0, %v2149
      %v2151 = vpop.f32.mrb[0].mxu0
      %v2152 = vpop.f32.mrb[0].mxu0
      %v2153 = vadd.f32 0.0, %v2152
      %v2154 = vpop.f32.mrb[0].mxu0
      %2155 = vmatprep.mubr.bf16.mxu0 0
      %2156 = vmatmul.mubr.bf16.gmra.mrb[0].mxu0 %v1366
      %v2157 = vpop.f32.mrb[0].mxu0
      %v2158 = vadd.f32 0.0, %v2157
      %v2159 = vpop.f32.mrb[0].mxu0
      %v2160 = vpop.f32.mrb[0].mxu0
      %v2161 = vadd.f32 0.0, %v2160
      %v2162 = vpop.f32.mrb[0].mxu0
      %2163 = vmatprep.mubr.bf16.mxu0 0
      %2164 = vmatmul.mubr.bf16.gmra.mrb[0].mxu0 %v1369
      %v2165 = vpop.f32.mrb[0].mxu0
      %v2166 = vadd.f32 0.0, %v2165
      %v2167 = vpop.f32.mrb[0].mxu0
      %v2168 = vpop.f32.mrb[0].mxu0
      %v2169 = vadd.f32 0.0, %v2168
      %v2170 = vpop.f32.mrb[0].mxu0
      %2171 = vmatprep.mubr.bf16.mxu0 0
      %2172 = vmatmul.mubr.bf16.gmra.mrb[0].mxu0 %v1372
      %v2173 = vpop.f32.mrb[0].mxu0
      %v2174 = vadd.f32 0.0, %v2173
      %v2175 = vpop.f32.mrb[0].mxu0
      %v2176 = vpop.f32.mrb[0].mxu0
      %v2177 = vadd.f32 0.0, %v2176
      %v2178 = vpop.f32.mrb[0].mxu0
      %2179 = vmatprep.mubr.bf16.mxu0 0
      %2180 = vmatmul.mubr.bf16.gmra.mrb[0].mxu0 %v1375
      %v2181 = vpop.f32.mrb[0].mxu0
      %v2182 = vadd.f32 0.0, %v2181
      %v2183 = vpop.f32.mrb[0].mxu0
      %v2184 = vpop.f32.mrb[0].mxu0
      %v2185 = vadd.f32 0.0, %v2184
      %v2186 = vpop.f32.mrb[0].mxu0
      %2187 = vmatprep.mubr.bf16.mxu0 0
      %2188 = vmatmul.mubr.bf16.gmra.mrb[0].mxu0 %v1378
      %v2189 = vpop.f32.mrb[0].mxu0
      %v2190 = vadd.f32 0.0, %v2189
      %v2191 = vpop.f32.mrb[0].mxu0
      %v2192 = vpop.f32.mrb[0].mxu0
      %v2193 = vadd.f32 0.0, %v2192
      %v2194 = vpop.f32.mrb[0].mxu0
      %2195 = vmatprep.mubr.bf16.mxu0 0
      %2196 = vmatmul.mubr.bf16.gmra.mrb[0].mxu0 %v1381
      %v2197 = vpop.f32.mrb[0].mxu0
      %v2198 = vadd.f32 0.0, %v2197
      %v2199 = vpop.f32.mrb[0].mxu0
      %v2200 = vpop.f32.mrb[0].mxu0
      %v2201 = vadd.f32 0.0, %v2200
      %v2202 = vpop.f32.mrb[0].mxu0
      %2203 = vmatprep.mubr.bf16.mxu0 0
      %2204 = vmatmul.mubr.bf16.gmra.mrb[0].mxu0 %v1384
      %v2205 = vpop.f32.mrb[0].mxu0
      %v2206 = vadd.f32 0.0, %v2205
      %v2207 = vpop.f32.mrb[0].mxu0
      %v2208 = vpop.f32.mrb[0].mxu0
      %v2209 = vadd.f32 0.0, %v2208
      %v2210 = vpop.f32.mrb[0].mxu0
      %2211 = vmatprep.mubr.bf16.mxu0 0
      %2212 = vmatmul.mubr.bf16.gmra.mrb[0].mxu0 %v1387
      %v2213 = vpop.f32.mrb[0].mxu0
      %v2214 = vadd.f32 0.0, %v2213
      %v2215 = vpop.f32.mrb[0].mxu0
      %v2216 = vpop.f32.mrb[0].mxu0
      %v2217 = vadd.f32 0.0, %v2216
      %v2218 = vpop.f32.mrb[0].mxu0
      %2219 = vmatprep.mubr.bf16.mxu0 0
      %2220 = vmatmul.mubr.bf16.gmra.mrb[0].mxu0 %v1390
      %v2221 = vpop.f32.mrb[0].mxu0
      %v2222 = vadd.f32 0.0, %v2221
      %v2223 = vpop.f32.mrb[0].mxu0
      %v2224 = vpop.f32.mrb[0].mxu0
      %v2225 = vadd.f32 0.0, %v2224
      %v2226 = vpop.f32.mrb[0].mxu0
      %2227 = vmatprep.mubr.bf16.mxu0 0
      %2228 = vmatmul.mubr.bf16.gmra.mrb[0].mxu0 %v1393
      %v2229 = vpop.f32.mrb[0].mxu0
      %v2230 = vadd.f32 0.0, %v2229
      %v2231 = vpop.f32.mrb[0].mxu0
      %v2232 = vpop.f32.mrb[0].mxu0
      %v2233 = vadd.f32 0.0, %v2232
      %v2234 = vpop.f32.mrb[0].mxu0
      %2235 = vmatprep.mubr.bf16.mxu0 0
      %2236 = vmatmul.mubr.bf16.gmra.mrb[0].mxu0 %v1396
      %v2237 = vpop.f32.mrb[0].mxu0
      %v2238 = vadd.f32 0.0, %v2237
      %v2239 = vpop.f32.mrb[0].mxu0
      %v2240 = vpop.f32.mrb[0].mxu0
      %v2241 = vadd.f32 0.0, %v2240
      %v2242 = vpop.f32.mrb[0].mxu0
      %2243 = vmatprep.mubr.bf16.mxu0 0
      %2244 = vmatmul.mubr.bf16.gmra.mrb[0].mxu0 %v1399
      %v2245 = vpop.f32.mrb[0].mxu0
      %v2246 = vadd.f32 0.0, %v2245
      %v2247 = vpop.f32.mrb[0].mxu0
      %v2248 = vpop.f32.mrb[0].mxu0
      %v2249 = vadd.f32 0.0, %v2248
      %v2250 = vpop.f32.mrb[0].mxu0
      %2251 = vmatprep.mubr.bf16.mxu0 0
      %2252 = vmatmul.mubr.bf16.gmra.mrb[0].mxu0 %v1402
      %v2253 = vpop.f32.mrb[0].mxu0
      %v2254 = vadd.f32 0.0, %v2253
      %v2255 = vpop.f32.mrb[0].mxu0
      %v2256 = vpop.f32.mrb[0].mxu0
      %v2257 = vadd.f32 0.0, %v2256
      %v2258 = vpop.f32.mrb[0].mxu0
      %2259 = vmatprep.mubr.bf16.mxu0 0
      %2260 = vmatmul.mubr.bf16.gmra.mrb[0].mxu0 %v1405
      %v2261 = vpop.f32.mrb[0].mxu0
      %v2262 = vadd.f32 0.0, %v2261
      %v2263 = vpop.f32.mrb[0].mxu0
      %v2264 = vpop.f32.mrb[0].mxu0
      %v2265 = vadd.f32 0.0, %v2264
      %v2266 = vpop.f32.mrb[0].mxu0
      %2267 = vmatprep.mubr.bf16.mxu0 0
      %2268 = vmatmul.mubr.bf16.gmra.mrb[0].mxu0 %v1408
      %v2269 = vpop.f32.mrb[0].mxu0
      %v2270 = vadd.f32 0.0, %v2269
      %v2271 = vpop.f32.mrb[0].mxu0
      %v2272 = vpop.f32.mrb[0].mxu0
      %v2273 = vadd.f32 0.0, %v2272
      %v2274 = vpop.f32.mrb[0].mxu0
      %2275 = vmatprep.mubr.bf16.mxu0 0
      %2276 = vmatmul.mubr.bf16.gmra.mrb[0].mxu0 %v1411
      %v2277 = vpop.f32.mrb[0].mxu0
      %v2278 = vadd.f32 0.0, %v2277
      %v2279 = vpop.f32.mrb[0].mxu0
      %v2280 = vpop.f32.mrb[0].mxu0
      %v2281 = vadd.f32 0.0, %v2280
      %v2282 = vpop.f32.mrb[0].mxu0
      %2283 = vmatprep.mubr.bf16.mxu0 0
      %2284 = vmatmul.mubr.bf16.gmra.mrb[0].mxu0 %v1414
      %v2285 = vpop.f32.mrb[0].mxu0
      %v2286 = vadd.f32 0.0, %v2285
      %v2287 = vpop.f32.mrb[0].mxu0
      %v2288 = vpop.f32.mrb[0].mxu0
      %v2289 = vadd.f32 0.0, %v2288
      %v2290 = vpop.f32.mrb[0].mxu0
      %2291 = vmatprep.mubr.bf16.mxu0 0
      %2292 = vmatmul.mubr.bf16.gmra.mrb[0].mxu0 %v1417
      %v2293 = vpop.f32.mrb[0].mxu0
      %v2294 = vadd.f32 0.0, %v2293
      %v2295 = vpop.f32.mrb[0].mxu0
      %v2296 = vpop.f32.mrb[0].mxu0
      %v2297 = vadd.f32 0.0, %v2296
      %v2298 = vpop.f32.mrb[0].mxu0
      %2299 = vmatprep.mubr.bf16.mxu0 0
      %2300 = vmatmul.mubr.bf16.gmra.mrb[0].mxu0 %v1420
      %v2301 = vpop.f32.mrb[0].mxu0
      %v2302 = vadd.f32 0.0, %v2301
      %v2303 = vpop.f32.mrb[0].mxu0
      %v2304 = vpop.f32.mrb[0].mxu0
      %v2305 = vadd.f32 0.0, %v2304
      %v2306 = vpop.f32.mrb[0].mxu0
      %2307 = vmatprep.mubr.bf16.mxu0 0
      %2308 = vmatmul.mubr.bf16.gmra.mrb[0].mxu0 %v1423
      %v2309 = vpop.f32.mrb[0].mxu0
      %v2310 = vadd.f32 0.0, %v2309
      %v2311 = vpop.f32.mrb[0].mxu0
      %v2312 = vpop.f32.mrb[0].mxu0
      %v2313 = vadd.f32 0.0, %v2312
      %v2314 = vpop.f32.mrb[0].mxu0
      %2315 = vmatprep.mubr.bf16.mxu0 0
      %2316 = vmatmul.mubr.bf16.gmra.mrb[0].mxu0 %v1426
      %v2317 = vpop.f32.mrb[0].mxu0
      %v2318 = vadd.f32 0.0, %v2317
      %v2319 = vpop.f32.mrb[0].mxu0
      %v2320 = vpop.f32.mrb[0].mxu0
      %v2321 = vadd.f32 0.0, %v2320
      %v2322 = vpop.f32.mrb[0].mxu0
      %2323 = vmatprep.mubr.bf16.mxu0 0
      %2324 = vmatmul.mubr.bf16.gmra.mrb[0].mxu0 %v1429
      %v2325 = vpop.f32.mrb[0].mxu0
      %v2326 = vadd.f32 0.0, %v2325
      %v2327 = vpop.f32.mrb[0].mxu0
      %v2328 = vpop.f32.mrb[0].mxu0
      %v2329 = vadd.f32 0.0, %v2328
      %v2330 = vpop.f32.mrb[0].mxu0
      %2331 = vmatprep.mubr.bf16.mxu0 0
      %2332 = vmatmul.mubr.bf16.gmra.mrb[0].mxu0 %v1432
      %v2333 = vpop.f32.mrb[0].mxu0
      %v2334 = vadd.f32 0.0, %v2333
      %v2335 = vpop.f32.mrb[0].mxu0
      %v2336 = vpop.f32.mrb[0].mxu0
      %v2337 = vadd.f32 0.0, %v2336
      %v2338 = vpop.f32.mrb[0].mxu0
      %2339 = vmatprep.mubr.bf16.mxu0 0
      %2340 = vmatmul.mubr.bf16.gmra.mrb[0].mxu0 %v1435
      %v2341 = vpop.f32.mrb[0].mxu0
      %v2342 = vadd.f32 0.0, %v2341
      %v2343 = vpop.f32.mrb[0].mxu0
      %v2344 = vpop.f32.mrb[0].mxu0
      %v2345 = vadd.f32 0.0, %v2344
      %v2346 = vpop.f32.mrb[0].mxu0
      %2347 = vmatprep.mubr.bf16.mxu0 0
      %2348 = vmatmul.mubr.bf16.gmra.mrb[0].mxu0 %v1438
      %v2349 = vpop.f32.mrb[0].mxu0
      %v2350 = vadd.f32 0.0, %v2349
      %v2351 = vpop.f32.mrb[0].mxu0
      %v2352 = vpop.f32.mrb[0].mxu0
      %v2353 = vadd.f32 0.0, %v2352
      %v2354 = vpop.f32.mrb[0].mxu0
      %2355 = vmatprep.mubr.bf16.mxu0 0
      %2356 = vmatmul.mubr.bf16.gmra.mrb[0].mxu0 %v1441
      %v2357 = vpop.f32.mrb[0].mxu0
      %v2358 = vadd.f32 0.0, %v2357
      %v2359 = vpop.f32.mrb[0].mxu0
      %v2360 = vpop.f32.mrb[0].mxu0
      %v2361 = vadd.f32 0.0, %v2360
      %v2362 = vpop.f32.mrb[0].mxu0
      %2363 = vmatprep.mubr.bf16.mxu0 0
      %2364 = vmatmul.mubr.bf16.gmra.mrb[0].mxu0 %v1444
      %v2365 = vpop.f32.mrb[0].mxu0
      %v2366 = vadd.f32 0.0, %v2365
      %v2367 = vpop.f32.mrb[0].mxu0
      %v2368 = vpop.f32.mrb[0].mxu0
      %v2369 = vadd.f32 0.0, %v2368
      %v2370 = vpop.f32.mrb[0].mxu0
      %2371 = vmatprep.mubr.bf16.mxu0 0
      %2372 = vmatmul.mubr.bf16.gmra.mrb[0].mxu0 %v1447
      %v2373 = vpop.f32.mrb[0].mxu0
      %v2374 = vadd.f32 0.0, %v2373
      %v2375 = vpop.f32.mrb[0].mxu0
      %v2376 = vpop.f32.mrb[0].mxu0
      %v2377 = vadd.f32 0.0, %v2376
      %v2378 = vpop.f32.mrb[0].mxu0
      %2379 = vmatprep.mubr.bf16.mxu0 0
      %2380 = vmatmul.mubr.bf16.gmra.mrb[0].mxu0 %v1450
      %v2381 = vpop.f32.mrb[0].mxu0
      %v2382 = vadd.f32 0.0, %v2381
      %v2383 = vpop.f32.mrb[0].mxu0
      %v2384 = vpop.f32.mrb[0].mxu0
      %v2385 = vadd.f32 0.0, %v2384
      %v2386 = vpop.f32.mrb[0].mxu0
      %2387 = vmatprep.mubr.bf16.mxu0 0
      %2388 = vmatmul.mubr.bf16.gmra.mrb[0].mxu0 %v1453
      %v2389 = vpop.f32.mrb[0].mxu0
      %v2390 = vadd.f32 0.0, %v2389
      %v2391 = vpop.f32.mrb[0].mxu0
      %v2392 = vpop.f32.mrb[0].mxu0
      %v2393 = vadd.f32 0.0, %v2392
      %v2394 = vpop.f32.mrb[0].mxu0
      %2395 = vmatprep.mubr.bf16.mxu0 0
      %2396 = vmatmul.mubr.bf16.gmra.mrb[0].mxu0 %v1456
      %v2397 = vpop.f32.mrb[0].mxu0
      %v2398 = vadd.f32 0.0, %v2397
      %v2399 = vpop.f32.mrb[0].mxu0
      %v2400 = vpop.f32.mrb[0].mxu0
      %v2401 = vadd.f32 0.0, %v2400
      %v2402 = vpop.f32.mrb[0].mxu0
      %2403 = vmatprep.mubr.bf16.mxu0 0
      %2404 = vmatmul.mubr.bf16.gmra.mrb[0].mxu0 %v1459
      %v2405 = vpop.f32.mrb[0].mxu0
      %v2406 = vadd.f32 0.0, %v2405
      %v2407 = vpop.f32.mrb[0].mxu0
      %v2408 = vpop.f32.mrb[0].mxu0
      %v2409 = vadd.f32 0.0, %v2408
      %v2410 = vpop.f32.mrb[0].mxu0
      %2411 = vmatprep.mubr.bf16.mxu0 0
      %2412 = vmatmul.mubr.bf16.gmra.mrb[0].mxu0 %v1462
      %v2413 = vpop.f32.mrb[0].mxu0
      %v2414 = vadd.f32 0.0, %v2413
      %v2415 = vpop.f32.mrb[0].mxu0
      %v2416 = vpop.f32.mrb[0].mxu0
      %v2417 = vadd.f32 0.0, %v2416
      %v2418 = vpop.f32.mrb[0].mxu0
      %2419 = vmatprep.mubr.bf16.mxu0 0
      %2420 = vmatmul.mubr.bf16.gmra.mrb[0].mxu0 %v1465
      %v2421 = vpop.f32.mrb[0].mxu0
      %v2422 = vadd.f32 0.0, %v2421
      %v2423 = vpop.f32.mrb[0].mxu0
      %v2424 = vpop.f32.mrb[0].mxu0
      %v2425 = vadd.f32 0.0, %v2424
      %v2426 = vpop.f32.mrb[0].mxu0
      %2427 = vmatprep.mubr.bf16.mxu0 0
      %2428 = vmatmul.mubr.bf16.gmra.mrb[0].mxu0 %v1468
      %v2429 = vpop.f32.mrb[0].mxu0
      %v2430 = vadd.f32 0.0, %v2429
      %v2431 = vpop.f32.mrb[0].mxu0
      %v2432 = vpop.f32.mrb[0].mxu0
      %v2433 = vadd.f32 0.0, %v2432
      %v2434 = vpop.f32.mrb[0].mxu0
      %2435 = vmatprep.mubr.bf16.mxu0 0
      %2436 = vmatmul.mubr.bf16.gmra.mrb[0].mxu0 %v1471
      %v2437 = vpop.f32.mrb[0].mxu0
      %v2438 = vadd.f32 0.0, %v2437
      %v2439 = vpop.f32.mrb[0].mxu0
      %v2440 = vpop.f32.mrb[0].mxu0
      %v2441 = vadd.f32 0.0, %v2440
      %v2442 = vpop.f32.mrb[0].mxu0
      %2443 = vmatprep.mubr.bf16.mxu0 0
      %2444 = vmatmul.mubr.bf16.gmra.mrb[0].mxu0 %v1474
      %v2445 = vpop.f32.mrb[0].mxu0
      %v2446 = vadd.f32 0.0, %v2445
      %v2447 = vpop.f32.mrb[0].mxu0
      %v2448 = vpop.f32.mrb[0].mxu0
      %v2449 = vadd.f32 0.0, %v2448
      %v2450 = vpop.f32.mrb[0].mxu0
      %2451 = vmatprep.mubr.bf16.mxu0 0
      %2452 = vmatmul.mubr.bf16.gmra.mrb[0].mxu0 %v1477
      %v2453 = vpop.f32.mrb[0].mxu0
      %v2454 = vadd.f32 0.0, %v2453
      %v2455 = vpop.f32.mrb[0].mxu0
      %v2456 = vpop.f32.mrb[0].mxu0
      %v2457 = vadd.f32 0.0, %v2456
      %v2458 = vpop.f32.mrb[0].mxu0
      %2459 = vmatprep.mubr.bf16.mxu0 0
      %2460 = vmatmul.mubr.bf16.gmra.mrb[0].mxu0 %v1480
      %v2461 = vpop.f32.mrb[0].mxu0
      %v2462 = vadd.f32 0.0, %v2461
      %v2463 = vpop.f32.mrb[0].mxu0
      %v2464 = vpop.f32.mrb[0].mxu0
      %v2465 = vadd.f32 0.0, %v2464
      %v2466 = vpop.f32.mrb[0].mxu0
      %2467 = vmatprep.mubr.bf16.mxu0 0
      %2468 = vmatmul.mubr.bf16.gmra.mrb[0].mxu0 %v1483
      %v2469 = vpop.f32.mrb[0].mxu0
      %v2470 = vadd.f32 0.0, %v2469
      %v2471 = vpop.f32.mrb[0].mxu0
      %v2472 = vpop.f32.mrb[0].mxu0
      %v2473 = vadd.f32 0.0, %v2472
      %v2474 = vpop.f32.mrb[0].mxu0
      %2475 = vmatprep.mubr.bf16.mxu0 0
      %2476 = vmatmul.mubr.bf16.gmra.mrb[0].mxu0 %v1486
      %v2477 = vpop.f32.mrb[0].mxu0
      %v2478 = vadd.f32 0.0, %v2477
      %v2479 = vpop.f32.mrb[0].mxu0
      %v2480 = vpop.f32.mrb[0].mxu0
      %v2481 = vadd.f32 0.0, %v2480
      %v2482 = vpop.f32.mrb[0].mxu0
      %2483 = vmatprep.mubr.bf16.mxu0 0
      %2484 = vmatmul.mubr.bf16.gmra.mrb[0].mxu0 %v1489
      %v2485 = vpop.f32.mrb[0].mxu0
      %v2486 = vadd.f32 0.0, %v2485
      %v2487 = vpop.f32.mrb[0].mxu0
      %v2488 = vpop.f32.mrb[0].mxu0
      %v2489 = vadd.f32 0.0, %v2488
      %v2490 = vpop.f32.mrb[0].mxu0
      %2491 = vmatprep.mubr.bf16.mxu0 0
      %2492 = vmatmul.mubr.bf16.gmra.mrb[0].mxu0 %v1492
      %v2493 = vpop.f32.mrb[0].mxu0
      %v2494 = vadd.f32 0.0, %v2493
      %v2495 = vpop.f32.mrb[0].mxu0
      %v2496 = vpop.f32.mrb[0].mxu0
      %v2497 = vadd.f32 0.0, %v2496
      %v2498 = vpop.f32.mrb[0].mxu0
      %2499 = vmatprep.mubr.bf16.mxu0 0
      %2500 = vmatmul.mubr.bf16.gmra.mrb[0].mxu0 %v1495
      %v2501 = vpop.f32.mrb[0].mxu0
      %v2502 = vadd.f32 0.0, %v2501
      %v2503 = vpop.f32.mrb[0].mxu0
      %v2504 = vpop.f32.mrb[0].mxu0
      %v2505 = vadd.f32 0.0, %v2504
      %v2506 = vpop.f32.mrb[0].mxu0
      %2507 = vmatprep.mubr.bf16.mxu0 0
      %2508 = vmatmul.mubr.bf16.gmra.mrb[0].mxu0 %v1498
      %v2509 = vpop.f32.mrb[0].mxu0
      %v2510 = vadd.f32 0.0, %v2509
      %v2511 = vpop.f32.mrb[0].mxu0
      %v2512 = vpop.f32.mrb[0].mxu0
      %v2513 = vadd.f32 0.0, %v2512
      %v2514 = vpop.f32.mrb[0].mxu0
      %2515 = vmatprep.mubr.bf16.mxu0 0
      %2516 = vmatmul.mubr.bf16.gmra.mrb[0].mxu0 %v1501
      %v2517 = vpop.f32.mrb[0].mxu0
      %v2518 = vadd.f32 0.0, %v2517
      %v2519 = vpop.f32.mrb[0].mxu0
      %v2520 = vpop.f32.mrb[0].mxu0
      %v2521 = vadd.f32 0.0, %v2520
      %v2522 = vpop.f32.mrb[0].mxu0
      %2523 = vmatprep.mubr.bf16.mxu0 0
      %2524 = vmatmul.mubr.bf16.gmra.mrb[0].mxu0 %v1504
      %v2525 = vpop.f32.mrb[0].mxu0
      %v2526 = vadd.f32 0.0, %v2525
      %v2527 = vpop.f32.mrb[0].mxu0
      %v2528 = vpop.f32.mrb[0].mxu0
      %v2529 = vadd.f32 0.0, %v2528
      %v2530 = vpop.f32.mrb[0].mxu0
      %2531 = vmatprep.mubr.bf16.mxu0 0
      %2532 = vmatmul.mubr.bf16.gmra.mrb[0].mxu0 %v1507
      %v2533 = vpop.f32.mrb[0].mxu0
      %v2534 = vadd.f32 0.0, %v2533
      %v2535 = vpop.f32.mrb[0].mxu0
      %v2536 = vpop.f32.mrb[0].mxu0
      %v2537 = vadd.f32 0.0, %v2536
      %v2538 = vpop.f32.mrb[0].mxu0
      %2539 = vmatprep.mubr.bf16.mxu0 0
      %2540 = vmatmul.mubr.bf16.gmra.mrb[0].mxu0 %v1510
      %v2541 = vpop.f32.mrb[0].mxu0
      %v2542 = vadd.f32 0.0, %v2541
      %v2543 = vpop.f32.mrb[0].mxu0
      %v2544 = vpop.f32.mrb[0].mxu0
      %v2545 = vadd.f32 0.0, %v2544
      %v2546 = vpop.f32.mrb[0].mxu0
      %2547 = vmatprep.mubr.bf16.mxu0 0
      %2548 = vmatmul.mubr.bf16.gmra.mrb[0].mxu0 %v1513
      %v2549 = vpop.f32.mrb[0].mxu0
      %v2550 = vadd.f32 0.0, %v2549
      %v2551 = vpop.f32.mrb[0].mxu0
      %v2552 = vpop.f32.mrb[0].mxu0
      %v2553 = vadd.f32 0.0, %v2552
      %v2554 = vpop.f32.mrb[0].mxu0
      %2555 = vmatprep.mubr.bf16.mxu0 0
      %2556 = vmatmul.mubr.bf16.gmra.mrb[0].mxu0 %v1516
      %v2557 = vpop.f32.mrb[0].mxu0
      %v2558 = vadd.f32 0.0, %v2557
      %v2559 = vpop.f32.mrb[0].mxu0
      %v2560 = vpop.f32.mrb[0].mxu0
      %v2561 = vadd.f32 0.0, %v2560
      %v2562 = vpop.f32.mrb[0].mxu0
      %2563 = vmatprep.mubr.bf16.mxu0 0
      %2564 = vmatmul.mubr.bf16.gmra.mrb[0].mxu0 %v1519
      %v2565 = vpop.f32.mrb[0].mxu0
      %v2566 = vadd.f32 0.0, %v2565
      %v2567 = vpop.f32.mrb[0].mxu0
      %v2568 = vpop.f32.mrb[0].mxu0
      %v2569 = vadd.f32 0.0, %v2568
      %v2570 = vpop.f32.mrb[0].mxu0
      %2571 = vmatprep.mubr.bf16.mxu0 0
      %2572 = vmatmul.mubr.bf16.gmra.mrb[0].mxu0 %v1522
      %v2573 = vpop.f32.mrb[0].mxu0
      %v2574 = vadd.f32 0.0, %v2573
      %v2575 = vpop.f32.mrb[0].mxu0
      %v2576 = vpop.f32.mrb[0].mxu0
      %v2577 = vadd.f32 0.0, %v2576
      %v2578 = vpop.f32.mrb[0].mxu0
      %2579 = vmatprep.mubr.bf16.mxu0 0
      %2580 = vmatmul.mubr.bf16.gmra.mrb[0].mxu0 %v1525
      %v2581 = vpop.f32.mrb[0].mxu0
      %v2582 = vadd.f32 0.0, %v2581
      %v2583 = vpop.f32.mrb[0].mxu0
      %v2584 = vpop.f32.mrb[0].mxu0
      %v2585 = vadd.f32 0.0, %v2584
      %v2586 = vpop.f32.mrb[0].mxu0
      %2587 = vdwg.mxu0
      %vm2588 = vcmask 523264
      %v2589 = vsel %vm2588, %v1566, 0.0
      %v2590 = vsel %vm2588, %v1569, 0.0
      %v2591 = vadd.f32 %v2589, %v2590
      %v2592 = vsel %vm2588, %v1574, 0.0
      %v2593 = vadd.f32 %v2591, %v2592
      %v2594 = vsel %vm2588, %v1577, 0.0
      %v2595 = vadd.f32 %v2593, %v2594
      %v2596 = vsel %vm2588, %v1582, 0.0
      %v2597 = vadd.f32 %v2595, %v2596
      %v2598 = vsel %vm2588, %v1585, 0.0
      %v2599 = vadd.f32 %v2597, %v2598
      %v2600 = vsel %vm2588, %v1590, 0.0
      %v2601 = vadd.f32 %v2599, %v2600
      %v2602 = vsel %vm2588, %v1593, 0.0
      %v2603 = vadd.f32 %v2601, %v2602
      %v2604 = vsel %vm2588, %v1598, 0.0
      %v2605 = vadd.f32 %v2603, %v2604
      %v2606 = vsel %vm2588, %v1601, 0.0
      %v2607 = vadd.f32 %v2605, %v2606
      %v2608 = vsel %vm2588, %v1606, 0.0
      %v2609 = vadd.f32 %v2607, %v2608
      %v2610 = vsel %vm2588, %v1609, 0.0
      %v2611 = vadd.f32 %v2609, %v2610
      %v2612 = vsel %vm2588, %v1614, 0.0
      %v2613 = vadd.f32 %v2611, %v2612
      %v2614 = vsel %vm2588, %v1617, 0.0
      %v2615 = vadd.f32 %v2613, %v2614
      %v2616 = vsel %vm2588, %v1622, 0.0
      %v2617 = vadd.f32 %v2615, %v2616
      %v2618 = vsel %vm2588, %v1625, 0.0
      %v2619 = vadd.f32 %v2617, %v2618
      %v2620 = vsel %vm2588, %v1630, 0.0
      %v2621 = vadd.f32 %v2619, %v2620
      %v2622 = vsel %vm2588, %v1633, 0.0
      %v2623 = vadd.f32 %v2621, %v2622
      %v2624 = vsel %vm2588, %v1638, 0.0
      %v2625 = vadd.f32 %v2623, %v2624
      %v2626 = vsel %vm2588, %v1641, 0.0
      %v2627 = vadd.f32 %v2625, %v2626
      %v2628 = vsel %vm2588, %v1646, 0.0
      %v2629 = vadd.f32 %v2627, %v2628
      %v2630 = vsel %vm2588, %v1649, 0.0
      %v2631 = vadd.f32 %v2629, %v2630
      %v2632 = vsel %vm2588, %v1654, 0.0
      %v2633 = vadd.f32 %v2631, %v2632
      %v2634 = vsel %vm2588, %v1657, 0.0
      %v2635 = vadd.f32 %v2633, %v2634
      %v2636 = vsel %vm2588, %v1662, 0.0
      %v2637 = vadd.f32 %v2635, %v2636
      %v2638 = vsel %vm2588, %v1665, 0.0
      %v2639 = vadd.f32 %v2637, %v2638
      %v2640 = vsel %vm2588, %v1670, 0.0
      %v2641 = vadd.f32 %v2639, %v2640
      %v2642 = vsel %vm2588, %v1673, 0.0
      %v2643 = vadd.f32 %v2641, %v2642
      %v2644 = vsel %vm2588, %v1678, 0.0
      %v2645 = vadd.f32 %v2643, %v2644
      %v2646 = vsel %vm2588, %v1681, 0.0
      %v2647 = vadd.f32 %v2645, %v2646
      %v2648 = vsel %vm2588, %v1686, 0.0
      %v2649 = vadd.f32 %v2647, %v2648
      %v2650 = vsel %vm2588, %v1689, 0.0
      %v2651 = vadd.f32 %v2649, %v2650
      %v2652 = vsel %vm2588, %v1694, 0.0
      %v2653 = vadd.f32 %v2651, %v2652
      %v2654 = vsel %vm2588, %v1697, 0.0
      %v2655 = vadd.f32 %v2653, %v2654
      %v2656 = vsel %vm2588, %v1702, 0.0
      %v2657 = vadd.f32 %v2655, %v2656
      %v2658 = vsel %vm2588, %v1705, 0.0
      %v2659 = vadd.f32 %v2657, %v2658
      %v2660 = vsel %vm2588, %v1710, 0.0
      %v2661 = vadd.f32 %v2659, %v2660
      %v2662 = vsel %vm2588, %v1713, 0.0
      %v2663 = vadd.f32 %v2661, %v2662
      %v2664 = vsel %vm2588, %v1718, 0.0
      %v2665 = vadd.f32 %v2663, %v2664
      %v2666 = vsel %vm2588, %v1721, 0.0
      %v2667 = vadd.f32 %v2665, %v2666
      %v2668 = vsel %vm2588, %v1726, 0.0
      %v2669 = vadd.f32 %v2667, %v2668
      %v2670 = vsel %vm2588, %v1729, 0.0
      %v2671 = vadd.f32 %v2669, %v2670
      %v2672 = vsel %vm2588, %v1734, 0.0
      %v2673 = vadd.f32 %v2671, %v2672
      %v2674 = vsel %vm2588, %v1737, 0.0
      %v2675 = vadd.f32 %v2673, %v2674
      %v2676 = vsel %vm2588, %v1742, 0.0
      %v2677 = vadd.f32 %v2675, %v2676
      %v2678 = vsel %vm2588, %v1745, 0.0
      %v2679 = vadd.f32 %v2677, %v2678
      %v2680 = vsel %vm2588, %v1750, 0.0
      %v2681 = vadd.f32 %v2679, %v2680
      %v2682 = vsel %vm2588, %v1753, 0.0
      %v2683 = vadd.f32 %v2681, %v2682
      %v2684 = vsel %vm2588, %v1758, 0.0
      %v2685 = vadd.f32 %v2683, %v2684
      %v2686 = vsel %vm2588, %v1761, 0.0
      %v2687 = vadd.f32 %v2685, %v2686
      %v2688 = vsel %vm2588, %v1766, 0.0
      %v2689 = vadd.f32 %v2687, %v2688
      %v2690 = vsel %vm2588, %v1769, 0.0
      %v2691 = vadd.f32 %v2689, %v2690
      %v2692 = vsel %vm2588, %v1774, 0.0
      %v2693 = vadd.f32 %v2691, %v2692
      %v2694 = vsel %vm2588, %v1777, 0.0
      %v2695 = vadd.f32 %v2693, %v2694
      %v2696 = vsel %vm2588, %v1782, 0.0
      %v2697 = vadd.f32 %v2695, %v2696
      %v2698 = vsel %vm2588, %v1785, 0.0
      %v2699 = vadd.f32 %v2697, %v2698
      %v2700 = vsel %vm2588, %v1790, 0.0
      %v2701 = vadd.f32 %v2699, %v2700
      %v2702 = vsel %vm2588, %v1793, 0.0
      %v2703 = vadd.f32 %v2701, %v2702
      %v2704 = vsel %vm2588, %v1798, 0.0
      %v2705 = vadd.f32 %v2703, %v2704
      %v2706 = vsel %vm2588, %v1801, 0.0
      %v2707 = vadd.f32 %v2705, %v2706
      %v2708 = vsel %vm2588, %v1806, 0.0
      %v2709 = vadd.f32 %v2707, %v2708
      %v2710 = vsel %vm2588, %v1809, 0.0
      %v2711 = vadd.f32 %v2709, %v2710
      %v2712 = vsel %vm2588, %v1814, 0.0
      %v2713 = vadd.f32 %v2711, %v2712
      %v2714 = vsel %vm2588, %v1817, 0.0
      %v2715 = vadd.f32 %v2713, %v2714
      %v2716 = vsel %vm2588, %v1822, 0.0
      %v2717 = vadd.f32 %v2715, %v2716
      %v2718 = vsel %vm2588, %v1825, 0.0
      %v2719 = vadd.f32 %v2717, %v2718
      %v2720 = vsel %vm2588, %v1830, 0.0
      %v2721 = vadd.f32 %v2719, %v2720
      %v2722 = vsel %vm2588, %v1833, 0.0
      %v2723 = vadd.f32 %v2721, %v2722
      %v2724 = vsel %vm2588, %v1838, 0.0
      %v2725 = vadd.f32 %v2723, %v2724
      %v2726 = vsel %vm2588, %v1841, 0.0
      %v2727 = vadd.f32 %v2725, %v2726
      %v2728 = vsel %vm2588, %v1846, 0.0
      %v2729 = vadd.f32 %v2727, %v2728
      %v2730 = vsel %vm2588, %v1849, 0.0
      %v2731 = vadd.f32 %v2729, %v2730
      %v2732 = vsel %vm2588, %v1854, 0.0
      %v2733 = vadd.f32 %v2731, %v2732
      %v2734 = vsel %vm2588, %v1857, 0.0
      %v2735 = vadd.f32 %v2733, %v2734
      %v2736 = vsel %vm2588, %v1862, 0.0
      %v2737 = vadd.f32 %v2735, %v2736
      %v2738 = vsel %vm2588, %v1865, 0.0
      %v2739 = vadd.f32 %v2737, %v2738
      %v2740 = vsel %vm2588, %v1870, 0.0
      %v2741 = vadd.f32 %v2739, %v2740
      %v2742 = vsel %vm2588, %v1873, 0.0
      %v2743 = vadd.f32 %v2741, %v2742
      %v2744 = vsel %vm2588, %v1878, 0.0
      %v2745 = vadd.f32 %v2743, %v2744
      %v2746 = vsel %vm2588, %v1881, 0.0
      %v2747 = vadd.f32 %v2745, %v2746
      %v2748 = vsel %vm2588, %v1886, 0.0
      %v2749 = vadd.f32 %v2747, %v2748
      %v2750 = vsel %vm2588, %v1889, 0.0
      %v2751 = vadd.f32 %v2749, %v2750
      %v2752 = vsel %vm2588, %v1894, 0.0
      %v2753 = vadd.f32 %v2751, %v2752
      %v2754 = vsel %vm2588, %v1897, 0.0
      %v2755 = vadd.f32 %v2753, %v2754
      %v2756 = vsel %vm2588, %v1902, 0.0
      %v2757 = vadd.f32 %v2755, %v2756
      %v2758 = vsel %vm2588, %v1905, 0.0
      %v2759 = vadd.f32 %v2757, %v2758
      %v2760 = vsel %vm2588, %v1910, 0.0
      %v2761 = vadd.f32 %v2759, %v2760
      %v2762 = vsel %vm2588, %v1913, 0.0
      %v2763 = vadd.f32 %v2761, %v2762
      %v2764 = vsel %vm2588, %v1918, 0.0
      %v2765 = vadd.f32 %v2763, %v2764
      %v2766 = vsel %vm2588, %v1921, 0.0
      %v2767 = vadd.f32 %v2765, %v2766
      %v2768 = vsel %vm2588, %v1926, 0.0
      %v2769 = vadd.f32 %v2767, %v2768
      %v2770 = vsel %vm2588, %v1929, 0.0
      %v2771 = vadd.f32 %v2769, %v2770
      %v2772 = vsel %vm2588, %v1934, 0.0
      %v2773 = vadd.f32 %v2771, %v2772
      %v2774 = vsel %vm2588, %v1937, 0.0
      %v2775 = vadd.f32 %v2773, %v2774
      %v2776 = vsel %vm2588, %v1942, 0.0
      %v2777 = vadd.f32 %v2775, %v2776
      %v2778 = vsel %vm2588, %v1945, 0.0
      %v2779 = vadd.f32 %v2777, %v2778
      %v2780 = vsel %vm2588, %v1950, 0.0
      %v2781 = vadd.f32 %v2779, %v2780
      %v2782 = vsel %vm2588, %v1953, 0.0
      %v2783 = vadd.f32 %v2781, %v2782
      %v2784 = vsel %vm2588, %v1958, 0.0
      %v2785 = vadd.f32 %v2783, %v2784
      %v2786 = vsel %vm2588, %v1961, 0.0
      %v2787 = vadd.f32 %v2785, %v2786
      %v2788 = vsel %vm2588, %v1966, 0.0
      %v2789 = vadd.f32 %v2787, %v2788
      %v2790 = vsel %vm2588, %v1969, 0.0
      %v2791 = vadd.f32 %v2789, %v2790
      %v2792 = vsel %vm2588, %v1974, 0.0
      %v2793 = vadd.f32 %v2791, %v2792
      %v2794 = vsel %vm2588, %v1977, 0.0
      %v2795 = vadd.f32 %v2793, %v2794
      %v2796 = vsel %vm2588, %v1982, 0.0
      %v2797 = vadd.f32 %v2795, %v2796
      %v2798 = vsel %vm2588, %v1985, 0.0
      %v2799 = vadd.f32 %v2797, %v2798
      %v2800 = vsel %vm2588, %v1990, 0.0
      %v2801 = vadd.f32 %v2799, %v2800
      %v2802 = vsel %vm2588, %v1993, 0.0
      %v2803 = vadd.f32 %v2801, %v2802
      %v2804 = vsel %vm2588, %v1998, 0.0
      %v2805 = vadd.f32 %v2803, %v2804
      %v2806 = vsel %vm2588, %v2001, 0.0
      %v2807 = vadd.f32 %v2805, %v2806
      %v2808 = vsel %vm2588, %v2006, 0.0
      %v2809 = vadd.f32 %v2807, %v2808
      %v2810 = vsel %vm2588, %v2009, 0.0
      %v2811 = vadd.f32 %v2809, %v2810
      %v2812 = vsel %vm2588, %v2014, 0.0
      %v2813 = vadd.f32 %v2811, %v2812
      %v2814 = vsel %vm2588, %v2017, 0.0
      %v2815 = vadd.f32 %v2813, %v2814
      %v2816 = vsel %vm2588, %v2022, 0.0
      %v2817 = vadd.f32 %v2815, %v2816
      %v2818 = vsel %vm2588, %v2025, 0.0
      %v2819 = vadd.f32 %v2817, %v2818
      %v2820 = vsel %vm2588, %v2030, 0.0
      %v2821 = vadd.f32 %v2819, %v2820
      %v2822 = vsel %vm2588, %v2033, 0.0
      %v2823 = vadd.f32 %v2821, %v2822
      %v2824 = vsel %vm2588, %v2038, 0.0
      %v2825 = vadd.f32 %v2823, %v2824
      %v2826 = vsel %vm2588, %v2041, 0.0
      %v2827 = vadd.f32 %v2825, %v2826
      %v2828 = vsel %vm2588, %v2046, 0.0
      %v2829 = vadd.f32 %v2827, %v2828
      %v2830 = vsel %vm2588, %v2049, 0.0
      %v2831 = vadd.f32 %v2829, %v2830
      %v2832 = vsel %vm2588, %v2054, 0.0
      %v2833 = vadd.f32 %v2831, %v2832
      %v2834 = vsel %vm2588, %v2057, 0.0
      %v2835 = vadd.f32 %v2833, %v2834
      %v2836 = vsel %vm2588, %v2062, 0.0
      %v2837 = vadd.f32 %v2835, %v2836
      %v2838 = vsel %vm2588, %v2065, 0.0
      %v2839 = vadd.f32 %v2837, %v2838
      %v2840 = vsel %vm2588, %v2070, 0.0
      %v2841 = vadd.f32 %v2839, %v2840
      %v2842 = vsel %vm2588, %v2073, 0.0
      %v2843 = vadd.f32 %v2841, %v2842
      %v2844 = vsel %vm2588, %v2078, 0.0
      %v2845 = vadd.f32 %v2843, %v2844
      %v2846 = vsel %vm2588, %v2081, 0.0
      %v2847 = vadd.f32 %v2845, %v2846
      %v2848 = vsel %vm2588, %v2086, 0.0
      %v2849 = vadd.f32 %v2847, %v2848
      %v2850 = vsel %vm2588, %v2089, 0.0
      %v2851 = vadd.f32 %v2849, %v2850
      %v2852 = vsel %vm2588, %v2094, 0.0
      %v2853 = vadd.f32 %v2851, %v2852
      %v2854 = vsel %vm2588, %v2097, 0.0
      %v2855 = vadd.f32 %v2853, %v2854
      %v2856 = vsel %vm2588, %v2102, 0.0
      %v2857 = vadd.f32 %v2855, %v2856
      %v2858 = vsel %vm2588, %v2105, 0.0
      %v2859 = vadd.f32 %v2857, %v2858
      %v2860 = vsel %vm2588, %v2110, 0.0
      %v2861 = vadd.f32 %v2859, %v2860
      %v2862 = vsel %vm2588, %v2113, 0.0
      %v2863 = vadd.f32 %v2861, %v2862
      %v2864 = vsel %vm2588, %v2118, 0.0
      %v2865 = vadd.f32 %v2863, %v2864
      %v2866 = vsel %vm2588, %v2121, 0.0
      %v2867 = vadd.f32 %v2865, %v2866
      %v2868 = vsel %vm2588, %v2126, 0.0
      %v2869 = vadd.f32 %v2867, %v2868
      %v2870 = vsel %vm2588, %v2129, 0.0
      %v2871 = vadd.f32 %v2869, %v2870
      %v2872 = vsel %vm2588, %v2134, 0.0
      %v2873 = vadd.f32 %v2871, %v2872
      %v2874 = vsel %vm2588, %v2137, 0.0
      %v2875 = vadd.f32 %v2873, %v2874
      %v2876 = vsel %vm2588, %v2142, 0.0
      %v2877 = vadd.f32 %v2875, %v2876
      %v2878 = vsel %vm2588, %v2145, 0.0
      %v2879 = vadd.f32 %v2877, %v2878
      %v2880 = vsel %vm2588, %v2150, 0.0
      %v2881 = vadd.f32 %v2879, %v2880
      %v2882 = vsel %vm2588, %v2153, 0.0
      %v2883 = vadd.f32 %v2881, %v2882
      %v2884 = vsel %vm2588, %v2158, 0.0
      %v2885 = vadd.f32 %v2883, %v2884
      %v2886 = vsel %vm2588, %v2161, 0.0
      %v2887 = vadd.f32 %v2885, %v2886
      %v2888 = vsel %vm2588, %v2166, 0.0
      %v2889 = vadd.f32 %v2887, %v2888
      %v2890 = vsel %vm2588, %v2169, 0.0
      %v2891 = vadd.f32 %v2889, %v2890
      %v2892 = vsel %vm2588, %v2174, 0.0
      %v2893 = vadd.f32 %v2891, %v2892
      %v2894 = vsel %vm2588, %v2177, 0.0
      %v2895 = vadd.f32 %v2893, %v2894
      %v2896 = vsel %vm2588, %v2182, 0.0
      %v2897 = vadd.f32 %v2895, %v2896
      %v2898 = vsel %vm2588, %v2185, 0.0
      %v2899 = vadd.f32 %v2897, %v2898
      %v2900 = vsel %vm2588, %v2190, 0.0
      %v2901 = vadd.f32 %v2899, %v2900
      %v2902 = vsel %vm2588, %v2193, 0.0
      %v2903 = vadd.f32 %v2901, %v2902
      %v2904 = vsel %vm2588, %v2198, 0.0
      %v2905 = vadd.f32 %v2903, %v2904
      %v2906 = vsel %vm2588, %v2201, 0.0
      %v2907 = vadd.f32 %v2905, %v2906
      %v2908 = vsel %vm2588, %v2206, 0.0
      %v2909 = vadd.f32 %v2907, %v2908
      %v2910 = vsel %vm2588, %v2209, 0.0
      %v2911 = vadd.f32 %v2909, %v2910
      %v2912 = vsel %vm2588, %v2214, 0.0
      %v2913 = vadd.f32 %v2911, %v2912
      %v2914 = vsel %vm2588, %v2217, 0.0
      %v2915 = vadd.f32 %v2913, %v2914
      %v2916 = vsel %vm2588, %v2222, 0.0
      %v2917 = vadd.f32 %v2915, %v2916
      %v2918 = vsel %vm2588, %v2225, 0.0
      %v2919 = vadd.f32 %v2917, %v2918
      %v2920 = vsel %vm2588, %v2230, 0.0
      %v2921 = vadd.f32 %v2919, %v2920
      %v2922 = vsel %vm2588, %v2233, 0.0
      %v2923 = vadd.f32 %v2921, %v2922
      %v2924 = vsel %vm2588, %v2238, 0.0
      %v2925 = vadd.f32 %v2923, %v2924
      %v2926 = vsel %vm2588, %v2241, 0.0
      %v2927 = vadd.f32 %v2925, %v2926
      %v2928 = vsel %vm2588, %v2246, 0.0
      %v2929 = vadd.f32 %v2927, %v2928
      %v2930 = vsel %vm2588, %v2249, 0.0
      %v2931 = vadd.f32 %v2929, %v2930
      %v2932 = vsel %vm2588, %v2254, 0.0
      %v2933 = vadd.f32 %v2931, %v2932
      %v2934 = vsel %vm2588, %v2257, 0.0
      %v2935 = vadd.f32 %v2933, %v2934
      %v2936 = vsel %vm2588, %v2262, 0.0
      %v2937 = vadd.f32 %v2935, %v2936
      %v2938 = vsel %vm2588, %v2265, 0.0
      %v2939 = vadd.f32 %v2937, %v2938
      %v2940 = vsel %vm2588, %v2270, 0.0
      %v2941 = vadd.f32 %v2939, %v2940
      %v2942 = vsel %vm2588, %v2273, 0.0
      %v2943 = vadd.f32 %v2941, %v2942
      %v2944 = vsel %vm2588, %v2278, 0.0
      %v2945 = vadd.f32 %v2943, %v2944
      %v2946 = vsel %vm2588, %v2281, 0.0
      %v2947 = vadd.f32 %v2945, %v2946
      %v2948 = vsel %vm2588, %v2286, 0.0
      %v2949 = vadd.f32 %v2947, %v2948
      %v2950 = vsel %vm2588, %v2289, 0.0
      %v2951 = vadd.f32 %v2949, %v2950
      %v2952 = vsel %vm2588, %v2294, 0.0
      %v2953 = vadd.f32 %v2951, %v2952
      %v2954 = vsel %vm2588, %v2297, 0.0
      %v2955 = vadd.f32 %v2953, %v2954
      %v2956 = vsel %vm2588, %v2302, 0.0
      %v2957 = vadd.f32 %v2955, %v2956
      %v2958 = vsel %vm2588, %v2305, 0.0
      %v2959 = vadd.f32 %v2957, %v2958
      %v2960 = vsel %vm2588, %v2310, 0.0
      %v2961 = vadd.f32 %v2959, %v2960
      %v2962 = vsel %vm2588, %v2313, 0.0
      %v2963 = vadd.f32 %v2961, %v2962
      %v2964 = vsel %vm2588, %v2318, 0.0
      %v2965 = vadd.f32 %v2963, %v2964
      %v2966 = vsel %vm2588, %v2321, 0.0
      %v2967 = vadd.f32 %v2965, %v2966
      %v2968 = vsel %vm2588, %v2326, 0.0
      %v2969 = vadd.f32 %v2967, %v2968
      %v2970 = vsel %vm2588, %v2329, 0.0
      %v2971 = vadd.f32 %v2969, %v2970
      %v2972 = vsel %vm2588, %v2334, 0.0
      %v2973 = vadd.f32 %v2971, %v2972
      %v2974 = vsel %vm2588, %v2337, 0.0
      %v2975 = vadd.f32 %v2973, %v2974
      %v2976 = vsel %vm2588, %v2342, 0.0
      %v2977 = vadd.f32 %v2975, %v2976
      %v2978 = vsel %vm2588, %v2345, 0.0
      %v2979 = vadd.f32 %v2977, %v2978
      %v2980 = vsel %vm2588, %v2350, 0.0
      %v2981 = vadd.f32 %v2979, %v2980
      %v2982 = vsel %vm2588, %v2353, 0.0
      %v2983 = vadd.f32 %v2981, %v2982
      %v2984 = vsel %vm2588, %v2358, 0.0
      %v2985 = vadd.f32 %v2983, %v2984
      %v2986 = vsel %vm2588, %v2361, 0.0
      %v2987 = vadd.f32 %v2985, %v2986
      %v2988 = vsel %vm2588, %v2366, 0.0
      %v2989 = vadd.f32 %v2987, %v2988
      %v2990 = vsel %vm2588, %v2369, 0.0
      %v2991 = vadd.f32 %v2989, %v2990
      %v2992 = vsel %vm2588, %v2374, 0.0
      %v2993 = vadd.f32 %v2991, %v2992
      %v2994 = vsel %vm2588, %v2377, 0.0
      %v2995 = vadd.f32 %v2993, %v2994
      %v2996 = vsel %vm2588, %v2382, 0.0
      %v2997 = vadd.f32 %v2995, %v2996
      %v2998 = vsel %vm2588, %v2385, 0.0
      %v2999 = vadd.f32 %v2997, %v2998
      %v3000 = vsel %vm2588, %v2390, 0.0
      %v3001 = vadd.f32 %v2999, %v3000
      %v3002 = vsel %vm2588, %v2393, 0.0
      %v3003 = vadd.f32 %v3001, %v3002
      %v3004 = vsel %vm2588, %v2398, 0.0
      %v3005 = vadd.f32 %v3003, %v3004
      %v3006 = vsel %vm2588, %v2401, 0.0
      %v3007 = vadd.f32 %v3005, %v3006
      %v3008 = vsel %vm2588, %v2406, 0.0
      %v3009 = vadd.f32 %v3007, %v3008
      %v3010 = vsel %vm2588, %v2409, 0.0
      %v3011 = vadd.f32 %v3009, %v3010
      %v3012 = vsel %vm2588, %v2414, 0.0
      %v3013 = vadd.f32 %v3011, %v3012
      %v3014 = vsel %vm2588, %v2417, 0.0
      %v3015 = vadd.f32 %v3013, %v3014
      %v3016 = vsel %vm2588, %v2422, 0.0
      %v3017 = vadd.f32 %v3015, %v3016
      %v3018 = vsel %vm2588, %v2425, 0.0
      %v3019 = vadd.f32 %v3017, %v3018
      %v3020 = vsel %vm2588, %v2430, 0.0
      %v3021 = vadd.f32 %v3019, %v3020
      %v3022 = vsel %vm2588, %v2433, 0.0
      %v3023 = vadd.f32 %v3021, %v3022
      %v3024 = vsel %vm2588, %v2438, 0.0
      %v3025 = vadd.f32 %v3023, %v3024
      %v3026 = vsel %vm2588, %v2441, 0.0
      %v3027 = vadd.f32 %v3025, %v3026
      %v3028 = vsel %vm2588, %v2446, 0.0
      %v3029 = vadd.f32 %v3027, %v3028
      %v3030 = vsel %vm2588, %v2449, 0.0
      %v3031 = vadd.f32 %v3029, %v3030
      %v3032 = vsel %vm2588, %v2454, 0.0
      %v3033 = vadd.f32 %v3031, %v3032
      %v3034 = vsel %vm2588, %v2457, 0.0
      %v3035 = vadd.f32 %v3033, %v3034
      %v3036 = vsel %vm2588, %v2462, 0.0
      %v3037 = vadd.f32 %v3035, %v3036
      %v3038 = vsel %vm2588, %v2465, 0.0
      %v3039 = vadd.f32 %v3037, %v3038
      %v3040 = vsel %vm2588, %v2470, 0.0
      %v3041 = vadd.f32 %v3039, %v3040
      %v3042 = vsel %vm2588, %v2473, 0.0
      %v3043 = vadd.f32 %v3041, %v3042
      %v3044 = vsel %vm2588, %v2478, 0.0
      %v3045 = vadd.f32 %v3043, %v3044
      %v3046 = vsel %vm2588, %v2481, 0.0
      %v3047 = vadd.f32 %v3045, %v3046
      %v3048 = vsel %vm2588, %v2486, 0.0
      %v3049 = vadd.f32 %v3047, %v3048
      %v3050 = vsel %vm2588, %v2489, 0.0
      %v3051 = vadd.f32 %v3049, %v3050
      %v3052 = vsel %vm2588, %v2494, 0.0
      %v3053 = vadd.f32 %v3051, %v3052
      %v3054 = vsel %vm2588, %v2497, 0.0
      %v3055 = vadd.f32 %v3053, %v3054
      %v3056 = vsel %vm2588, %v2502, 0.0
      %v3057 = vadd.f32 %v3055, %v3056
      %v3058 = vsel %vm2588, %v2505, 0.0
      %v3059 = vadd.f32 %v3057, %v3058
      %v3060 = vsel %vm2588, %v2510, 0.0
      %v3061 = vadd.f32 %v3059, %v3060
      %v3062 = vsel %vm2588, %v2513, 0.0
      %v3063 = vadd.f32 %v3061, %v3062
      %v3064 = vsel %vm2588, %v2518, 0.0
      %v3065 = vadd.f32 %v3063, %v3064
      %v3066 = vsel %vm2588, %v2521, 0.0
      %v3067 = vadd.f32 %v3065, %v3066
      %v3068 = vsel %vm2588, %v2526, 0.0
      %v3069 = vadd.f32 %v3067, %v3068
      %v3070 = vsel %vm2588, %v2529, 0.0
      %v3071 = vadd.f32 %v3069, %v3070
      %v3072 = vsel %vm2588, %v2534, 0.0
      %v3073 = vadd.f32 %v3071, %v3072
      %v3074 = vsel %vm2588, %v2537, 0.0
      %v3075 = vadd.f32 %v3073, %v3074
      %v3076 = vsel %vm2588, %v2542, 0.0
      %v3077 = vadd.f32 %v3075, %v3076
      %v3078 = vsel %vm2588, %v2545, 0.0
      %v3079 = vadd.f32 %v3077, %v3078
      %v3080 = vsel %vm2588, %v2550, 0.0
      %v3081 = vadd.f32 %v3079, %v3080
      %v3082 = vsel %vm2588, %v2553, 0.0
      %v3083 = vadd.f32 %v3081, %v3082
      %v3084 = vsel %vm2588, %v2558, 0.0
      %v3085 = vadd.f32 %v3083, %v3084
      %v3086 = vsel %vm2588, %v2561, 0.0
      %v3087 = vadd.f32 %v3085, %v3086
      %v3088 = vsel %vm2588, %v2566, 0.0
      %v3089 = vadd.f32 %v3087, %v3088
      %v3090 = vsel %vm2588, %v2569, 0.0
      %v3091 = vadd.f32 %v3089, %v3090
      %v3092 = vsel %vm2588, %v2574, 0.0
      %v3093 = vadd.f32 %v3091, %v3092
      %v3094 = vsel %vm2588, %v2577, 0.0
      %v3095 = vadd.f32 %v3093, %v3094
      %v3096 = vsel %vm2588, %v2582, 0.0
      %v3097 = vadd.f32 %v3095, %v3096
      %v3098 = vsel %vm2588, %v2585, 0.0
      %v3099 = vadd.f32 %v3097, %v3098
      %v3100 = vrot.slane %v3099, 4
      %v3101 = vadd.f32 %v3099, %v3100
      %v3102 = vrot.slane %v3101, 2
      %v3103 = vadd.f32 %v3101, %v3102
      %v3104 = vrot.slane %v3103, 1
      %v3105 = vadd.f32 %v3103, %v3104
      %v3106 = vrcp.pop 2048.0
      %v3107 = vmul.f32 %v3105, %v3106
      %v3108 = vmul.f32 %v1566, %v1566
      %v3109 = vmul.f32 %v1569, %v1569
      %v3110 = vmul.f32 %v1574, %v1574
      %v3111 = vmul.f32 %v1577, %v1577
      %v3112 = vmul.f32 %v1582, %v1582
      %v3113 = vmul.f32 %v1585, %v1585
      %v3114 = vmul.f32 %v1590, %v1590
      %v3115 = vmul.f32 %v1593, %v1593
      %v3116 = vmul.f32 %v1598, %v1598
      %v3117 = vmul.f32 %v1601, %v1601
      %v3118 = vmul.f32 %v1606, %v1606
      %v3119 = vmul.f32 %v1609, %v1609
      %v3120 = vmul.f32 %v1614, %v1614
      %v3121 = vmul.f32 %v1617, %v1617
      %v3122 = vmul.f32 %v1622, %v1622
      %v3123 = vmul.f32 %v1625, %v1625
      %v3124 = vmul.f32 %v1630, %v1630
      %v3125 = vmul.f32 %v1633, %v1633
      %v3126 = vmul.f32 %v1638, %v1638
      %v3127 = vmul.f32 %v1641, %v1641
      %v3128 = vmul.f32 %v1646, %v1646
      %v3129 = vmul.f32 %v1649, %v1649
      %v3130 = vmul.f32 %v1654, %v1654
      %v3131 = vmul.f32 %v1657, %v1657
      %v3132 = vmul.f32 %v1662, %v1662
      %v3133 = vmul.f32 %v1665, %v1665
      %v3134 = vmul.f32 %v1670, %v1670
      %v3135 = vmul.f32 %v1673, %v1673
      %v3136 = vmul.f32 %v1678, %v1678
      %v3137 = vmul.f32 %v1681, %v1681
      %v3138 = vmul.f32 %v1686, %v1686
      %v3139 = vmul.f32 %v1689, %v1689
      %v3140 = vmul.f32 %v1694, %v1694
      %v3141 = vmul.f32 %v1697, %v1697
      %v3142 = vmul.f32 %v1702, %v1702
      %v3143 = vmul.f32 %v1705, %v1705
      %v3144 = vmul.f32 %v1710, %v1710
      %v3145 = vmul.f32 %v1713, %v1713
      %v3146 = vmul.f32 %v1718, %v1718
      %v3147 = vmul.f32 %v1721, %v1721
      %v3148 = vmul.f32 %v1726, %v1726
      %v3149 = vmul.f32 %v1729, %v1729
      %v3150 = vmul.f32 %v1734, %v1734
      %v3151 = vmul.f32 %v1737, %v1737
      %v3152 = vmul.f32 %v1742, %v1742
      %v3153 = vmul.f32 %v1745, %v1745
      %v3154 = vmul.f32 %v1750, %v1750
      %v3155 = vmul.f32 %v1753, %v1753
      %v3156 = vmul.f32 %v1758, %v1758
      %v3157 = vmul.f32 %v1761, %v1761
      %v3158 = vmul.f32 %v1766, %v1766
      %v3159 = vmul.f32 %v1769, %v1769
      %v3160 = vmul.f32 %v1774, %v1774
      %v3161 = vmul.f32 %v1777, %v1777
      %v3162 = vmul.f32 %v1782, %v1782
      %v3163 = vmul.f32 %v1785, %v1785
      %v3164 = vmul.f32 %v1790, %v1790
      %v3165 = vmul.f32 %v1793, %v1793
      %v3166 = vmul.f32 %v1798, %v1798
      %v3167 = vmul.f32 %v1801, %v1801
      %v3168 = vmul.f32 %v1806, %v1806
      %v3169 = vmul.f32 %v1809, %v1809
      %v3170 = vmul.f32 %v1814, %v1814
      %v3171 = vmul.f32 %v1817, %v1817
      %v3172 = vmul.f32 %v1822, %v1822
      %v3173 = vmul.f32 %v1825, %v1825
      %v3174 = vmul.f32 %v1830, %v1830
      %v3175 = vmul.f32 %v1833, %v1833
      %v3176 = vmul.f32 %v1838, %v1838
      %v3177 = vmul.f32 %v1841, %v1841
      %v3178 = vmul.f32 %v1846, %v1846
      %v3179 = vmul.f32 %v1849, %v1849
      %v3180 = vmul.f32 %v1854, %v1854
      %v3181 = vmul.f32 %v1857, %v1857
      %v3182 = vmul.f32 %v1862, %v1862
      %v3183 = vmul.f32 %v1865, %v1865
      %v3184 = vmul.f32 %v1870, %v1870
      %v3185 = vmul.f32 %v1873, %v1873
      %v3186 = vmul.f32 %v1878, %v1878
      %v3187 = vmul.f32 %v1881, %v1881
      %v3188 = vmul.f32 %v1886, %v1886
      %v3189 = vmul.f32 %v1889, %v1889
      %v3190 = vmul.f32 %v1894, %v1894
      %v3191 = vmul.f32 %v1897, %v1897
      %v3192 = vmul.f32 %v1902, %v1902
      %v3193 = vmul.f32 %v1905, %v1905
      %v3194 = vmul.f32 %v1910, %v1910
      %v3195 = vmul.f32 %v1913, %v1913
      %v3196 = vmul.f32 %v1918, %v1918
      %v3197 = vmul.f32 %v1921, %v1921
      %v3198 = vmul.f32 %v1926, %v1926
      %v3199 = vmul.f32 %v1929, %v1929
      %v3200 = vmul.f32 %v1934, %v1934
      %v3201 = vmul.f32 %v1937, %v1937
      %v3202 = vmul.f32 %v1942, %v1942
      %v3203 = vmul.f32 %v1945, %v1945
      %v3204 = vmul.f32 %v1950, %v1950
      %v3205 = vmul.f32 %v1953, %v1953
      %v3206 = vmul.f32 %v1958, %v1958
      %v3207 = vmul.f32 %v1961, %v1961
      %v3208 = vmul.f32 %v1966, %v1966
      %v3209 = vmul.f32 %v1969, %v1969
      %v3210 = vmul.f32 %v1974, %v1974
      %v3211 = vmul.f32 %v1977, %v1977
      %v3212 = vmul.f32 %v1982, %v1982
      %v3213 = vmul.f32 %v1985, %v1985
      %v3214 = vmul.f32 %v1990, %v1990
      %v3215 = vmul.f32 %v1993, %v1993
      %v3216 = vmul.f32 %v1998, %v1998
      %v3217 = vmul.f32 %v2001, %v2001
      %v3218 = vmul.f32 %v2006, %v2006
      %v3219 = vmul.f32 %v2009, %v2009
      %v3220 = vmul.f32 %v2014, %v2014
      %v3221 = vmul.f32 %v2017, %v2017
      %v3222 = vmul.f32 %v2022, %v2022
      %v3223 = vmul.f32 %v2025, %v2025
      %v3224 = vmul.f32 %v2030, %v2030
      %v3225 = vmul.f32 %v2033, %v2033
      %v3226 = vmul.f32 %v2038, %v2038
      %v3227 = vmul.f32 %v2041, %v2041
      %v3228 = vmul.f32 %v2046, %v2046
      %v3229 = vmul.f32 %v2049, %v2049
      %v3230 = vmul.f32 %v2054, %v2054
      %v3231 = vmul.f32 %v2057, %v2057
      %v3232 = vmul.f32 %v2062, %v2062
      %v3233 = vmul.f32 %v2065, %v2065
      %v3234 = vmul.f32 %v2070, %v2070
      %v3235 = vmul.f32 %v2073, %v2073
      %v3236 = vmul.f32 %v2078, %v2078
      %v3237 = vmul.f32 %v2081, %v2081
      %v3238 = vmul.f32 %v2086, %v2086
      %v3239 = vmul.f32 %v2089, %v2089
      %v3240 = vmul.f32 %v2094, %v2094
      %v3241 = vmul.f32 %v2097, %v2097
      %v3242 = vmul.f32 %v2102, %v2102
      %v3243 = vmul.f32 %v2105, %v2105
      %v3244 = vmul.f32 %v2110, %v2110
      %v3245 = vmul.f32 %v2113, %v2113
      %v3246 = vmul.f32 %v2118, %v2118
      %v3247 = vmul.f32 %v2121, %v2121
      %v3248 = vmul.f32 %v2126, %v2126
      %v3249 = vmul.f32 %v2129, %v2129
      %v3250 = vmul.f32 %v2134, %v2134
      %v3251 = vmul.f32 %v2137, %v2137
      %v3252 = vmul.f32 %v2142, %v2142
      %v3253 = vmul.f32 %v2145, %v2145
      %v3254 = vmul.f32 %v2150, %v2150
      %v3255 = vmul.f32 %v2153, %v2153
      %v3256 = vmul.f32 %v2158, %v2158
      %v3257 = vmul.f32 %v2161, %v2161
      %v3258 = vmul.f32 %v2166, %v2166
      %v3259 = vmul.f32 %v2169, %v2169
      %v3260 = vmul.f32 %v2174, %v2174
      %v3261 = vmul.f32 %v2177, %v2177
      %v3262 = vmul.f32 %v2182, %v2182
      %v3263 = vmul.f32 %v2185, %v2185
      %v3264 = vmul.f32 %v2190, %v2190
      %v3265 = vmul.f32 %v2193, %v2193
      %v3266 = vmul.f32 %v2198, %v2198
      %v3267 = vmul.f32 %v2201, %v2201
      %v3268 = vmul.f32 %v2206, %v2206
      %v3269 = vmul.f32 %v2209, %v2209
      %v3270 = vmul.f32 %v2214, %v2214
      %v3271 = vmul.f32 %v2217, %v2217
      %v3272 = vmul.f32 %v2222, %v2222
      %v3273 = vmul.f32 %v2225, %v2225
      %v3274 = vmul.f32 %v2230, %v2230
      %v3275 = vmul.f32 %v2233, %v2233
      %v3276 = vmul.f32 %v2238, %v2238
      %v3277 = vmul.f32 %v2241, %v2241
      %v3278 = vmul.f32 %v2246, %v2246
      %v3279 = vmul.f32 %v2249, %v2249
      %v3280 = vmul.f32 %v2254, %v2254
      %v3281 = vmul.f32 %v2257, %v2257
      %v3282 = vmul.f32 %v2262, %v2262
      %v3283 = vmul.f32 %v2265, %v2265
      %v3284 = vmul.f32 %v2270, %v2270
      %v3285 = vmul.f32 %v2273, %v2273
      %v3286 = vmul.f32 %v2278, %v2278
      %v3287 = vmul.f32 %v2281, %v2281
      %v3288 = vmul.f32 %v2286, %v2286
      %v3289 = vmul.f32 %v2289, %v2289
      %v3290 = vmul.f32 %v2294, %v2294
      %v3291 = vmul.f32 %v2297, %v2297
      %v3292 = vmul.f32 %v2302, %v2302
      %v3293 = vmul.f32 %v2305, %v2305
      %v3294 = vmul.f32 %v2310, %v2310
      %v3295 = vmul.f32 %v2313, %v2313
      %v3296 = vmul.f32 %v2318, %v2318
      %v3297 = vmul.f32 %v2321, %v2321
      %v3298 = vmul.f32 %v2326, %v2326
      %v3299 = vmul.f32 %v2329, %v2329
      %v3300 = vmul.f32 %v2334, %v2334
      %v3301 = vmul.f32 %v2337, %v2337
      %v3302 = vmul.f32 %v2342, %v2342
      %v3303 = vmul.f32 %v2345, %v2345
      %v3304 = vmul.f32 %v2350, %v2350
      %v3305 = vmul.f32 %v2353, %v2353
      %v3306 = vmul.f32 %v2358, %v2358
      %v3307 = vmul.f32 %v2361, %v2361
      %v3308 = vmul.f32 %v2366, %v2366
      %v3309 = vmul.f32 %v2369, %v2369
      %v3310 = vmul.f32 %v2374, %v2374
      %v3311 = vmul.f32 %v2377, %v2377
      %v3312 = vmul.f32 %v2382, %v2382
      %v3313 = vmul.f32 %v2385, %v2385
      %v3314 = vmul.f32 %v2390, %v2390
      %v3315 = vmul.f32 %v2393, %v2393
      %v3316 = vmul.f32 %v2398, %v2398
      %v3317 = vmul.f32 %v2401, %v2401
      %v3318 = vmul.f32 %v2406, %v2406
      %v3319 = vmul.f32 %v2409, %v2409
      %v3320 = vmul.f32 %v2414, %v2414
      %v3321 = vmul.f32 %v2417, %v2417
      %v3322 = vmul.f32 %v2422, %v2422
      %v3323 = vmul.f32 %v2425, %v2425
      %v3324 = vmul.f32 %v2430, %v2430
      %v3325 = vmul.f32 %v2433, %v2433
      %v3326 = vmul.f32 %v2438, %v2438
      %v3327 = vmul.f32 %v2441, %v2441
      %v3328 = vmul.f32 %v2446, %v2446
      %v3329 = vmul.f32 %v2449, %v2449
      %v3330 = vmul.f32 %v2454, %v2454
      %v3331 = vmul.f32 %v2457, %v2457
      %v3332 = vmul.f32 %v2462, %v2462
      %v3333 = vmul.f32 %v2465, %v2465
      %v3334 = vmul.f32 %v2470, %v2470
      %v3335 = vmul.f32 %v2473, %v2473
      %v3336 = vmul.f32 %v2478, %v2478
      %v3337 = vmul.f32 %v2481, %v2481
      %v3338 = vmul.f32 %v2486, %v2486
      %v3339 = vmul.f32 %v2489, %v2489
      %v3340 = vmul.f32 %v2494, %v2494
      %v3341 = vmul.f32 %v2497, %v2497
      %v3342 = vmul.f32 %v2502, %v2502
      %v3343 = vmul.f32 %v2505, %v2505
      %v3344 = vmul.f32 %v2510, %v2510
      %v3345 = vmul.f32 %v2513, %v2513
      %v3346 = vmul.f32 %v2518, %v2518
      %v3347 = vmul.f32 %v2521, %v2521
      %v3348 = vmul.f32 %v2526, %v2526
      %v3349 = vmul.f32 %v2529, %v2529
      %v3350 = vmul.f32 %v2534, %v2534
      %v3351 = vmul.f32 %v2537, %v2537
      %v3352 = vmul.f32 %v2542, %v2542
      %v3353 = vmul.f32 %v2545, %v2545
      %v3354 = vmul.f32 %v2550, %v2550
      %v3355 = vmul.f32 %v2553, %v2553
      %v3356 = vmul.f32 %v2558, %v2558
      %v3357 = vmul.f32 %v2561, %v2561
      %v3358 = vmul.f32 %v2566, %v2566
      %v3359 = vmul.f32 %v2569, %v2569
      %v3360 = vmul.f32 %v2574, %v2574
      %v3361 = vmul.f32 %v2577, %v2577
      %v3362 = vmul.f32 %v2582, %v2582
      %v3363 = vmul.f32 %v2585, %v2585
      %v3364 = vsel %vm2588, %v3108, 0.0
      %v3365 = vsel %vm2588, %v3109, 0.0
      %v3366 = vadd.f32 %v3364, %v3365
      %v3367 = vsel %vm2588, %v3110, 0.0
      %v3368 = vadd.f32 %v3366, %v3367
      %v3369 = vsel %vm2588, %v3111, 0.0
      %v3370 = vadd.f32 %v3368, %v3369
      %v3371 = vsel %vm2588, %v3112, 0.0
      %v3372 = vadd.f32 %v3370, %v3371
      %v3373 = vsel %vm2588, %v3113, 0.0
      %v3374 = vadd.f32 %v3372, %v3373
      %v3375 = vsel %vm2588, %v3114, 0.0
      %v3376 = vadd.f32 %v3374, %v3375
      %v3377 = vsel %vm2588, %v3115, 0.0
      %v3378 = vadd.f32 %v3376, %v3377
      %v3379 = vsel %vm2588, %v3116, 0.0
      %v3380 = vadd.f32 %v3378, %v3379
      %v3381 = vsel %vm2588, %v3117, 0.0
      %v3382 = vadd.f32 %v3380, %v3381
      %v3383 = vsel %vm2588, %v3118, 0.0
      %v3384 = vadd.f32 %v3382, %v3383
      %v3385 = vsel %vm2588, %v3119, 0.0
      %v3386 = vadd.f32 %v3384, %v3385
      %v3387 = vsel %vm2588, %v3120, 0.0
      %v3388 = vadd.f32 %v3386, %v3387
      %v3389 = vsel %vm2588, %v3121, 0.0
      %v3390 = vadd.f32 %v3388, %v3389
      %v3391 = vsel %vm2588, %v3122, 0.0
      %v3392 = vadd.f32 %v3390, %v3391
      %v3393 = vsel %vm2588, %v3123, 0.0
      %v3394 = vadd.f32 %v3392, %v3393
      %v3395 = vsel %vm2588, %v3124, 0.0
      %v3396 = vadd.f32 %v3394, %v3395
      %v3397 = vsel %vm2588, %v3125, 0.0
      %v3398 = vadd.f32 %v3396, %v3397
      %v3399 = vsel %vm2588, %v3126, 0.0
      %v3400 = vadd.f32 %v3398, %v3399
      %v3401 = vsel %vm2588, %v3127, 0.0
      %v3402 = vadd.f32 %v3400, %v3401
      %v3403 = vsel %vm2588, %v3128, 0.0
      %v3404 = vadd.f32 %v3402, %v3403
      %v3405 = vsel %vm2588, %v3129, 0.0
      %v3406 = vadd.f32 %v3404, %v3405
      %v3407 = vsel %vm2588, %v3130, 0.0
      %v3408 = vadd.f32 %v3406, %v3407
      %v3409 = vsel %vm2588, %v3131, 0.0
      %v3410 = vadd.f32 %v3408, %v3409
      %v3411 = vsel %vm2588, %v3132, 0.0
      %v3412 = vadd.f32 %v3410, %v3411
      %v3413 = vsel %vm2588, %v3133, 0.0
      %v3414 = vadd.f32 %v3412, %v3413
      %v3415 = vsel %vm2588, %v3134, 0.0
      %v3416 = vadd.f32 %v3414, %v3415
      %v3417 = vsel %vm2588, %v3135, 0.0
      %v3418 = vadd.f32 %v3416, %v3417
      %v3419 = vsel %vm2588, %v3136, 0.0
      %v3420 = vadd.f32 %v3418, %v3419
      %v3421 = vsel %vm2588, %v3137, 0.0
      %v3422 = vadd.f32 %v3420, %v3421
      %v3423 = vsel %vm2588, %v3138, 0.0
      %v3424 = vadd.f32 %v3422, %v3423
      %v3425 = vsel %vm2588, %v3139, 0.0
      %v3426 = vadd.f32 %v3424, %v3425
      %v3427 = vsel %vm2588, %v3140, 0.0
      %v3428 = vadd.f32 %v3426, %v3427
      %v3429 = vsel %vm2588, %v3141, 0.0
      %v3430 = vadd.f32 %v3428, %v3429
      %v3431 = vsel %vm2588, %v3142, 0.0
      %v3432 = vadd.f32 %v3430, %v3431
      %v3433 = vsel %vm2588, %v3143, 0.0
      %v3434 = vadd.f32 %v3432, %v3433
      %v3435 = vsel %vm2588, %v3144, 0.0
      %v3436 = vadd.f32 %v3434, %v3435
      %v3437 = vsel %vm2588, %v3145, 0.0
      %v3438 = vadd.f32 %v3436, %v3437
      %v3439 = vsel %vm2588, %v3146, 0.0
      %v3440 = vadd.f32 %v3438, %v3439
      %v3441 = vsel %vm2588, %v3147, 0.0
      %v3442 = vadd.f32 %v3440, %v3441
      %v3443 = vsel %vm2588, %v3148, 0.0
      %v3444 = vadd.f32 %v3442, %v3443
      %v3445 = vsel %vm2588, %v3149, 0.0
      %v3446 = vadd.f32 %v3444, %v3445
      %v3447 = vsel %vm2588, %v3150, 0.0
      %v3448 = vadd.f32 %v3446, %v3447
      %v3449 = vsel %vm2588, %v3151, 0.0
      %v3450 = vadd.f32 %v3448, %v3449
      %v3451 = vsel %vm2588, %v3152, 0.0
      %v3452 = vadd.f32 %v3450, %v3451
      %v3453 = vsel %vm2588, %v3153, 0.0
      %v3454 = vadd.f32 %v3452, %v3453
      %v3455 = vsel %vm2588, %v3154, 0.0
      %v3456 = vadd.f32 %v3454, %v3455
      %v3457 = vsel %vm2588, %v3155, 0.0
      %v3458 = vadd.f32 %v3456, %v3457
      %v3459 = vsel %vm2588, %v3156, 0.0
      %v3460 = vadd.f32 %v3458, %v3459
      %v3461 = vsel %vm2588, %v3157, 0.0
      %v3462 = vadd.f32 %v3460, %v3461
      %v3463 = vsel %vm2588, %v3158, 0.0
      %v3464 = vadd.f32 %v3462, %v3463
      %v3465 = vsel %vm2588, %v3159, 0.0
      %v3466 = vadd.f32 %v3464, %v3465
      %v3467 = vsel %vm2588, %v3160, 0.0
      %v3468 = vadd.f32 %v3466, %v3467
      %v3469 = vsel %vm2588, %v3161, 0.0
      %v3470 = vadd.f32 %v3468, %v3469
      %v3471 = vsel %vm2588, %v3162, 0.0
      %v3472 = vadd.f32 %v3470, %v3471
      %v3473 = vsel %vm2588, %v3163, 0.0
      %v3474 = vadd.f32 %v3472, %v3473
      %v3475 = vsel %vm2588, %v3164, 0.0
      %v3476 = vadd.f32 %v3474, %v3475
      %v3477 = vsel %vm2588, %v3165, 0.0
      %v3478 = vadd.f32 %v3476, %v3477
      %v3479 = vsel %vm2588, %v3166, 0.0
      %v3480 = vadd.f32 %v3478, %v3479
      %v3481 = vsel %vm2588, %v3167, 0.0
      %v3482 = vadd.f32 %v3480, %v3481
      %v3483 = vsel %vm2588, %v3168, 0.0
      %v3484 = vadd.f32 %v3482, %v3483
      %v3485 = vsel %vm2588, %v3169, 0.0
      %v3486 = vadd.f32 %v3484, %v3485
      %v3487 = vsel %vm2588, %v3170, 0.0
      %v3488 = vadd.f32 %v3486, %v3487
      %v3489 = vsel %vm2588, %v3171, 0.0
      %v3490 = vadd.f32 %v3488, %v3489
      %v3491 = vsel %vm2588, %v3172, 0.0
      %v3492 = vadd.f32 %v3490, %v3491
      %v3493 = vsel %vm2588, %v3173, 0.0
      %v3494 = vadd.f32 %v3492, %v3493
      %v3495 = vsel %vm2588, %v3174, 0.0
      %v3496 = vadd.f32 %v3494, %v3495
      %v3497 = vsel %vm2588, %v3175, 0.0
      %v3498 = vadd.f32 %v3496, %v3497
      %v3499 = vsel %vm2588, %v3176, 0.0
      %v3500 = vadd.f32 %v3498, %v3499
      %v3501 = vsel %vm2588, %v3177, 0.0
      %v3502 = vadd.f32 %v3500, %v3501
      %v3503 = vsel %vm2588, %v3178, 0.0
      %v3504 = vadd.f32 %v3502, %v3503
      %v3505 = vsel %vm2588, %v3179, 0.0
      %v3506 = vadd.f32 %v3504, %v3505
      %v3507 = vsel %vm2588, %v3180, 0.0
      %v3508 = vadd.f32 %v3506, %v3507
      %v3509 = vsel %vm2588, %v3181, 0.0
      %v3510 = vadd.f32 %v3508, %v3509
      %v3511 = vsel %vm2588, %v3182, 0.0
      %v3512 = vadd.f32 %v3510, %v3511
      %v3513 = vsel %vm2588, %v3183, 0.0
      %v3514 = vadd.f32 %v3512, %v3513
      %v3515 = vsel %vm2588, %v3184, 0.0
      %v3516 = vadd.f32 %v3514, %v3515
      %v3517 = vsel %vm2588, %v3185, 0.0
      %v3518 = vadd.f32 %v3516, %v3517
      %v3519 = vsel %vm2588, %v3186, 0.0
      %v3520 = vadd.f32 %v3518, %v3519
      %v3521 = vsel %vm2588, %v3187, 0.0
      %v3522 = vadd.f32 %v3520, %v3521
      %v3523 = vsel %vm2588, %v3188, 0.0
      %v3524 = vadd.f32 %v3522, %v3523
      %v3525 = vsel %vm2588, %v3189, 0.0
      %v3526 = vadd.f32 %v3524, %v3525
      %v3527 = vsel %vm2588, %v3190, 0.0
      %v3528 = vadd.f32 %v3526, %v3527
      %v3529 = vsel %vm2588, %v3191, 0.0
      %v3530 = vadd.f32 %v3528, %v3529
      %v3531 = vsel %vm2588, %v3192, 0.0
      %v3532 = vadd.f32 %v3530, %v3531
      %v3533 = vsel %vm2588, %v3193, 0.0
      %v3534 = vadd.f32 %v3532, %v3533
      %v3535 = vsel %vm2588, %v3194, 0.0
      %v3536 = vadd.f32 %v3534, %v3535
      %v3537 = vsel %vm2588, %v3195, 0.0
      %v3538 = vadd.f32 %v3536, %v3537
      %v3539 = vsel %vm2588, %v3196, 0.0
      %v3540 = vadd.f32 %v3538, %v3539
      %v3541 = vsel %vm2588, %v3197, 0.0
      %v3542 = vadd.f32 %v3540, %v3541
      %v3543 = vsel %vm2588, %v3198, 0.0
      %v3544 = vadd.f32 %v3542, %v3543
      %v3545 = vsel %vm2588, %v3199, 0.0
      %v3546 = vadd.f32 %v3544, %v3545
      %v3547 = vsel %vm2588, %v3200, 0.0
      %v3548 = vadd.f32 %v3546, %v3547
      %v3549 = vsel %vm2588, %v3201, 0.0
      %v3550 = vadd.f32 %v3548, %v3549
      %v3551 = vsel %vm2588, %v3202, 0.0
      %v3552 = vadd.f32 %v3550, %v3551
      %v3553 = vsel %vm2588, %v3203, 0.0
      %v3554 = vadd.f32 %v3552, %v3553
      %v3555 = vsel %vm2588, %v3204, 0.0
      %v3556 = vadd.f32 %v3554, %v3555
      %v3557 = vsel %vm2588, %v3205, 0.0
      %v3558 = vadd.f32 %v3556, %v3557
      %v3559 = vsel %vm2588, %v3206, 0.0
      %v3560 = vadd.f32 %v3558, %v3559
      %v3561 = vsel %vm2588, %v3207, 0.0
      %v3562 = vadd.f32 %v3560, %v3561
      %v3563 = vsel %vm2588, %v3208, 0.0
      %v3564 = vadd.f32 %v3562, %v3563
      %v3565 = vsel %vm2588, %v3209, 0.0
      %v3566 = vadd.f32 %v3564, %v3565
      %v3567 = vsel %vm2588, %v3210, 0.0
      %v3568 = vadd.f32 %v3566, %v3567
      %v3569 = vsel %vm2588, %v3211, 0.0
      %v3570 = vadd.f32 %v3568, %v3569
      %v3571 = vsel %vm2588, %v3212, 0.0
      %v3572 = vadd.f32 %v3570, %v3571
      %v3573 = vsel %vm2588, %v3213, 0.0
      %v3574 = vadd.f32 %v3572, %v3573
      %v3575 = vsel %vm2588, %v3214, 0.0
      %v3576 = vadd.f32 %v3574, %v3575
      %v3577 = vsel %vm2588, %v3215, 0.0
      %v3578 = vadd.f32 %v3576, %v3577
      %v3579 = vsel %vm2588, %v3216, 0.0
      %v3580 = vadd.f32 %v3578, %v3579
      %v3581 = vsel %vm2588, %v3217, 0.0
      %v3582 = vadd.f32 %v3580, %v3581
      %v3583 = vsel %vm2588, %v3218, 0.0
      %v3584 = vadd.f32 %v3582, %v3583
      %v3585 = vsel %vm2588, %v3219, 0.0
      %v3586 = vadd.f32 %v3584, %v3585
      %v3587 = vsel %vm2588, %v3220, 0.0
      %v3588 = vadd.f32 %v3586, %v3587
      %v3589 = vsel %vm2588, %v3221, 0.0
      %v3590 = vadd.f32 %v3588, %v3589
      %v3591 = vsel %vm2588, %v3222, 0.0
      %v3592 = vadd.f32 %v3590, %v3591
      %v3593 = vsel %vm2588, %v3223, 0.0
      %v3594 = vadd.f32 %v3592, %v3593
      %v3595 = vsel %vm2588, %v3224, 0.0
      %v3596 = vadd.f32 %v3594, %v3595
      %v3597 = vsel %vm2588, %v3225, 0.0
      %v3598 = vadd.f32 %v3596, %v3597
      %v3599 = vsel %vm2588, %v3226, 0.0
      %v3600 = vadd.f32 %v3598, %v3599
      %v3601 = vsel %vm2588, %v3227, 0.0
      %v3602 = vadd.f32 %v3600, %v3601
      %v3603 = vsel %vm2588, %v3228, 0.0
      %v3604 = vadd.f32 %v3602, %v3603
      %v3605 = vsel %vm2588, %v3229, 0.0
      %v3606 = vadd.f32 %v3604, %v3605
      %v3607 = vsel %vm2588, %v3230, 0.0
      %v3608 = vadd.f32 %v3606, %v3607
      %v3609 = vsel %vm2588, %v3231, 0.0
      %v3610 = vadd.f32 %v3608, %v3609
      %v3611 = vsel %vm2588, %v3232, 0.0
      %v3612 = vadd.f32 %v3610, %v3611
      %v3613 = vsel %vm2588, %v3233, 0.0
      %v3614 = vadd.f32 %v3612, %v3613
      %v3615 = vsel %vm2588, %v3234, 0.0
      %v3616 = vadd.f32 %v3614, %v3615
      %v3617 = vsel %vm2588, %v3235, 0.0
      %v3618 = vadd.f32 %v3616, %v3617
      %v3619 = vsel %vm2588, %v3236, 0.0
      %v3620 = vadd.f32 %v3618, %v3619
      %v3621 = vsel %vm2588, %v3237, 0.0
      %v3622 = vadd.f32 %v3620, %v3621
      %v3623 = vsel %vm2588, %v3238, 0.0
      %v3624 = vadd.f32 %v3622, %v3623
      %v3625 = vsel %vm2588, %v3239, 0.0
      %v3626 = vadd.f32 %v3624, %v3625
      %v3627 = vsel %vm2588, %v3240, 0.0
      %v3628 = vadd.f32 %v3626, %v3627
      %v3629 = vsel %vm2588, %v3241, 0.0
      %v3630 = vadd.f32 %v3628, %v3629
      %v3631 = vsel %vm2588, %v3242, 0.0
      %v3632 = vadd.f32 %v3630, %v3631
      %v3633 = vsel %vm2588, %v3243, 0.0
      %v3634 = vadd.f32 %v3632, %v3633
      %v3635 = vsel %vm2588, %v3244, 0.0
      %v3636 = vadd.f32 %v3634, %v3635
      %v3637 = vsel %vm2588, %v3245, 0.0
      %v3638 = vadd.f32 %v3636, %v3637
      %v3639 = vsel %vm2588, %v3246, 0.0
      %v3640 = vadd.f32 %v3638, %v3639
      %v3641 = vsel %vm2588, %v3247, 0.0
      %v3642 = vadd.f32 %v3640, %v3641
      %v3643 = vsel %vm2588, %v3248, 0.0
      %v3644 = vadd.f32 %v3642, %v3643
      %v3645 = vsel %vm2588, %v3249, 0.0
      %v3646 = vadd.f32 %v3644, %v3645
      %v3647 = vsel %vm2588, %v3250, 0.0
      %v3648 = vadd.f32 %v3646, %v3647
      %v3649 = vsel %vm2588, %v3251, 0.0
      %v3650 = vadd.f32 %v3648, %v3649
      %v3651 = vsel %vm2588, %v3252, 0.0
      %v3652 = vadd.f32 %v3650, %v3651
      %v3653 = vsel %vm2588, %v3253, 0.0
      %v3654 = vadd.f32 %v3652, %v3653
      %v3655 = vsel %vm2588, %v3254, 0.0
      %v3656 = vadd.f32 %v3654, %v3655
      %v3657 = vsel %vm2588, %v3255, 0.0
      %v3658 = vadd.f32 %v3656, %v3657
      %v3659 = vsel %vm2588, %v3256, 0.0
      %v3660 = vadd.f32 %v3658, %v3659
      %v3661 = vsel %vm2588, %v3257, 0.0
      %v3662 = vadd.f32 %v3660, %v3661
      %v3663 = vsel %vm2588, %v3258, 0.0
      %v3664 = vadd.f32 %v3662, %v3663
      %v3665 = vsel %vm2588, %v3259, 0.0
      %v3666 = vadd.f32 %v3664, %v3665
      %v3667 = vsel %vm2588, %v3260, 0.0
      %v3668 = vadd.f32 %v3666, %v3667
      %v3669 = vsel %vm2588, %v3261, 0.0
      %v3670 = vadd.f32 %v3668, %v3669
      %v3671 = vsel %vm2588, %v3262, 0.0
      %v3672 = vadd.f32 %v3670, %v3671
      %v3673 = vsel %vm2588, %v3263, 0.0
      %v3674 = vadd.f32 %v3672, %v3673
      %v3675 = vsel %vm2588, %v3264, 0.0
      %v3676 = vadd.f32 %v3674, %v3675
      %v3677 = vsel %vm2588, %v3265, 0.0
      %v3678 = vadd.f32 %v3676, %v3677
      %v3679 = vsel %vm2588, %v3266, 0.0
      %v3680 = vadd.f32 %v3678, %v3679
      %v3681 = vsel %vm2588, %v3267, 0.0
      %v3682 = vadd.f32 %v3680, %v3681
      %v3683 = vsel %vm2588, %v3268, 0.0
      %v3684 = vadd.f32 %v3682, %v3683
      %v3685 = vsel %vm2588, %v3269, 0.0
      %v3686 = vadd.f32 %v3684, %v3685
      %v3687 = vsel %vm2588, %v3270, 0.0
      %v3688 = vadd.f32 %v3686, %v3687
      %v3689 = vsel %vm2588, %v3271, 0.0
      %v3690 = vadd.f32 %v3688, %v3689
      %v3691 = vsel %vm2588, %v3272, 0.0
      %v3692 = vadd.f32 %v3690, %v3691
      %v3693 = vsel %vm2588, %v3273, 0.0
      %v3694 = vadd.f32 %v3692, %v3693
      %v3695 = vsel %vm2588, %v3274, 0.0
      %v3696 = vadd.f32 %v3694, %v3695
      %v3697 = vsel %vm2588, %v3275, 0.0
      %v3698 = vadd.f32 %v3696, %v3697
      %v3699 = vsel %vm2588, %v3276, 0.0
      %v3700 = vadd.f32 %v3698, %v3699
      %v3701 = vsel %vm2588, %v3277, 0.0
      %v3702 = vadd.f32 %v3700, %v3701
      %v3703 = vsel %vm2588, %v3278, 0.0
      %v3704 = vadd.f32 %v3702, %v3703
      %v3705 = vsel %vm2588, %v3279, 0.0
      %v3706 = vadd.f32 %v3704, %v3705
      %v3707 = vsel %vm2588, %v3280, 0.0
      %v3708 = vadd.f32 %v3706, %v3707
      %v3709 = vsel %vm2588, %v3281, 0.0
      %v3710 = vadd.f32 %v3708, %v3709
      %v3711 = vsel %vm2588, %v3282, 0.0
      %v3712 = vadd.f32 %v3710, %v3711
      %v3713 = vsel %vm2588, %v3283, 0.0
      %v3714 = vadd.f32 %v3712, %v3713
      %v3715 = vsel %vm2588, %v3284, 0.0
      %v3716 = vadd.f32 %v3714, %v3715
      %v3717 = vsel %vm2588, %v3285, 0.0
      %v3718 = vadd.f32 %v3716, %v3717
      %v3719 = vsel %vm2588, %v3286, 0.0
      %v3720 = vadd.f32 %v3718, %v3719
      %v3721 = vsel %vm2588, %v3287, 0.0
      %v3722 = vadd.f32 %v3720, %v3721
      %v3723 = vsel %vm2588, %v3288, 0.0
      %v3724 = vadd.f32 %v3722, %v3723
      %v3725 = vsel %vm2588, %v3289, 0.0
      %v3726 = vadd.f32 %v3724, %v3725
      %v3727 = vsel %vm2588, %v3290, 0.0
      %v3728 = vadd.f32 %v3726, %v3727
      %v3729 = vsel %vm2588, %v3291, 0.0
      %v3730 = vadd.f32 %v3728, %v3729
      %v3731 = vsel %vm2588, %v3292, 0.0
      %v3732 = vadd.f32 %v3730, %v3731
      %v3733 = vsel %vm2588, %v3293, 0.0
      %v3734 = vadd.f32 %v3732, %v3733
      %v3735 = vsel %vm2588, %v3294, 0.0
      %v3736 = vadd.f32 %v3734, %v3735
      %v3737 = vsel %vm2588, %v3295, 0.0
      %v3738 = vadd.f32 %v3736, %v3737
      %v3739 = vsel %vm2588, %v3296, 0.0
      %v3740 = vadd.f32 %v3738, %v3739
      %v3741 = vsel %vm2588, %v3297, 0.0
      %v3742 = vadd.f32 %v3740, %v3741
      %v3743 = vsel %vm2588, %v3298, 0.0
      %v3744 = vadd.f32 %v3742, %v3743
      %v3745 = vsel %vm2588, %v3299, 0.0
      %v3746 = vadd.f32 %v3744, %v3745
      %v3747 = vsel %vm2588, %v3300, 0.0
      %v3748 = vadd.f32 %v3746, %v3747
      %v3749 = vsel %vm2588, %v3301, 0.0
      %v3750 = vadd.f32 %v3748, %v3749
      %v3751 = vsel %vm2588, %v3302, 0.0
      %v3752 = vadd.f32 %v3750, %v3751
      %v3753 = vsel %vm2588, %v3303, 0.0
      %v3754 = vadd.f32 %v3752, %v3753
      %v3755 = vsel %vm2588, %v3304, 0.0
      %v3756 = vadd.f32 %v3754, %v3755
      %v3757 = vsel %vm2588, %v3305, 0.0
      %v3758 = vadd.f32 %v3756, %v3757
      %v3759 = vsel %vm2588, %v3306, 0.0
      %v3760 = vadd.f32 %v3758, %v3759
      %v3761 = vsel %vm2588, %v3307, 0.0
      %v3762 = vadd.f32 %v3760, %v3761
      %v3763 = vsel %vm2588, %v3308, 0.0
      %v3764 = vadd.f32 %v3762, %v3763
      %v3765 = vsel %vm2588, %v3309, 0.0
      %v3766 = vadd.f32 %v3764, %v3765
      %v3767 = vsel %vm2588, %v3310, 0.0
      %v3768 = vadd.f32 %v3766, %v3767
      %v3769 = vsel %vm2588, %v3311, 0.0
      %v3770 = vadd.f32 %v3768, %v3769
      %v3771 = vsel %vm2588, %v3312, 0.0
      %v3772 = vadd.f32 %v3770, %v3771
      %v3773 = vsel %vm2588, %v3313, 0.0
      %v3774 = vadd.f32 %v3772, %v3773
      %v3775 = vsel %vm2588, %v3314, 0.0
      %v3776 = vadd.f32 %v3774, %v3775
      %v3777 = vsel %vm2588, %v3315, 0.0
      %v3778 = vadd.f32 %v3776, %v3777
      %v3779 = vsel %vm2588, %v3316, 0.0
      %v3780 = vadd.f32 %v3778, %v3779
      %v3781 = vsel %vm2588, %v3317, 0.0
      %v3782 = vadd.f32 %v3780, %v3781
      %v3783 = vsel %vm2588, %v3318, 0.0
      %v3784 = vadd.f32 %v3782, %v3783
      %v3785 = vsel %vm2588, %v3319, 0.0
      %v3786 = vadd.f32 %v3784, %v3785
      %v3787 = vsel %vm2588, %v3320, 0.0
      %v3788 = vadd.f32 %v3786, %v3787
      %v3789 = vsel %vm2588, %v3321, 0.0
      %v3790 = vadd.f32 %v3788, %v3789
      %v3791 = vsel %vm2588, %v3322, 0.0
      %v3792 = vadd.f32 %v3790, %v3791
      %v3793 = vsel %vm2588, %v3323, 0.0
      %v3794 = vadd.f32 %v3792, %v3793
      %v3795 = vsel %vm2588, %v3324, 0.0
      %v3796 = vadd.f32 %v3794, %v3795
      %v3797 = vsel %vm2588, %v3325, 0.0
      %v3798 = vadd.f32 %v3796, %v3797
      %v3799 = vsel %vm2588, %v3326, 0.0
      %v3800 = vadd.f32 %v3798, %v3799
      %v3801 = vsel %vm2588, %v3327, 0.0
      %v3802 = vadd.f32 %v3800, %v3801
      %v3803 = vsel %vm2588, %v3328, 0.0
      %v3804 = vadd.f32 %v3802, %v3803
      %v3805 = vsel %vm2588, %v3329, 0.0
      %v3806 = vadd.f32 %v3804, %v3805
      %v3807 = vsel %vm2588, %v3330, 0.0
      %v3808 = vadd.f32 %v3806, %v3807
      %v3809 = vsel %vm2588, %v3331, 0.0
      %v3810 = vadd.f32 %v3808, %v3809
      %v3811 = vsel %vm2588, %v3332, 0.0
      %v3812 = vadd.f32 %v3810, %v3811
      %v3813 = vsel %vm2588, %v3333, 0.0
      %v3814 = vadd.f32 %v3812, %v3813
      %v3815 = vsel %vm2588, %v3334, 0.0
      %v3816 = vadd.f32 %v3814, %v3815
      %v3817 = vsel %vm2588, %v3335, 0.0
      %v3818 = vadd.f32 %v3816, %v3817
      %v3819 = vsel %vm2588, %v3336, 0.0
      %v3820 = vadd.f32 %v3818, %v3819
      %v3821 = vsel %vm2588, %v3337, 0.0
      %v3822 = vadd.f32 %v3820, %v3821
      %v3823 = vsel %vm2588, %v3338, 0.0
      %v3824 = vadd.f32 %v3822, %v3823
      %v3825 = vsel %vm2588, %v3339, 0.0
      %v3826 = vadd.f32 %v3824, %v3825
      %v3827 = vsel %vm2588, %v3340, 0.0
      %v3828 = vadd.f32 %v3826, %v3827
      %v3829 = vsel %vm2588, %v3341, 0.0
      %v3830 = vadd.f32 %v3828, %v3829
      %v3831 = vsel %vm2588, %v3342, 0.0
      %v3832 = vadd.f32 %v3830, %v3831
      %v3833 = vsel %vm2588, %v3343, 0.0
      %v3834 = vadd.f32 %v3832, %v3833
      %v3835 = vsel %vm2588, %v3344, 0.0
      %v3836 = vadd.f32 %v3834, %v3835
      %v3837 = vsel %vm2588, %v3345, 0.0
      %v3838 = vadd.f32 %v3836, %v3837
      %v3839 = vsel %vm2588, %v3346, 0.0
      %v3840 = vadd.f32 %v3838, %v3839
      %v3841 = vsel %vm2588, %v3347, 0.0
      %v3842 = vadd.f32 %v3840, %v3841
      %v3843 = vsel %vm2588, %v3348, 0.0
      %v3844 = vadd.f32 %v3842, %v3843
      %v3845 = vsel %vm2588, %v3349, 0.0
      %v3846 = vadd.f32 %v3844, %v3845
      %v3847 = vsel %vm2588, %v3350, 0.0
      %v3848 = vadd.f32 %v3846, %v3847
      %v3849 = vsel %vm2588, %v3351, 0.0
      %v3850 = vadd.f32 %v3848, %v3849
      %v3851 = vsel %vm2588, %v3352, 0.0
      %v3852 = vadd.f32 %v3850, %v3851
      %v3853 = vsel %vm2588, %v3353, 0.0
      %v3854 = vadd.f32 %v3852, %v3853
      %v3855 = vsel %vm2588, %v3354, 0.0
      %v3856 = vadd.f32 %v3854, %v3855
      %v3857 = vsel %vm2588, %v3355, 0.0
      %v3858 = vadd.f32 %v3856, %v3857
      %v3859 = vsel %vm2588, %v3356, 0.0
      %v3860 = vadd.f32 %v3858, %v3859
      %v3861 = vsel %vm2588, %v3357, 0.0
      %v3862 = vadd.f32 %v3860, %v3861
      %v3863 = vsel %vm2588, %v3358, 0.0
      %v3864 = vadd.f32 %v3862, %v3863
      %v3865 = vsel %vm2588, %v3359, 0.0
      %v3866 = vadd.f32 %v3864, %v3865
      %v3867 = vsel %vm2588, %v3360, 0.0
      %v3868 = vadd.f32 %v3866, %v3867
      %v3869 = vsel %vm2588, %v3361, 0.0
      %v3870 = vadd.f32 %v3868, %v3869
      %v3871 = vsel %vm2588, %v3362, 0.0
      %v3872 = vadd.f32 %v3870, %v3871
      %v3873 = vsel %vm2588, %v3363, 0.0
      %v3874 = vadd.f32 %v3872, %v3873
      %v3875 = vrot.slane %v3874, 4
      %v3876 = vadd.f32 %v3874, %v3875
      %v3877 = vrot.slane %v3876, 2
      %v3878 = vadd.f32 %v3876, %v3877
      %v3879 = vrot.slane %v3878, 1
      %v3880 = vadd.f32 %v3878, %v3879
      %v3881 = vmul.f32 %v3880, %v3106
      %v3882 = vmul.f32 %v3107, %v3107
      %v3883 = vsub.f32 %v3881, %v3882
      %v3884 = vsub.f32 %v1566, %v3107
      %v3885 = vsub.f32 %v1569, %v3107
      %v3886 = vsub.f32 %v1574, %v3107
      %v3887 = vsub.f32 %v1577, %v3107
      %v3888 = vsub.f32 %v1582, %v3107
      %v3889 = vsub.f32 %v1585, %v3107
      %v3890 = vsub.f32 %v1590, %v3107
      %v3891 = vsub.f32 %v1593, %v3107
      %v3892 = vsub.f32 %v1598, %v3107
      %v3893 = vsub.f32 %v1601, %v3107
      %v3894 = vsub.f32 %v1606, %v3107
      %v3895 = vsub.f32 %v1609, %v3107
      %v3896 = vsub.f32 %v1614, %v3107
      %v3897 = vsub.f32 %v1617, %v3107
      %v3898 = vsub.f32 %v1622, %v3107
      %v3899 = vsub.f32 %v1625, %v3107
      %v3900 = vsub.f32 %v1630, %v3107
      %v3901 = vsub.f32 %v1633, %v3107
      %v3902 = vsub.f32 %v1638, %v3107
      %v3903 = vsub.f32 %v1641, %v3107
      %v3904 = vsub.f32 %v1646, %v3107
      %v3905 = vsub.f32 %v1649, %v3107
      %v3906 = vsub.f32 %v1654, %v3107
      %v3907 = vsub.f32 %v1657, %v3107
      %v3908 = vsub.f32 %v1662, %v3107
      %v3909 = vsub.f32 %v1665, %v3107
      %v3910 = vsub.f32 %v1670, %v3107
      %v3911 = vsub.f32 %v1673, %v3107
      %v3912 = vsub.f32 %v1678, %v3107
      %v3913 = vsub.f32 %v1681, %v3107
      %v3914 = vsub.f32 %v1686, %v3107
      %v3915 = vsub.f32 %v1689, %v3107
      %v3916 = vsub.f32 %v1694, %v3107
      %v3917 = vsub.f32 %v1697, %v3107
      %v3918 = vsub.f32 %v1702, %v3107
      %v3919 = vsub.f32 %v1705, %v3107
      %v3920 = vsub.f32 %v1710, %v3107
      %v3921 = vsub.f32 %v1713, %v3107
      %v3922 = vsub.f32 %v1718, %v3107
      %v3923 = vsub.f32 %v1721, %v3107
      %v3924 = vsub.f32 %v1726, %v3107
      %v3925 = vsub.f32 %v1729, %v3107
      %v3926 = vsub.f32 %v1734, %v3107
      %v3927 = vsub.f32 %v1737, %v3107
      %v3928 = vsub.f32 %v1742, %v3107
      %v3929 = vsub.f32 %v1745, %v3107
      %v3930 = vsub.f32 %v1750, %v3107
      %v3931 = vsub.f32 %v1753, %v3107
      %v3932 = vsub.f32 %v1758, %v3107
      %v3933 = vsub.f32 %v1761, %v3107
      %v3934 = vsub.f32 %v1766, %v3107
      %v3935 = vsub.f32 %v1769, %v3107
      %v3936 = vsub.f32 %v1774, %v3107
      %v3937 = vsub.f32 %v1777, %v3107
      %v3938 = vsub.f32 %v1782, %v3107
      %v3939 = vsub.f32 %v1785, %v3107
      %v3940 = vsub.f32 %v1790, %v3107
      %v3941 = vsub.f32 %v1793, %v3107
      %v3942 = vsub.f32 %v1798, %v3107
      %v3943 = vsub.f32 %v1801, %v3107
      %v3944 = vsub.f32 %v1806, %v3107
      %v3945 = vsub.f32 %v1809, %v3107
      %v3946 = vsub.f32 %v1814, %v3107
      %v3947 = vsub.f32 %v1817, %v3107
      %v3948 = vsub.f32 %v1822, %v3107
      %v3949 = vsub.f32 %v1825, %v3107
      %v3950 = vsub.f32 %v1830, %v3107
      %v3951 = vsub.f32 %v1833, %v3107
      %v3952 = vsub.f32 %v1838, %v3107
      %v3953 = vsub.f32 %v1841, %v3107
      %v3954 = vsub.f32 %v1846, %v3107
      %v3955 = vsub.f32 %v1849, %v3107
      %v3956 = vsub.f32 %v1854, %v3107
      %v3957 = vsub.f32 %v1857, %v3107
      %v3958 = vsub.f32 %v1862, %v3107
      %v3959 = vsub.f32 %v1865, %v3107
      %v3960 = vsub.f32 %v1870, %v3107
      %v3961 = vsub.f32 %v1873, %v3107
      %v3962 = vsub.f32 %v1878, %v3107
      %v3963 = vsub.f32 %v1881, %v3107
      %v3964 = vsub.f32 %v1886, %v3107
      %v3965 = vsub.f32 %v1889, %v3107
      %v3966 = vsub.f32 %v1894, %v3107
      %v3967 = vsub.f32 %v1897, %v3107
      %v3968 = vsub.f32 %v1902, %v3107
      %v3969 = vsub.f32 %v1905, %v3107
      %v3970 = vsub.f32 %v1910, %v3107
      %v3971 = vsub.f32 %v1913, %v3107
      %v3972 = vsub.f32 %v1918, %v3107
      %v3973 = vsub.f32 %v1921, %v3107
      %v3974 = vsub.f32 %v1926, %v3107
      %v3975 = vsub.f32 %v1929, %v3107
      %v3976 = vsub.f32 %v1934, %v3107
      %v3977 = vsub.f32 %v1937, %v3107
      %v3978 = vsub.f32 %v1942, %v3107
      %v3979 = vsub.f32 %v1945, %v3107
      %v3980 = vsub.f32 %v1950, %v3107
      %v3981 = vsub.f32 %v1953, %v3107
      %v3982 = vsub.f32 %v1958, %v3107
      %v3983 = vsub.f32 %v1961, %v3107
      %v3984 = vsub.f32 %v1966, %v3107
      %v3985 = vsub.f32 %v1969, %v3107
      %v3986 = vsub.f32 %v1974, %v3107
      %v3987 = vsub.f32 %v1977, %v3107
      %v3988 = vsub.f32 %v1982, %v3107
      %v3989 = vsub.f32 %v1985, %v3107
      %v3990 = vsub.f32 %v1990, %v3107
      %v3991 = vsub.f32 %v1993, %v3107
      %v3992 = vsub.f32 %v1998, %v3107
      %v3993 = vsub.f32 %v2001, %v3107
      %v3994 = vsub.f32 %v2006, %v3107
      %v3995 = vsub.f32 %v2009, %v3107
      %v3996 = vsub.f32 %v2014, %v3107
      %v3997 = vsub.f32 %v2017, %v3107
      %v3998 = vsub.f32 %v2022, %v3107
      %v3999 = vsub.f32 %v2025, %v3107
      %v4000 = vsub.f32 %v2030, %v3107
      %v4001 = vsub.f32 %v2033, %v3107
      %v4002 = vsub.f32 %v2038, %v3107
      %v4003 = vsub.f32 %v2041, %v3107
      %v4004 = vsub.f32 %v2046, %v3107
      %v4005 = vsub.f32 %v2049, %v3107
      %v4006 = vsub.f32 %v2054, %v3107
      %v4007 = vsub.f32 %v2057, %v3107
      %v4008 = vsub.f32 %v2062, %v3107
      %v4009 = vsub.f32 %v2065, %v3107
      %v4010 = vsub.f32 %v2070, %v3107
      %v4011 = vsub.f32 %v2073, %v3107
      %v4012 = vsub.f32 %v2078, %v3107
      %v4013 = vsub.f32 %v2081, %v3107
      %v4014 = vsub.f32 %v2086, %v3107
      %v4015 = vsub.f32 %v2089, %v3107
      %v4016 = vsub.f32 %v2094, %v3107
      %v4017 = vsub.f32 %v2097, %v3107
      %v4018 = vsub.f32 %v2102, %v3107
      %v4019 = vsub.f32 %v2105, %v3107
      %v4020 = vsub.f32 %v2110, %v3107
      %v4021 = vsub.f32 %v2113, %v3107
      %v4022 = vsub.f32 %v2118, %v3107
      %v4023 = vsub.f32 %v2121, %v3107
      %v4024 = vsub.f32 %v2126, %v3107
      %v4025 = vsub.f32 %v2129, %v3107
      %v4026 = vsub.f32 %v2134, %v3107
      %v4027 = vsub.f32 %v2137, %v3107
      %v4028 = vsub.f32 %v2142, %v3107
      %v4029 = vsub.f32 %v2145, %v3107
      %v4030 = vsub.f32 %v2150, %v3107
      %v4031 = vsub.f32 %v2153, %v3107
      %v4032 = vsub.f32 %v2158, %v3107
      %v4033 = vsub.f32 %v2161, %v3107
      %v4034 = vsub.f32 %v2166, %v3107
      %v4035 = vsub.f32 %v2169, %v3107
      %v4036 = vsub.f32 %v2174, %v3107
      %v4037 = vsub.f32 %v2177, %v3107
      %v4038 = vsub.f32 %v2182, %v3107
      %v4039 = vsub.f32 %v2185, %v3107
      %v4040 = vsub.f32 %v2190, %v3107
      %v4041 = vsub.f32 %v2193, %v3107
      %v4042 = vsub.f32 %v2198, %v3107
      %v4043 = vsub.f32 %v2201, %v3107
      %v4044 = vsub.f32 %v2206, %v3107
      %v4045 = vsub.f32 %v2209, %v3107
      %v4046 = vsub.f32 %v2214, %v3107
      %v4047 = vsub.f32 %v2217, %v3107
      %v4048 = vsub.f32 %v2222, %v3107
      %v4049 = vsub.f32 %v2225, %v3107
      %v4050 = vsub.f32 %v2230, %v3107
      %v4051 = vsub.f32 %v2233, %v3107
      %v4052 = vsub.f32 %v2238, %v3107
      %v4053 = vsub.f32 %v2241, %v3107
      %v4054 = vsub.f32 %v2246, %v3107
      %v4055 = vsub.f32 %v2249, %v3107
      %v4056 = vsub.f32 %v2254, %v3107
      %v4057 = vsub.f32 %v2257, %v3107
      %v4058 = vsub.f32 %v2262, %v3107
      %v4059 = vsub.f32 %v2265, %v3107
      %v4060 = vsub.f32 %v2270, %v3107
      %v4061 = vsub.f32 %v2273, %v3107
      %v4062 = vsub.f32 %v2278, %v3107
      %v4063 = vsub.f32 %v2281, %v3107
      %v4064 = vsub.f32 %v2286, %v3107
      %v4065 = vsub.f32 %v2289, %v3107
      %v4066 = vsub.f32 %v2294, %v3107
      %v4067 = vsub.f32 %v2297, %v3107
      %v4068 = vsub.f32 %v2302, %v3107
      %v4069 = vsub.f32 %v2305, %v3107
      %v4070 = vsub.f32 %v2310, %v3107
      %v4071 = vsub.f32 %v2313, %v3107
      %v4072 = vsub.f32 %v2318, %v3107
      %v4073 = vsub.f32 %v2321, %v3107
      %v4074 = vsub.f32 %v2326, %v3107
      %v4075 = vsub.f32 %v2329, %v3107
      %v4076 = vsub.f32 %v2334, %v3107
      %v4077 = vsub.f32 %v2337, %v3107
      %v4078 = vsub.f32 %v2342, %v3107
      %v4079 = vsub.f32 %v2345, %v3107
      %v4080 = vsub.f32 %v2350, %v3107
      %v4081 = vsub.f32 %v2353, %v3107
      %v4082 = vsub.f32 %v2358, %v3107
      %v4083 = vsub.f32 %v2361, %v3107
      %v4084 = vsub.f32 %v2366, %v3107
      %v4085 = vsub.f32 %v2369, %v3107
      %v4086 = vsub.f32 %v2374, %v3107
      %v4087 = vsub.f32 %v2377, %v3107
      %v4088 = vsub.f32 %v2382, %v3107
      %v4089 = vsub.f32 %v2385, %v3107
      %v4090 = vsub.f32 %v2390, %v3107
      %v4091 = vsub.f32 %v2393, %v3107
      %v4092 = vsub.f32 %v2398, %v3107
      %v4093 = vsub.f32 %v2401, %v3107
      %v4094 = vsub.f32 %v2406, %v3107
      %v4095 = vsub.f32 %v2409, %v3107
      %v4096 = vsub.f32 %v2414, %v3107
      %v4097 = vsub.f32 %v2417, %v3107
      %v4098 = vsub.f32 %v2422, %v3107
      %v4099 = vsub.f32 %v2425, %v3107
      %v4100 = vsub.f32 %v2430, %v3107
      %v4101 = vsub.f32 %v2433, %v3107
      %v4102 = vsub.f32 %v2438, %v3107
      %v4103 = vsub.f32 %v2441, %v3107
      %v4104 = vsub.f32 %v2446, %v3107
      %v4105 = vsub.f32 %v2449, %v3107
      %v4106 = vsub.f32 %v2454, %v3107
      %v4107 = vsub.f32 %v2457, %v3107
      %v4108 = vsub.f32 %v2462, %v3107
      %v4109 = vsub.f32 %v2465, %v3107
      %v4110 = vsub.f32 %v2470, %v3107
      %v4111 = vsub.f32 %v2473, %v3107
      %v4112 = vsub.f32 %v2478, %v3107
      %v4113 = vsub.f32 %v2481, %v3107
      %v4114 = vsub.f32 %v2486, %v3107
      %v4115 = vsub.f32 %v2489, %v3107
      %v4116 = vsub.f32 %v2494, %v3107
      %v4117 = vsub.f32 %v2497, %v3107
      %v4118 = vsub.f32 %v2502, %v3107
      %v4119 = vsub.f32 %v2505, %v3107
      %v4120 = vsub.f32 %v2510, %v3107
      %v4121 = vsub.f32 %v2513, %v3107
      %v4122 = vsub.f32 %v2518, %v3107
      %v4123 = vsub.f32 %v2521, %v3107
      %v4124 = vsub.f32 %v2526, %v3107
      %v4125 = vsub.f32 %v2529, %v3107
      %v4126 = vsub.f32 %v2534, %v3107
      %v4127 = vsub.f32 %v2537, %v3107
      %v4128 = vsub.f32 %v2542, %v3107
      %v4129 = vsub.f32 %v2545, %v3107
      %v4130 = vsub.f32 %v2550, %v3107
      %v4131 = vsub.f32 %v2553, %v3107
      %v4132 = vsub.f32 %v2558, %v3107
      %v4133 = vsub.f32 %v2561, %v3107
      %v4134 = vsub.f32 %v2566, %v3107
      %v4135 = vsub.f32 %v2569, %v3107
      %v4136 = vsub.f32 %v2574, %v3107
      %v4137 = vsub.f32 %v2577, %v3107
      %v4138 = vsub.f32 %v2582, %v3107
      %v4139 = vsub.f32 %v2585, %v3107
      %v4140 = vadd.f32 %v3883, 1e-05
      %v4141 = vrsqrt.pop %v4140
      %v4142 = vmul.f32 %v3884, %v4141
      %v4143 = vmul.f32 %v3885, %v4141
      %v4144 = vmul.f32 %v3886, %v4141
      %v4145 = vmul.f32 %v3887, %v4141
      %v4146 = vmul.f32 %v3888, %v4141
      %v4147 = vmul.f32 %v3889, %v4141
      %v4148 = vmul.f32 %v3890, %v4141
      %v4149 = vmul.f32 %v3891, %v4141
      %v4150 = vmul.f32 %v3892, %v4141
      %v4151 = vmul.f32 %v3893, %v4141
      %v4152 = vmul.f32 %v3894, %v4141
      %v4153 = vmul.f32 %v3895, %v4141
      %v4154 = vmul.f32 %v3896, %v4141
      %v4155 = vmul.f32 %v3897, %v4141
      %v4156 = vmul.f32 %v3898, %v4141
      %v4157 = vmul.f32 %v3899, %v4141
      %v4158 = vmul.f32 %v3900, %v4141
      %v4159 = vmul.f32 %v3901, %v4141
      %v4160 = vmul.f32 %v3902, %v4141
      %v4161 = vmul.f32 %v3903, %v4141
      %v4162 = vmul.f32 %v3904, %v4141
      %v4163 = vmul.f32 %v3905, %v4141
      %v4164 = vmul.f32 %v3906, %v4141
      %v4165 = vmul.f32 %v3907, %v4141
      %v4166 = vmul.f32 %v3908, %v4141
      %v4167 = vmul.f32 %v3909, %v4141
      %v4168 = vmul.f32 %v3910, %v4141
      %v4169 = vmul.f32 %v3911, %v4141
      %v4170 = vmul.f32 %v3912, %v4141
      %v4171 = vmul.f32 %v3913, %v4141
      %v4172 = vmul.f32 %v3914, %v4141
      %v4173 = vmul.f32 %v3915, %v4141
      %v4174 = vmul.f32 %v3916, %v4141
      %v4175 = vmul.f32 %v3917, %v4141
      %v4176 = vmul.f32 %v3918, %v4141
      %v4177 = vmul.f32 %v3919, %v4141
      %v4178 = vmul.f32 %v3920, %v4141
      %v4179 = vmul.f32 %v3921, %v4141
      %v4180 = vmul.f32 %v3922, %v4141
      %v4181 = vmul.f32 %v3923, %v4141
      %v4182 = vmul.f32 %v3924, %v4141
      %v4183 = vmul.f32 %v3925, %v4141
      %v4184 = vmul.f32 %v3926, %v4141
      %v4185 = vmul.f32 %v3927, %v4141
      %v4186 = vmul.f32 %v3928, %v4141
      %v4187 = vmul.f32 %v3929, %v4141
      %v4188 = vmul.f32 %v3930, %v4141
      %v4189 = vmul.f32 %v3931, %v4141
      %v4190 = vmul.f32 %v3932, %v4141
      %v4191 = vmul.f32 %v3933, %v4141
      %v4192 = vmul.f32 %v3934, %v4141
      %v4193 = vmul.f32 %v3935, %v4141
      %v4194 = vmul.f32 %v3936, %v4141
      %v4195 = vmul.f32 %v3937, %v4141
      %v4196 = vmul.f32 %v3938, %v4141
      %v4197 = vmul.f32 %v3939, %v4141
      %v4198 = vmul.f32 %v3940, %v4141
      %v4199 = vmul.f32 %v3941, %v4141
      %v4200 = vmul.f32 %v3942, %v4141
      %v4201 = vmul.f32 %v3943, %v4141
      %v4202 = vmul.f32 %v3944, %v4141
      %v4203 = vmul.f32 %v3945, %v4141
      %v4204 = vmul.f32 %v3946, %v4141
      %v4205 = vmul.f32 %v3947, %v4141
      %v4206 = vmul.f32 %v3948, %v4141
      %v4207 = vmul.f32 %v3949, %v4141
      %v4208 = vmul.f32 %v3950, %v4141
      %v4209 = vmul.f32 %v3951, %v4141
      %v4210 = vmul.f32 %v3952, %v4141
      %v4211 = vmul.f32 %v3953, %v4141
      %v4212 = vmul.f32 %v3954, %v4141
      %v4213 = vmul.f32 %v3955, %v4141
      %v4214 = vmul.f32 %v3956, %v4141
      %v4215 = vmul.f32 %v3957, %v4141
      %v4216 = vmul.f32 %v3958, %v4141
      %v4217 = vmul.f32 %v3959, %v4141
      %v4218 = vmul.f32 %v3960, %v4141
      %v4219 = vmul.f32 %v3961, %v4141
      %v4220 = vmul.f32 %v3962, %v4141
      %v4221 = vmul.f32 %v3963, %v4141
      %v4222 = vmul.f32 %v3964, %v4141
      %v4223 = vmul.f32 %v3965, %v4141
      %v4224 = vmul.f32 %v3966, %v4141
      %v4225 = vmul.f32 %v3967, %v4141
      %v4226 = vmul.f32 %v3968, %v4141
      %v4227 = vmul.f32 %v3969, %v4141
      %v4228 = vmul.f32 %v3970, %v4141
      %v4229 = vmul.f32 %v3971, %v4141
      %v4230 = vmul.f32 %v3972, %v4141
      %v4231 = vmul.f32 %v3973, %v4141
      %v4232 = vmul.f32 %v3974, %v4141
      %v4233 = vmul.f32 %v3975, %v4141
      %v4234 = vmul.f32 %v3976, %v4141
      %v4235 = vmul.f32 %v3977, %v4141
      %v4236 = vmul.f32 %v3978, %v4141
      %v4237 = vmul.f32 %v3979, %v4141
      %v4238 = vmul.f32 %v3980, %v4141
      %v4239 = vmul.f32 %v3981, %v4141
      %v4240 = vmul.f32 %v3982, %v4141
      %v4241 = vmul.f32 %v3983, %v4141
      %v4242 = vmul.f32 %v3984, %v4141
      %v4243 = vmul.f32 %v3985, %v4141
      %v4244 = vmul.f32 %v3986, %v4141
      %v4245 = vmul.f32 %v3987, %v4141
      %v4246 = vmul.f32 %v3988, %v4141
      %v4247 = vmul.f32 %v3989, %v4141
      %v4248 = vmul.f32 %v3990, %v4141
      %v4249 = vmul.f32 %v3991, %v4141
      %v4250 = vmul.f32 %v3992, %v4141
      %v4251 = vmul.f32 %v3993, %v4141
      %v4252 = vmul.f32 %v3994, %v4141
      %v4253 = vmul.f32 %v3995, %v4141
      %v4254 = vmul.f32 %v3996, %v4141
      %v4255 = vmul.f32 %v3997, %v4141
      %v4256 = vmul.f32 %v3998, %v4141
      %v4257 = vmul.f32 %v3999, %v4141
      %v4258 = vmul.f32 %v4000, %v4141
      %v4259 = vmul.f32 %v4001, %v4141
      %v4260 = vmul.f32 %v4002, %v4141
      %v4261 = vmul.f32 %v4003, %v4141
      %v4262 = vmul.f32 %v4004, %v4141
      %v4263 = vmul.f32 %v4005, %v4141
      %v4264 = vmul.f32 %v4006, %v4141
      %v4265 = vmul.f32 %v4007, %v4141
      %v4266 = vmul.f32 %v4008, %v4141
      %v4267 = vmul.f32 %v4009, %v4141
      %v4268 = vmul.f32 %v4010, %v4141
      %v4269 = vmul.f32 %v4011, %v4141
      %v4270 = vmul.f32 %v4012, %v4141
      %v4271 = vmul.f32 %v4013, %v4141
      %v4272 = vmul.f32 %v4014, %v4141
      %v4273 = vmul.f32 %v4015, %v4141
      %v4274 = vmul.f32 %v4016, %v4141
      %v4275 = vmul.f32 %v4017, %v4141
      %v4276 = vmul.f32 %v4018, %v4141
      %v4277 = vmul.f32 %v4019, %v4141
      %v4278 = vmul.f32 %v4020, %v4141
      %v4279 = vmul.f32 %v4021, %v4141
      %v4280 = vmul.f32 %v4022, %v4141
      %v4281 = vmul.f32 %v4023, %v4141
      %v4282 = vmul.f32 %v4024, %v4141
      %v4283 = vmul.f32 %v4025, %v4141
      %v4284 = vmul.f32 %v4026, %v4141
      %v4285 = vmul.f32 %v4027, %v4141
      %v4286 = vmul.f32 %v4028, %v4141
      %v4287 = vmul.f32 %v4029, %v4141
      %v4288 = vmul.f32 %v4030, %v4141
      %v4289 = vmul.f32 %v4031, %v4141
      %v4290 = vmul.f32 %v4032, %v4141
      %v4291 = vmul.f32 %v4033, %v4141
      %v4292 = vmul.f32 %v4034, %v4141
      %v4293 = vmul.f32 %v4035, %v4141
      %v4294 = vmul.f32 %v4036, %v4141
      %v4295 = vmul.f32 %v4037, %v4141
      %v4296 = vmul.f32 %v4038, %v4141
      %v4297 = vmul.f32 %v4039, %v4141
      %v4298 = vmul.f32 %v4040, %v4141
      %v4299 = vmul.f32 %v4041, %v4141
      %v4300 = vmul.f32 %v4042, %v4141
      %v4301 = vmul.f32 %v4043, %v4141
      %v4302 = vmul.f32 %v4044, %v4141
      %v4303 = vmul.f32 %v4045, %v4141
      %v4304 = vmul.f32 %v4046, %v4141
      %v4305 = vmul.f32 %v4047, %v4141
      %v4306 = vmul.f32 %v4048, %v4141
      %v4307 = vmul.f32 %v4049, %v4141
      %v4308 = vmul.f32 %v4050, %v4141
      %v4309 = vmul.f32 %v4051, %v4141
      %v4310 = vmul.f32 %v4052, %v4141
      %v4311 = vmul.f32 %v4053, %v4141
      %v4312 = vmul.f32 %v4054, %v4141
      %v4313 = vmul.f32 %v4055, %v4141
      %v4314 = vmul.f32 %v4056, %v4141
      %v4315 = vmul.f32 %v4057, %v4141
      %v4316 = vmul.f32 %v4058, %v4141
      %v4317 = vmul.f32 %v4059, %v4141
      %v4318 = vmul.f32 %v4060, %v4141
      %v4319 = vmul.f32 %v4061, %v4141
      %v4320 = vmul.f32 %v4062, %v4141
      %v4321 = vmul.f32 %v4063, %v4141
      %v4322 = vmul.f32 %v4064, %v4141
      %v4323 = vmul.f32 %v4065, %v4141
      %v4324 = vmul.f32 %v4066, %v4141
      %v4325 = vmul.f32 %v4067, %v4141
      %v4326 = vmul.f32 %v4068, %v4141
      %v4327 = vmul.f32 %v4069, %v4141
      %v4328 = vmul.f32 %v4070, %v4141
      %v4329 = vmul.f32 %v4071, %v4141
      %v4330 = vmul.f32 %v4072, %v4141
      %v4331 = vmul.f32 %v4073, %v4141
      %v4332 = vmul.f32 %v4074, %v4141
      %v4333 = vmul.f32 %v4075, %v4141
      %v4334 = vmul.f32 %v4076, %v4141
      %v4335 = vmul.f32 %v4077, %v4141
      %v4336 = vmul.f32 %v4078, %v4141
      %v4337 = vmul.f32 %v4079, %v4141
      %v4338 = vmul.f32 %v4080, %v4141
      %v4339 = vmul.f32 %v4081, %v4141
      %v4340 = vmul.f32 %v4082, %v4141
      %v4341 = vmul.f32 %v4083, %v4141
      %v4342 = vmul.f32 %v4084, %v4141
      %v4343 = vmul.f32 %v4085, %v4141
      %v4344 = vmul.f32 %v4086, %v4141
      %v4345 = vmul.f32 %v4087, %v4141
      %v4346 = vmul.f32 %v4088, %v4141
      %v4347 = vmul.f32 %v4089, %v4141
      %v4348 = vmul.f32 %v4090, %v4141
      %v4349 = vmul.f32 %v4091, %v4141
      %v4350 = vmul.f32 %v4092, %v4141
      %v4351 = vmul.f32 %v4093, %v4141
      %v4352 = vmul.f32 %v4094, %v4141
      %v4353 = vmul.f32 %v4095, %v4141
      %v4354 = vmul.f32 %v4096, %v4141
      %v4355 = vmul.f32 %v4097, %v4141
      %v4356 = vmul.f32 %v4098, %v4141
      %v4357 = vmul.f32 %v4099, %v4141
      %v4358 = vmul.f32 %v4100, %v4141
      %v4359 = vmul.f32 %v4101, %v4141
      %v4360 = vmul.f32 %v4102, %v4141
      %v4361 = vmul.f32 %v4103, %v4141
      %v4362 = vmul.f32 %v4104, %v4141
      %v4363 = vmul.f32 %v4105, %v4141
      %v4364 = vmul.f32 %v4106, %v4141
      %v4365 = vmul.f32 %v4107, %v4141
      %v4366 = vmul.f32 %v4108, %v4141
      %v4367 = vmul.f32 %v4109, %v4141
      %v4368 = vmul.f32 %v4110, %v4141
      %v4369 = vmul.f32 %v4111, %v4141
      %v4370 = vmul.f32 %v4112, %v4141
      %v4371 = vmul.f32 %v4113, %v4141
      %v4372 = vmul.f32 %v4114, %v4141
      %v4373 = vmul.f32 %v4115, %v4141
      %v4374 = vmul.f32 %v4116, %v4141
      %v4375 = vmul.f32 %v4117, %v4141
      %v4376 = vmul.f32 %v4118, %v4141
      %v4377 = vmul.f32 %v4119, %v4141
      %v4378 = vmul.f32 %v4120, %v4141
      %v4379 = vmul.f32 %v4121, %v4141
      %v4380 = vmul.f32 %v4122, %v4141
      %v4381 = vmul.f32 %v4123, %v4141
      %v4382 = vmul.f32 %v4124, %v4141
      %v4383 = vmul.f32 %v4125, %v4141
      %v4384 = vmul.f32 %v4126, %v4141
      %v4385 = vmul.f32 %v4127, %v4141
      %v4386 = vmul.f32 %v4128, %v4141
      %v4387 = vmul.f32 %v4129, %v4141
      %v4388 = vmul.f32 %v4130, %v4141
      %v4389 = vmul.f32 %v4131, %v4141
      %v4390 = vmul.f32 %v4132, %v4141
      %v4391 = vmul.f32 %v4133, %v4141
      %v4392 = vmul.f32 %v4134, %v4141
      %v4393 = vmul.f32 %v4135, %v4141
      %v4394 = vmul.f32 %v4136, %v4141
      %v4395 = vmul.f32 %v4137, %v4141
      %v4396 = vmul.f32 %v4138, %v4141
      %v4397 = vmul.f32 %v4139, %v4141
      %v4398 = vlaneseq
      %v4399 = vshrl.u32 %v4398, 7
      %v4400 = vsub.s32 0, %v4399
      %v4401 = vrot.slane %v224, %v4400
      %v4402 = vmul.f32 %v4142, %v4401
      %v4403 = vmul.f32 %v4143, %v4401
      %v4404 = vmul.f32 %v4144, %v4401
      %v4405 = vmul.f32 %v4145, %v4401
      %v4406 = vmul.f32 %v4146, %v4401
      %v4407 = vmul.f32 %v4147, %v4401
      %v4408 = vmul.f32 %v4148, %v4401
      %v4409 = vmul.f32 %v4149, %v4401
      %v4410 = vmul.f32 %v4150, %v4401
      %v4411 = vmul.f32 %v4151, %v4401
      %v4412 = vmul.f32 %v4152, %v4401
      %v4413 = vmul.f32 %v4153, %v4401
      %v4414 = vmul.f32 %v4154, %v4401
      %v4415 = vmul.f32 %v4155, %v4401
      %v4416 = vmul.f32 %v4156, %v4401
      %v4417 = vmul.f32 %v4157, %v4401
      %v4418 = vmul.f32 %v4158, %v4401
      %v4419 = vmul.f32 %v4159, %v4401
      %v4420 = vmul.f32 %v4160, %v4401
      %v4421 = vmul.f32 %v4161, %v4401
      %v4422 = vmul.f32 %v4162, %v4401
      %v4423 = vmul.f32 %v4163, %v4401
      %v4424 = vmul.f32 %v4164, %v4401
      %v4425 = vmul.f32 %v4165, %v4401
      %v4426 = vmul.f32 %v4166, %v4401
      %v4427 = vmul.f32 %v4167, %v4401
      %v4428 = vmul.f32 %v4168, %v4401
      %v4429 = vmul.f32 %v4169, %v4401
      %v4430 = vmul.f32 %v4170, %v4401
      %v4431 = vmul.f32 %v4171, %v4401
      %v4432 = vmul.f32 %v4172, %v4401
      %v4433 = vmul.f32 %v4173, %v4401
      %v4434 = vmul.f32 %v4174, %v4401
      %v4435 = vmul.f32 %v4175, %v4401
      %v4436 = vmul.f32 %v4176, %v4401
      %v4437 = vmul.f32 %v4177, %v4401
      %v4438 = vmul.f32 %v4178, %v4401
      %v4439 = vmul.f32 %v4179, %v4401
      %v4440 = vmul.f32 %v4180, %v4401
      %v4441 = vmul.f32 %v4181, %v4401
      %v4442 = vmul.f32 %v4182, %v4401
      %v4443 = vmul.f32 %v4183, %v4401
      %v4444 = vmul.f32 %v4184, %v4401
      %v4445 = vmul.f32 %v4185, %v4401
      %v4446 = vmul.f32 %v4186, %v4401
      %v4447 = vmul.f32 %v4187, %v4401
      %v4448 = vmul.f32 %v4188, %v4401
      %v4449 = vmul.f32 %v4189, %v4401
      %v4450 = vmul.f32 %v4190, %v4401
      %v4451 = vmul.f32 %v4191, %v4401
      %v4452 = vmul.f32 %v4192, %v4401
      %v4453 = vmul.f32 %v4193, %v4401
      %v4454 = vmul.f32 %v4194, %v4401
      %v4455 = vmul.f32 %v4195, %v4401
      %v4456 = vmul.f32 %v4196, %v4401
      %v4457 = vmul.f32 %v4197, %v4401
      %v4458 = vmul.f32 %v4198, %v4401
      %v4459 = vmul.f32 %v4199, %v4401
      %v4460 = vmul.f32 %v4200, %v4401
      %v4461 = vmul.f32 %v4201, %v4401
      %v4462 = vmul.f32 %v4202, %v4401
      %v4463 = vmul.f32 %v4203, %v4401
      %v4464 = vmul.f32 %v4204, %v4401
      %v4465 = vmul.f32 %v4205, %v4401
      %v4466 = vmul.f32 %v4206, %v4401
      %v4467 = vmul.f32 %v4207, %v4401
      %v4468 = vmul.f32 %v4208, %v4401
      %v4469 = vmul.f32 %v4209, %v4401
      %v4470 = vmul.f32 %v4210, %v4401
      %v4471 = vmul.f32 %v4211, %v4401
      %v4472 = vmul.f32 %v4212, %v4401
      %v4473 = vmul.f32 %v4213, %v4401
      %v4474 = vmul.f32 %v4214, %v4401
      %v4475 = vmul.f32 %v4215, %v4401
      %v4476 = vmul.f32 %v4216, %v4401
      %v4477 = vmul.f32 %v4217, %v4401
      %v4478 = vmul.f32 %v4218, %v4401
      %v4479 = vmul.f32 %v4219, %v4401
      %v4480 = vmul.f32 %v4220, %v4401
      %v4481 = vmul.f32 %v4221, %v4401
      %v4482 = vmul.f32 %v4222, %v4401
      %v4483 = vmul.f32 %v4223, %v4401
      %v4484 = vmul.f32 %v4224, %v4401
      %v4485 = vmul.f32 %v4225, %v4401
      %v4486 = vmul.f32 %v4226, %v4401
      %v4487 = vmul.f32 %v4227, %v4401
      %v4488 = vmul.f32 %v4228, %v4401
      %v4489 = vmul.f32 %v4229, %v4401
      %v4490 = vmul.f32 %v4230, %v4401
      %v4491 = vmul.f32 %v4231, %v4401
      %v4492 = vmul.f32 %v4232, %v4401
      %v4493 = vmul.f32 %v4233, %v4401
      %v4494 = vmul.f32 %v4234, %v4401
      %v4495 = vmul.f32 %v4235, %v4401
      %v4496 = vmul.f32 %v4236, %v4401
      %v4497 = vmul.f32 %v4237, %v4401
      %v4498 = vmul.f32 %v4238, %v4401
      %v4499 = vmul.f32 %v4239, %v4401
      %v4500 = vmul.f32 %v4240, %v4401
      %v4501 = vmul.f32 %v4241, %v4401
      %v4502 = vmul.f32 %v4242, %v4401
      %v4503 = vmul.f32 %v4243, %v4401
      %v4504 = vmul.f32 %v4244, %v4401
      %v4505 = vmul.f32 %v4245, %v4401
      %v4506 = vmul.f32 %v4246, %v4401
      %v4507 = vmul.f32 %v4247, %v4401
      %v4508 = vmul.f32 %v4248, %v4401
      %v4509 = vmul.f32 %v4249, %v4401
      %v4510 = vmul.f32 %v4250, %v4401
      %v4511 = vmul.f32 %v4251, %v4401
      %v4512 = vmul.f32 %v4252, %v4401
      %v4513 = vmul.f32 %v4253, %v4401
      %v4514 = vmul.f32 %v4254, %v4401
      %v4515 = vmul.f32 %v4255, %v4401
      %v4516 = vmul.f32 %v4256, %v4401
      %v4517 = vmul.f32 %v4257, %v4401
      %v4518 = vmul.f32 %v4258, %v4401
      %v4519 = vmul.f32 %v4259, %v4401
      %v4520 = vmul.f32 %v4260, %v4401
      %v4521 = vmul.f32 %v4261, %v4401
      %v4522 = vmul.f32 %v4262, %v4401
      %v4523 = vmul.f32 %v4263, %v4401
      %v4524 = vmul.f32 %v4264, %v4401
      %v4525 = vmul.f32 %v4265, %v4401
      %v4526 = vmul.f32 %v4266, %v4401
      %v4527 = vmul.f32 %v4267, %v4401
      %v4528 = vmul.f32 %v4268, %v4401
      %v4529 = vmul.f32 %v4269, %v4401
      %v4530 = vmul.f32 %v4270, %v4401
      %v4531 = vmul.f32 %v4271, %v4401
      %v4532 = vmul.f32 %v4272, %v4401
      %v4533 = vmul.f32 %v4273, %v4401
      %v4534 = vmul.f32 %v4274, %v4401
      %v4535 = vmul.f32 %v4275, %v4401
      %v4536 = vmul.f32 %v4276, %v4401
      %v4537 = vmul.f32 %v4277, %v4401
      %v4538 = vmul.f32 %v4278, %v4401
      %v4539 = vmul.f32 %v4279, %v4401
      %v4540 = vmul.f32 %v4280, %v4401
      %v4541 = vmul.f32 %v4281, %v4401
      %v4542 = vmul.f32 %v4282, %v4401
      %v4543 = vmul.f32 %v4283, %v4401
      %v4544 = vmul.f32 %v4284, %v4401
      %v4545 = vmul.f32 %v4285, %v4401
      %v4546 = vmul.f32 %v4286, %v4401
      %v4547 = vmul.f32 %v4287, %v4401
      %v4548 = vmul.f32 %v4288, %v4401
      %v4549 = vmul.f32 %v4289, %v4401
      %v4550 = vmul.f32 %v4290, %v4401
      %v4551 = vmul.f32 %v4291, %v4401
      %v4552 = vmul.f32 %v4292, %v4401
      %v4553 = vmul.f32 %v4293, %v4401
      %v4554 = vmul.f32 %v4294, %v4401
      %v4555 = vmul.f32 %v4295, %v4401
      %v4556 = vmul.f32 %v4296, %v4401
      %v4557 = vmul.f32 %v4297, %v4401
      %v4558 = vmul.f32 %v4298, %v4401
      %v4559 = vmul.f32 %v4299, %v4401
      %v4560 = vmul.f32 %v4300, %v4401
      %v4561 = vmul.f32 %v4301, %v4401
      %v4562 = vmul.f32 %v4302, %v4401
      %v4563 = vmul.f32 %v4303, %v4401
      %v4564 = vmul.f32 %v4304, %v4401
      %v4565 = vmul.f32 %v4305, %v4401
      %v4566 = vmul.f32 %v4306, %v4401
      %v4567 = vmul.f32 %v4307, %v4401
      %v4568 = vmul.f32 %v4308, %v4401
      %v4569 = vmul.f32 %v4309, %v4401
      %v4570 = vmul.f32 %v4310, %v4401
      %v4571 = vmul.f32 %v4311, %v4401
      %v4572 = vmul.f32 %v4312, %v4401
      %v4573 = vmul.f32 %v4313, %v4401
      %v4574 = vmul.f32 %v4314, %v4401
      %v4575 = vmul.f32 %v4315, %v4401
      %v4576 = vmul.f32 %v4316, %v4401
      %v4577 = vmul.f32 %v4317, %v4401
      %v4578 = vmul.f32 %v4318, %v4401
      %v4579 = vmul.f32 %v4319, %v4401
      %v4580 = vmul.f32 %v4320, %v4401
      %v4581 = vmul.f32 %v4321, %v4401
      %v4582 = vmul.f32 %v4322, %v4401
      %v4583 = vmul.f32 %v4323, %v4401
      %v4584 = vmul.f32 %v4324, %v4401
      %v4585 = vmul.f32 %v4325, %v4401
      %v4586 = vmul.f32 %v4326, %v4401
      %v4587 = vmul.f32 %v4327, %v4401
      %v4588 = vmul.f32 %v4328, %v4401
      %v4589 = vmul.f32 %v4329, %v4401
      %v4590 = vmul.f32 %v4330, %v4401
      %v4591 = vmul.f32 %v4331, %v4401
      %v4592 = vmul.f32 %v4332, %v4401
      %v4593 = vmul.f32 %v4333, %v4401
      %v4594 = vmul.f32 %v4334, %v4401
      %v4595 = vmul.f32 %v4335, %v4401
      %v4596 = vmul.f32 %v4336, %v4401
      %v4597 = vmul.f32 %v4337, %v4401
      %v4598 = vmul.f32 %v4338, %v4401
      %v4599 = vmul.f32 %v4339, %v4401
      %v4600 = vmul.f32 %v4340, %v4401
      %v4601 = vmul.f32 %v4341, %v4401
      %v4602 = vmul.f32 %v4342, %v4401
      %v4603 = vmul.f32 %v4343, %v4401
      %v4604 = vmul.f32 %v4344, %v4401
      %v4605 = vmul.f32 %v4345, %v4401
      %v4606 = vmul.f32 %v4346, %v4401
      %v4607 = vmul.f32 %v4347, %v4401
      %v4608 = vmul.f32 %v4348, %v4401
      %v4609 = vmul.f32 %v4349, %v4401
      %v4610 = vmul.f32 %v4350, %v4401
      %v4611 = vmul.f32 %v4351, %v4401
      %v4612 = vmul.f32 %v4352, %v4401
      %v4613 = vmul.f32 %v4353, %v4401
      %v4614 = vmul.f32 %v4354, %v4401
      %v4615 = vmul.f32 %v4355, %v4401
      %v4616 = vmul.f32 %v4356, %v4401
      %v4617 = vmul.f32 %v4357, %v4401
      %v4618 = vmul.f32 %v4358, %v4401
      %v4619 = vmul.f32 %v4359, %v4401
      %v4620 = vmul.f32 %v4360, %v4401
      %v4621 = vmul.f32 %v4361, %v4401
      %v4622 = vmul.f32 %v4362, %v4401
      %v4623 = vmul.f32 %v4363, %v4401
      %v4624 = vmul.f32 %v4364, %v4401
      %v4625 = vmul.f32 %v4365, %v4401
      %v4626 = vmul.f32 %v4366, %v4401
      %v4627 = vmul.f32 %v4367, %v4401
      %v4628 = vmul.f32 %v4368, %v4401
      %v4629 = vmul.f32 %v4369, %v4401
      %v4630 = vmul.f32 %v4370, %v4401
      %v4631 = vmul.f32 %v4371, %v4401
      %v4632 = vmul.f32 %v4372, %v4401
      %v4633 = vmul.f32 %v4373, %v4401
      %v4634 = vmul.f32 %v4374, %v4401
      %v4635 = vmul.f32 %v4375, %v4401
      %v4636 = vmul.f32 %v4376, %v4401
      %v4637 = vmul.f32 %v4377, %v4401
      %v4638 = vmul.f32 %v4378, %v4401
      %v4639 = vmul.f32 %v4379, %v4401
      %v4640 = vmul.f32 %v4380, %v4401
      %v4641 = vmul.f32 %v4381, %v4401
      %v4642 = vmul.f32 %v4382, %v4401
      %v4643 = vmul.f32 %v4383, %v4401
      %v4644 = vmul.f32 %v4384, %v4401
      %v4645 = vmul.f32 %v4385, %v4401
      %v4646 = vmul.f32 %v4386, %v4401
      %v4647 = vmul.f32 %v4387, %v4401
      %v4648 = vmul.f32 %v4388, %v4401
      %v4649 = vmul.f32 %v4389, %v4401
      %v4650 = vmul.f32 %v4390, %v4401
      %v4651 = vmul.f32 %v4391, %v4401
      %v4652 = vmul.f32 %v4392, %v4401
      %v4653 = vmul.f32 %v4393, %v4401
      %v4654 = vmul.f32 %v4394, %v4401
      %v4655 = vmul.f32 %v4395, %v4401
      %v4656 = vmul.f32 %v4396, %v4401
      %v4657 = vmul.f32 %v4397, %v4401
      %v4658 = vlaneseq
      %v4659 = vshrl.u32 %v4658, 7
      %v4660 = vsub.s32 1, %v4659
      %v4661 = vrot.slane %v224, %v4660
      %v4662 = vadd.f32 %v4402, %v4661
      %v4663 = vadd.f32 %v4403, %v4661
      %v4664 = vadd.f32 %v4404, %v4661
      %v4665 = vadd.f32 %v4405, %v4661
      %v4666 = vadd.f32 %v4406, %v4661
      %v4667 = vadd.f32 %v4407, %v4661
      %v4668 = vadd.f32 %v4408, %v4661
      %v4669 = vadd.f32 %v4409, %v4661
      %v4670 = vadd.f32 %v4410, %v4661
      %v4671 = vadd.f32 %v4411, %v4661
      %v4672 = vadd.f32 %v4412, %v4661
      %v4673 = vadd.f32 %v4413, %v4661
      %v4674 = vadd.f32 %v4414, %v4661
      %v4675 = vadd.f32 %v4415, %v4661
      %v4676 = vadd.f32 %v4416, %v4661
      %v4677 = vadd.f32 %v4417, %v4661
      %v4678 = vadd.f32 %v4418, %v4661
      %v4679 = vadd.f32 %v4419, %v4661
      %v4680 = vadd.f32 %v4420, %v4661
      %v4681 = vadd.f32 %v4421, %v4661
      %v4682 = vadd.f32 %v4422, %v4661
      %v4683 = vadd.f32 %v4423, %v4661
      %v4684 = vadd.f32 %v4424, %v4661
      %v4685 = vadd.f32 %v4425, %v4661
      %v4686 = vadd.f32 %v4426, %v4661
      %v4687 = vadd.f32 %v4427, %v4661
      %v4688 = vadd.f32 %v4428, %v4661
      %v4689 = vadd.f32 %v4429, %v4661
      %v4690 = vadd.f32 %v4430, %v4661
      %v4691 = vadd.f32 %v4431, %v4661
      %v4692 = vadd.f32 %v4432, %v4661
      %v4693 = vadd.f32 %v4433, %v4661
      %v4694 = vadd.f32 %v4434, %v4661
      %v4695 = vadd.f32 %v4435, %v4661
      %v4696 = vadd.f32 %v4436, %v4661
      %v4697 = vadd.f32 %v4437, %v4661
      %v4698 = vadd.f32 %v4438, %v4661
      %v4699 = vadd.f32 %v4439, %v4661
      %v4700 = vadd.f32 %v4440, %v4661
      %v4701 = vadd.f32 %v4441, %v4661
      %v4702 = vadd.f32 %v4442, %v4661
      %v4703 = vadd.f32 %v4443, %v4661
      %v4704 = vadd.f32 %v4444, %v4661
      %v4705 = vadd.f32 %v4445, %v4661
      %v4706 = vadd.f32 %v4446, %v4661
      %v4707 = vadd.f32 %v4447, %v4661
      %v4708 = vadd.f32 %v4448, %v4661
      %v4709 = vadd.f32 %v4449, %v4661
      %v4710 = vadd.f32 %v4450, %v4661
      %v4711 = vadd.f32 %v4451, %v4661
      %v4712 = vadd.f32 %v4452, %v4661
      %v4713 = vadd.f32 %v4453, %v4661
      %v4714 = vadd.f32 %v4454, %v4661
      %v4715 = vadd.f32 %v4455, %v4661
      %v4716 = vadd.f32 %v4456, %v4661
      %v4717 = vadd.f32 %v4457, %v4661
      %v4718 = vadd.f32 %v4458, %v4661
      %v4719 = vadd.f32 %v4459, %v4661
      %v4720 = vadd.f32 %v4460, %v4661
      %v4721 = vadd.f32 %v4461, %v4661
      %v4722 = vadd.f32 %v4462, %v4661
      %v4723 = vadd.f32 %v4463, %v4661
      %v4724 = vadd.f32 %v4464, %v4661
      %v4725 = vadd.f32 %v4465, %v4661
      %v4726 = vadd.f32 %v4466, %v4661
      %v4727 = vadd.f32 %v4467, %v4661
      %v4728 = vadd.f32 %v4468, %v4661
      %v4729 = vadd.f32 %v4469, %v4661
      %v4730 = vadd.f32 %v4470, %v4661
      %v4731 = vadd.f32 %v4471, %v4661
      %v4732 = vadd.f32 %v4472, %v4661
      %v4733 = vadd.f32 %v4473, %v4661
      %v4734 = vadd.f32 %v4474, %v4661
      %v4735 = vadd.f32 %v4475, %v4661
      %v4736 = vadd.f32 %v4476, %v4661
      %v4737 = vadd.f32 %v4477, %v4661
      %v4738 = vadd.f32 %v4478, %v4661
      %v4739 = vadd.f32 %v4479, %v4661
      %v4740 = vadd.f32 %v4480, %v4661
      %v4741 = vadd.f32 %v4481, %v4661
      %v4742 = vadd.f32 %v4482, %v4661
      %v4743 = vadd.f32 %v4483, %v4661
      %v4744 = vadd.f32 %v4484, %v4661
      %v4745 = vadd.f32 %v4485, %v4661
      %v4746 = vadd.f32 %v4486, %v4661
      %v4747 = vadd.f32 %v4487, %v4661
      %v4748 = vadd.f32 %v4488, %v4661
      %v4749 = vadd.f32 %v4489, %v4661
      %v4750 = vadd.f32 %v4490, %v4661
      %v4751 = vadd.f32 %v4491, %v4661
      %v4752 = vadd.f32 %v4492, %v4661
      %v4753 = vadd.f32 %v4493, %v4661
      %v4754 = vadd.f32 %v4494, %v4661
      %v4755 = vadd.f32 %v4495, %v4661
      %v4756 = vadd.f32 %v4496, %v4661
      %v4757 = vadd.f32 %v4497, %v4661
      %v4758 = vadd.f32 %v4498, %v4661
      %v4759 = vadd.f32 %v4499, %v4661
      %v4760 = vadd.f32 %v4500, %v4661
      %v4761 = vadd.f32 %v4501, %v4661
      %v4762 = vadd.f32 %v4502, %v4661
      %v4763 = vadd.f32 %v4503, %v4661
      %v4764 = vadd.f32 %v4504, %v4661
      %v4765 = vadd.f32 %v4505, %v4661
      %v4766 = vadd.f32 %v4506, %v4661
      %v4767 = vadd.f32 %v4507, %v4661
      %v4768 = vadd.f32 %v4508, %v4661
      %v4769 = vadd.f32 %v4509, %v4661
      %v4770 = vadd.f32 %v4510, %v4661
      %v4771 = vadd.f32 %v4511, %v4661
      %v4772 = vadd.f32 %v4512, %v4661
      %v4773 = vadd.f32 %v4513, %v4661
      %v4774 = vadd.f32 %v4514, %v4661
      %v4775 = vadd.f32 %v4515, %v4661
      %v4776 = vadd.f32 %v4516, %v4661
      %v4777 = vadd.f32 %v4517, %v4661
      %v4778 = vadd.f32 %v4518, %v4661
      %v4779 = vadd.f32 %v4519, %v4661
      %v4780 = vadd.f32 %v4520, %v4661
      %v4781 = vadd.f32 %v4521, %v4661
      %v4782 = vadd.f32 %v4522, %v4661
      %v4783 = vadd.f32 %v4523, %v4661
      %v4784 = vadd.f32 %v4524, %v4661
      %v4785 = vadd.f32 %v4525, %v4661
      %v4786 = vadd.f32 %v4526, %v4661
      %v4787 = vadd.f32 %v4527, %v4661
      %v4788 = vadd.f32 %v4528, %v4661
      %v4789 = vadd.f32 %v4529, %v4661
      %v4790 = vadd.f32 %v4530, %v4661
      %v4791 = vadd.f32 %v4531, %v4661
      %v4792 = vadd.f32 %v4532, %v4661
      %v4793 = vadd.f32 %v4533, %v4661
      %v4794 = vadd.f32 %v4534, %v4661
      %v4795 = vadd.f32 %v4535, %v4661
      %v4796 = vadd.f32 %v4536, %v4661
      %v4797 = vadd.f32 %v4537, %v4661
      %v4798 = vadd.f32 %v4538, %v4661
      %v4799 = vadd.f32 %v4539, %v4661
      %v4800 = vadd.f32 %v4540, %v4661
      %v4801 = vadd.f32 %v4541, %v4661
      %v4802 = vadd.f32 %v4542, %v4661
      %v4803 = vadd.f32 %v4543, %v4661
      %v4804 = vadd.f32 %v4544, %v4661
      %v4805 = vadd.f32 %v4545, %v4661
      %v4806 = vadd.f32 %v4546, %v4661
      %v4807 = vadd.f32 %v4547, %v4661
      %v4808 = vadd.f32 %v4548, %v4661
      %v4809 = vadd.f32 %v4549, %v4661
      %v4810 = vadd.f32 %v4550, %v4661
      %v4811 = vadd.f32 %v4551, %v4661
      %v4812 = vadd.f32 %v4552, %v4661
      %v4813 = vadd.f32 %v4553, %v4661
      %v4814 = vadd.f32 %v4554, %v4661
      %v4815 = vadd.f32 %v4555, %v4661
      %v4816 = vadd.f32 %v4556, %v4661
      %v4817 = vadd.f32 %v4557, %v4661
      %v4818 = vadd.f32 %v4558, %v4661
      %v4819 = vadd.f32 %v4559, %v4661
      %v4820 = vadd.f32 %v4560, %v4661
      %v4821 = vadd.f32 %v4561, %v4661
      %v4822 = vadd.f32 %v4562, %v4661
      %v4823 = vadd.f32 %v4563, %v4661
      %v4824 = vadd.f32 %v4564, %v4661
      %v4825 = vadd.f32 %v4565, %v4661
      %v4826 = vadd.f32 %v4566, %v4661
      %v4827 = vadd.f32 %v4567, %v4661
      %v4828 = vadd.f32 %v4568, %v4661
      %v4829 = vadd.f32 %v4569, %v4661
      %v4830 = vadd.f32 %v4570, %v4661
      %v4831 = vadd.f32 %v4571, %v4661
      %v4832 = vadd.f32 %v4572, %v4661
      %v4833 = vadd.f32 %v4573, %v4661
      %v4834 = vadd.f32 %v4574, %v4661
      %v4835 = vadd.f32 %v4575, %v4661
      %v4836 = vadd.f32 %v4576, %v4661
      %v4837 = vadd.f32 %v4577, %v4661
      %v4838 = vadd.f32 %v4578, %v4661
      %v4839 = vadd.f32 %v4579, %v4661
      %v4840 = vadd.f32 %v4580, %v4661
      %v4841 = vadd.f32 %v4581, %v4661
      %v4842 = vadd.f32 %v4582, %v4661
      %v4843 = vadd.f32 %v4583, %v4661
      %v4844 = vadd.f32 %v4584, %v4661
      %v4845 = vadd.f32 %v4585, %v4661
      %v4846 = vadd.f32 %v4586, %v4661
      %v4847 = vadd.f32 %v4587, %v4661
      %v4848 = vadd.f32 %v4588, %v4661
      %v4849 = vadd.f32 %v4589, %v4661
      %v4850 = vadd.f32 %v4590, %v4661
      %v4851 = vadd.f32 %v4591, %v4661
      %v4852 = vadd.f32 %v4592, %v4661
      %v4853 = vadd.f32 %v4593, %v4661
      %v4854 = vadd.f32 %v4594, %v4661
      %v4855 = vadd.f32 %v4595, %v4661
      %v4856 = vadd.f32 %v4596, %v4661
      %v4857 = vadd.f32 %v4597, %v4661
      %v4858 = vadd.f32 %v4598, %v4661
      %v4859 = vadd.f32 %v4599, %v4661
      %v4860 = vadd.f32 %v4600, %v4661
      %v4861 = vadd.f32 %v4601, %v4661
      %v4862 = vadd.f32 %v4602, %v4661
      %v4863 = vadd.f32 %v4603, %v4661
      %v4864 = vadd.f32 %v4604, %v4661
      %v4865 = vadd.f32 %v4605, %v4661
      %v4866 = vadd.f32 %v4606, %v4661
      %v4867 = vadd.f32 %v4607, %v4661
      %v4868 = vadd.f32 %v4608, %v4661
      %v4869 = vadd.f32 %v4609, %v4661
      %v4870 = vadd.f32 %v4610, %v4661
      %v4871 = vadd.f32 %v4611, %v4661
      %v4872 = vadd.f32 %v4612, %v4661
      %v4873 = vadd.f32 %v4613, %v4661
      %v4874 = vadd.f32 %v4614, %v4661
      %v4875 = vadd.f32 %v4615, %v4661
      %v4876 = vadd.f32 %v4616, %v4661
      %v4877 = vadd.f32 %v4617, %v4661
      %v4878 = vadd.f32 %v4618, %v4661
      %v4879 = vadd.f32 %v4619, %v4661
      %v4880 = vadd.f32 %v4620, %v4661
      %v4881 = vadd.f32 %v4621, %v4661
      %v4882 = vadd.f32 %v4622, %v4661
      %v4883 = vadd.f32 %v4623, %v4661
      %v4884 = vadd.f32 %v4624, %v4661
      %v4885 = vadd.f32 %v4625, %v4661
      %v4886 = vadd.f32 %v4626, %v4661
      %v4887 = vadd.f32 %v4627, %v4661
      %v4888 = vadd.f32 %v4628, %v4661
      %v4889 = vadd.f32 %v4629, %v4661
      %v4890 = vadd.f32 %v4630, %v4661
      %v4891 = vadd.f32 %v4631, %v4661
      %v4892 = vadd.f32 %v4632, %v4661
      %v4893 = vadd.f32 %v4633, %v4661
      %v4894 = vadd.f32 %v4634, %v4661
      %v4895 = vadd.f32 %v4635, %v4661
      %v4896 = vadd.f32 %v4636, %v4661
      %v4897 = vadd.f32 %v4637, %v4661
      %v4898 = vadd.f32 %v4638, %v4661
      %v4899 = vadd.f32 %v4639, %v4661
      %v4900 = vadd.f32 %v4640, %v4661
      %v4901 = vadd.f32 %v4641, %v4661
      %v4902 = vadd.f32 %v4642, %v4661
      %v4903 = vadd.f32 %v4643, %v4661
      %v4904 = vadd.f32 %v4644, %v4661
      %v4905 = vadd.f32 %v4645, %v4661
      %v4906 = vadd.f32 %v4646, %v4661
      %v4907 = vadd.f32 %v4647, %v4661
      %v4908 = vadd.f32 %v4648, %v4661
      %v4909 = vadd.f32 %v4649, %v4661
      %v4910 = vadd.f32 %v4650, %v4661
      %v4911 = vadd.f32 %v4651, %v4661
      %v4912 = vadd.f32 %v4652, %v4661
      %v4913 = vadd.f32 %v4653, %v4661
      %v4914 = vadd.f32 %v4654, %v4661
      %v4915 = vadd.f32 %v4655, %v4661
      %v4916 = vadd.f32 %v4656, %v4661
      %v4917 = vadd.f32 %v4657, %v4661
      %v4918 = vmax.f32 %v4662, 0.0
      %v4919 = vmax.f32 %v4663, 0.0
      %v4920 = vmax.f32 %v4664, 0.0
      %v4921 = vmax.f32 %v4665, 0.0
      %v4922 = vmax.f32 %v4666, 0.0
      %v4923 = vmax.f32 %v4667, 0.0
      %v4924 = vmax.f32 %v4668, 0.0
      %v4925 = vmax.f32 %v4669, 0.0
      %v4926 = vmax.f32 %v4670, 0.0
      %v4927 = vmax.f32 %v4671, 0.0
      %v4928 = vmax.f32 %v4672, 0.0
      %v4929 = vmax.f32 %v4673, 0.0
      %v4930 = vmax.f32 %v4674, 0.0
      %v4931 = vmax.f32 %v4675, 0.0
      %v4932 = vmax.f32 %v4676, 0.0
      %v4933 = vmax.f32 %v4677, 0.0
      %v4934 = vmax.f32 %v4678, 0.0
      %v4935 = vmax.f32 %v4679, 0.0
      %v4936 = vmax.f32 %v4680, 0.0
      %v4937 = vmax.f32 %v4681, 0.0
      %v4938 = vmax.f32 %v4682, 0.0
      %v4939 = vmax.f32 %v4683, 0.0
      %v4940 = vmax.f32 %v4684, 0.0
      %v4941 = vmax.f32 %v4685, 0.0
      %v4942 = vmax.f32 %v4686, 0.0
      %v4943 = vmax.f32 %v4687, 0.0
      %v4944 = vmax.f32 %v4688, 0.0
      %v4945 = vmax.f32 %v4689, 0.0
      %v4946 = vmax.f32 %v4690, 0.0
      %v4947 = vmax.f32 %v4691, 0.0
      %v4948 = vmax.f32 %v4692, 0.0
      %v4949 = vmax.f32 %v4693, 0.0
      %v4950 = vmax.f32 %v4694, 0.0
      %v4951 = vmax.f32 %v4695, 0.0
      %v4952 = vmax.f32 %v4696, 0.0
      %v4953 = vmax.f32 %v4697, 0.0
      %v4954 = vmax.f32 %v4698, 0.0
      %v4955 = vmax.f32 %v4699, 0.0
      %v4956 = vmax.f32 %v4700, 0.0
      %v4957 = vmax.f32 %v4701, 0.0
      %v4958 = vmax.f32 %v4702, 0.0
      %v4959 = vmax.f32 %v4703, 0.0
      %v4960 = vmax.f32 %v4704, 0.0
      %v4961 = vmax.f32 %v4705, 0.0
      %v4962 = vmax.f32 %v4706, 0.0
      %v4963 = vmax.f32 %v4707, 0.0
      %v4964 = vmax.f32 %v4708, 0.0
      %v4965 = vmax.f32 %v4709, 0.0
      %v4966 = vmax.f32 %v4710, 0.0
      %v4967 = vmax.f32 %v4711, 0.0
      %v4968 = vmax.f32 %v4712, 0.0
      %v4969 = vmax.f32 %v4713, 0.0
      %v4970 = vmax.f32 %v4714, 0.0
      %v4971 = vmax.f32 %v4715, 0.0
      %v4972 = vmax.f32 %v4716, 0.0
      %v4973 = vmax.f32 %v4717, 0.0
      %v4974 = vmax.f32 %v4718, 0.0
      %v4975 = vmax.f32 %v4719, 0.0
      %v4976 = vmax.f32 %v4720, 0.0
      %v4977 = vmax.f32 %v4721, 0.0
      %v4978 = vmax.f32 %v4722, 0.0
      %v4979 = vmax.f32 %v4723, 0.0
      %v4980 = vmax.f32 %v4724, 0.0
      %v4981 = vmax.f32 %v4725, 0.0
      %v4982 = vmax.f32 %v4726, 0.0
      %v4983 = vmax.f32 %v4727, 0.0
      %v4984 = vmax.f32 %v4728, 0.0
      %v4985 = vmax.f32 %v4729, 0.0
      %v4986 = vmax.f32 %v4730, 0.0
      %v4987 = vmax.f32 %v4731, 0.0
      %v4988 = vmax.f32 %v4732, 0.0
      %v4989 = vmax.f32 %v4733, 0.0
      %v4990 = vmax.f32 %v4734, 0.0
      %v4991 = vmax.f32 %v4735, 0.0
      %v4992 = vmax.f32 %v4736, 0.0
      %v4993 = vmax.f32 %v4737, 0.0
      %v4994 = vmax.f32 %v4738, 0.0
      %v4995 = vmax.f32 %v4739, 0.0
      %v4996 = vmax.f32 %v4740, 0.0
      %v4997 = vmax.f32 %v4741, 0.0
      %v4998 = vmax.f32 %v4742, 0.0
      %v4999 = vmax.f32 %v4743, 0.0
      %v5000 = vmax.f32 %v4744, 0.0
      %v5001 = vmax.f32 %v4745, 0.0
      %v5002 = vmax.f32 %v4746, 0.0
      %v5003 = vmax.f32 %v4747, 0.0
      %v5004 = vmax.f32 %v4748, 0.0
      %v5005 = vmax.f32 %v4749, 0.0
      %v5006 = vmax.f32 %v4750, 0.0
      %v5007 = vmax.f32 %v4751, 0.0
      %v5008 = vmax.f32 %v4752, 0.0
      %v5009 = vmax.f32 %v4753, 0.0
      %v5010 = vmax.f32 %v4754, 0.0
      %v5011 = vmax.f32 %v4755, 0.0
      %v5012 = vmax.f32 %v4756, 0.0
      %v5013 = vmax.f32 %v4757, 0.0
      %v5014 = vmax.f32 %v4758, 0.0
      %v5015 = vmax.f32 %v4759, 0.0
      %v5016 = vmax.f32 %v4760, 0.0
      %v5017 = vmax.f32 %v4761, 0.0
      %v5018 = vmax.f32 %v4762, 0.0
      %v5019 = vmax.f32 %v4763, 0.0
      %v5020 = vmax.f32 %v4764, 0.0
      %v5021 = vmax.f32 %v4765, 0.0
      %v5022 = vmax.f32 %v4766, 0.0
      %v5023 = vmax.f32 %v4767, 0.0
      %v5024 = vmax.f32 %v4768, 0.0
      %v5025 = vmax.f32 %v4769, 0.0
      %v5026 = vmax.f32 %v4770, 0.0
      %v5027 = vmax.f32 %v4771, 0.0
      %v5028 = vmax.f32 %v4772, 0.0
      %v5029 = vmax.f32 %v4773, 0.0
      %v5030 = vmax.f32 %v4774, 0.0
      %v5031 = vmax.f32 %v4775, 0.0
      %v5032 = vmax.f32 %v4776, 0.0
      %v5033 = vmax.f32 %v4777, 0.0
      %v5034 = vmax.f32 %v4778, 0.0
      %v5035 = vmax.f32 %v4779, 0.0
      %v5036 = vmax.f32 %v4780, 0.0
      %v5037 = vmax.f32 %v4781, 0.0
      %v5038 = vmax.f32 %v4782, 0.0
      %v5039 = vmax.f32 %v4783, 0.0
      %v5040 = vmax.f32 %v4784, 0.0
      %v5041 = vmax.f32 %v4785, 0.0
      %v5042 = vmax.f32 %v4786, 0.0
      %v5043 = vmax.f32 %v4787, 0.0
      %v5044 = vmax.f32 %v4788, 0.0
      %v5045 = vmax.f32 %v4789, 0.0
      %v5046 = vmax.f32 %v4790, 0.0
      %v5047 = vmax.f32 %v4791, 0.0
      %v5048 = vmax.f32 %v4792, 0.0
      %v5049 = vmax.f32 %v4793, 0.0
      %v5050 = vmax.f32 %v4794, 0.0
      %v5051 = vmax.f32 %v4795, 0.0
      %v5052 = vmax.f32 %v4796, 0.0
      %v5053 = vmax.f32 %v4797, 0.0
      %v5054 = vmax.f32 %v4798, 0.0
      %v5055 = vmax.f32 %v4799, 0.0
      %v5056 = vmax.f32 %v4800, 0.0
      %v5057 = vmax.f32 %v4801, 0.0
      %v5058 = vmax.f32 %v4802, 0.0
      %v5059 = vmax.f32 %v4803, 0.0
      %v5060 = vmax.f32 %v4804, 0.0
      %v5061 = vmax.f32 %v4805, 0.0
      %v5062 = vmax.f32 %v4806, 0.0
      %v5063 = vmax.f32 %v4807, 0.0
      %v5064 = vmax.f32 %v4808, 0.0
      %v5065 = vmax.f32 %v4809, 0.0
      %v5066 = vmax.f32 %v4810, 0.0
      %v5067 = vmax.f32 %v4811, 0.0
      %v5068 = vmax.f32 %v4812, 0.0
      %v5069 = vmax.f32 %v4813, 0.0
      %v5070 = vmax.f32 %v4814, 0.0
      %v5071 = vmax.f32 %v4815, 0.0
      %v5072 = vmax.f32 %v4816, 0.0
      %v5073 = vmax.f32 %v4817, 0.0
      %v5074 = vmax.f32 %v4818, 0.0
      %v5075 = vmax.f32 %v4819, 0.0
      %v5076 = vmax.f32 %v4820, 0.0
      %v5077 = vmax.f32 %v4821, 0.0
      %v5078 = vmax.f32 %v4822, 0.0
      %v5079 = vmax.f32 %v4823, 0.0
      %v5080 = vmax.f32 %v4824, 0.0
      %v5081 = vmax.f32 %v4825, 0.0
      %v5082 = vmax.f32 %v4826, 0.0
      %v5083 = vmax.f32 %v4827, 0.0
      %v5084 = vmax.f32 %v4828, 0.0
      %v5085 = vmax.f32 %v4829, 0.0
      %v5086 = vmax.f32 %v4830, 0.0
      %v5087 = vmax.f32 %v4831, 0.0
      %v5088 = vmax.f32 %v4832, 0.0
      %v5089 = vmax.f32 %v4833, 0.0
      %v5090 = vmax.f32 %v4834, 0.0
      %v5091 = vmax.f32 %v4835, 0.0
      %v5092 = vmax.f32 %v4836, 0.0
      %v5093 = vmax.f32 %v4837, 0.0
      %v5094 = vmax.f32 %v4838, 0.0
      %v5095 = vmax.f32 %v4839, 0.0
      %v5096 = vmax.f32 %v4840, 0.0
      %v5097 = vmax.f32 %v4841, 0.0
      %v5098 = vmax.f32 %v4842, 0.0
      %v5099 = vmax.f32 %v4843, 0.0
      %v5100 = vmax.f32 %v4844, 0.0
      %v5101 = vmax.f32 %v4845, 0.0
      %v5102 = vmax.f32 %v4846, 0.0
      %v5103 = vmax.f32 %v4847, 0.0
      %v5104 = vmax.f32 %v4848, 0.0
      %v5105 = vmax.f32 %v4849, 0.0
      %v5106 = vmax.f32 %v4850, 0.0
      %v5107 = vmax.f32 %v4851, 0.0
      %v5108 = vmax.f32 %v4852, 0.0
      %v5109 = vmax.f32 %v4853, 0.0
      %v5110 = vmax.f32 %v4854, 0.0
      %v5111 = vmax.f32 %v4855, 0.0
      %v5112 = vmax.f32 %v4856, 0.0
      %v5113 = vmax.f32 %v4857, 0.0
      %v5114 = vmax.f32 %v4858, 0.0
      %v5115 = vmax.f32 %v4859, 0.0
      %v5116 = vmax.f32 %v4860, 0.0
      %v5117 = vmax.f32 %v4861, 0.0
      %v5118 = vmax.f32 %v4862, 0.0
      %v5119 = vmax.f32 %v4863, 0.0
      %v5120 = vmax.f32 %v4864, 0.0
      %v5121 = vmax.f32 %v4865, 0.0
      %v5122 = vmax.f32 %v4866, 0.0
      %v5123 = vmax.f32 %v4867, 0.0
      %v5124 = vmax.f32 %v4868, 0.0
      %v5125 = vmax.f32 %v4869, 0.0
      %v5126 = vmax.f32 %v4870, 0.0
      %v5127 = vmax.f32 %v4871, 0.0
      %v5128 = vmax.f32 %v4872, 0.0
      %v5129 = vmax.f32 %v4873, 0.0
      %v5130 = vmax.f32 %v4874, 0.0
      %v5131 = vmax.f32 %v4875, 0.0
      %v5132 = vmax.f32 %v4876, 0.0
      %v5133 = vmax.f32 %v4877, 0.0
      %v5134 = vmax.f32 %v4878, 0.0
      %v5135 = vmax.f32 %v4879, 0.0
      %v5136 = vmax.f32 %v4880, 0.0
      %v5137 = vmax.f32 %v4881, 0.0
      %v5138 = vmax.f32 %v4882, 0.0
      %v5139 = vmax.f32 %v4883, 0.0
      %v5140 = vmax.f32 %v4884, 0.0
      %v5141 = vmax.f32 %v4885, 0.0
      %v5142 = vmax.f32 %v4886, 0.0
      %v5143 = vmax.f32 %v4887, 0.0
      %v5144 = vmax.f32 %v4888, 0.0
      %v5145 = vmax.f32 %v4889, 0.0
      %v5146 = vmax.f32 %v4890, 0.0
      %v5147 = vmax.f32 %v4891, 0.0
      %v5148 = vmax.f32 %v4892, 0.0
      %v5149 = vmax.f32 %v4893, 0.0
      %v5150 = vmax.f32 %v4894, 0.0
      %v5151 = vmax.f32 %v4895, 0.0
      %v5152 = vmax.f32 %v4896, 0.0
      %v5153 = vmax.f32 %v4897, 0.0
      %v5154 = vmax.f32 %v4898, 0.0
      %v5155 = vmax.f32 %v4899, 0.0
      %v5156 = vmax.f32 %v4900, 0.0
      %v5157 = vmax.f32 %v4901, 0.0
      %v5158 = vmax.f32 %v4902, 0.0
      %v5159 = vmax.f32 %v4903, 0.0
      %v5160 = vmax.f32 %v4904, 0.0
      %v5161 = vmax.f32 %v4905, 0.0
      %v5162 = vmax.f32 %v4906, 0.0
      %v5163 = vmax.f32 %v4907, 0.0
      %v5164 = vmax.f32 %v4908, 0.0
      %v5165 = vmax.f32 %v4909, 0.0
      %v5166 = vmax.f32 %v4910, 0.0
      %v5167 = vmax.f32 %v4911, 0.0
      %v5168 = vmax.f32 %v4912, 0.0
      %v5169 = vmax.f32 %v4913, 0.0
      %v5170 = vmax.f32 %v4914, 0.0
      %v5171 = vmax.f32 %v4915, 0.0
      %v5172 = vmax.f32 %v4916, 0.0
      %v5173 = vmax.f32 %v4917, 0.0
      %v5174 = vsel %vm2588, %v4918, 0.0
      %v5175 = vsel %vm2588, %v4919, 0.0
      %v5176 = vadd.f32 %v5174, %v5175
      %v5177 = vsel %vm2588, %v4920, 0.0
      %v5178 = vadd.f32 %v5176, %v5177
      %v5179 = vsel %vm2588, %v4921, 0.0
      %v5180 = vadd.f32 %v5178, %v5179
      %v5181 = vsel %vm2588, %v4922, 0.0
      %v5182 = vadd.f32 %v5180, %v5181
      %v5183 = vsel %vm2588, %v4923, 0.0
      %v5184 = vadd.f32 %v5182, %v5183
      %v5185 = vsel %vm2588, %v4924, 0.0
      %v5186 = vadd.f32 %v5184, %v5185
      %v5187 = vsel %vm2588, %v4925, 0.0
      %v5188 = vadd.f32 %v5186, %v5187
      %v5189 = vsel %vm2588, %v4926, 0.0
      %v5190 = vadd.f32 %v5188, %v5189
      %v5191 = vsel %vm2588, %v4927, 0.0
      %v5192 = vadd.f32 %v5190, %v5191
      %v5193 = vsel %vm2588, %v4928, 0.0
      %v5194 = vadd.f32 %v5192, %v5193
      %v5195 = vsel %vm2588, %v4929, 0.0
      %v5196 = vadd.f32 %v5194, %v5195
      %v5197 = vsel %vm2588, %v4930, 0.0
      %v5198 = vadd.f32 %v5196, %v5197
      %v5199 = vsel %vm2588, %v4931, 0.0
      %v5200 = vadd.f32 %v5198, %v5199
      %v5201 = vsel %vm2588, %v4932, 0.0
      %v5202 = vadd.f32 %v5200, %v5201
      %v5203 = vsel %vm2588, %v4933, 0.0
      %v5204 = vadd.f32 %v5202, %v5203
      %v5205 = vsel %vm2588, %v4934, 0.0
      %v5206 = vadd.f32 %v5204, %v5205
      %v5207 = vsel %vm2588, %v4935, 0.0
      %v5208 = vadd.f32 %v5206, %v5207
      %v5209 = vsel %vm2588, %v4936, 0.0
      %v5210 = vadd.f32 %v5208, %v5209
      %v5211 = vsel %vm2588, %v4937, 0.0
      %v5212 = vadd.f32 %v5210, %v5211
      %v5213 = vsel %vm2588, %v4938, 0.0
      %v5214 = vadd.f32 %v5212, %v5213
      %v5215 = vsel %vm2588, %v4939, 0.0
      %v5216 = vadd.f32 %v5214, %v5215
      %v5217 = vsel %vm2588, %v4940, 0.0
      %v5218 = vadd.f32 %v5216, %v5217
      %v5219 = vsel %vm2588, %v4941, 0.0
      %v5220 = vadd.f32 %v5218, %v5219
      %v5221 = vsel %vm2588, %v4942, 0.0
      %v5222 = vadd.f32 %v5220, %v5221
      %v5223 = vsel %vm2588, %v4943, 0.0
      %v5224 = vadd.f32 %v5222, %v5223
      %v5225 = vsel %vm2588, %v4944, 0.0
      %v5226 = vadd.f32 %v5224, %v5225
      %v5227 = vsel %vm2588, %v4945, 0.0
      %v5228 = vadd.f32 %v5226, %v5227
      %v5229 = vsel %vm2588, %v4946, 0.0
      %v5230 = vadd.f32 %v5228, %v5229
      %v5231 = vsel %vm2588, %v4947, 0.0
      %v5232 = vadd.f32 %v5230, %v5231
      %v5233 = vsel %vm2588, %v4948, 0.0
      %v5234 = vadd.f32 %v5232, %v5233
      %v5235 = vsel %vm2588, %v4949, 0.0
      %v5236 = vadd.f32 %v5234, %v5235
      %v5237 = vrot.slane %v5236, 4
      %v5238 = vadd.f32 %v5236, %v5237
      %v5239 = vrot.slane %v5238, 2
      %v5240 = vadd.f32 %v5238, %v5239
      %v5241 = vrot.slane %v5240, 1
      %v5242 = vadd.f32 %v5240, %v5241
      %v5243 = vsel %vm2588, %v4950, 0.0
      %v5244 = vsel %vm2588, %v4951, 0.0
      %v5245 = vadd.f32 %v5243, %v5244
      %v5246 = vsel %vm2588, %v4952, 0.0
      %v5247 = vadd.f32 %v5245, %v5246
      %v5248 = vsel %vm2588, %v4953, 0.0
      %v5249 = vadd.f32 %v5247, %v5248
      %v5250 = vsel %vm2588, %v4954, 0.0
      %v5251 = vadd.f32 %v5249, %v5250
      %v5252 = vsel %vm2588, %v4955, 0.0
      %v5253 = vadd.f32 %v5251, %v5252
      %v5254 = vsel %vm2588, %v4956, 0.0
      %v5255 = vadd.f32 %v5253, %v5254
      %v5256 = vsel %vm2588, %v4957, 0.0
      %v5257 = vadd.f32 %v5255, %v5256
      %v5258 = vsel %vm2588, %v4958, 0.0
      %v5259 = vadd.f32 %v5257, %v5258
      %v5260 = vsel %vm2588, %v4959, 0.0
      %v5261 = vadd.f32 %v5259, %v5260
      %v5262 = vsel %vm2588, %v4960, 0.0
      %v5263 = vadd.f32 %v5261, %v5262
      %v5264 = vsel %vm2588, %v4961, 0.0
      %v5265 = vadd.f32 %v5263, %v5264
      %v5266 = vsel %vm2588, %v4962, 0.0
      %v5267 = vadd.f32 %v5265, %v5266
      %v5268 = vsel %vm2588, %v4963, 0.0
      %v5269 = vadd.f32 %v5267, %v5268
      %v5270 = vsel %vm2588, %v4964, 0.0
      %v5271 = vadd.f32 %v5269, %v5270
      %v5272 = vsel %vm2588, %v4965, 0.0
      %v5273 = vadd.f32 %v5271, %v5272
      %v5274 = vsel %vm2588, %v4966, 0.0
      %v5275 = vadd.f32 %v5273, %v5274
      %v5276 = vsel %vm2588, %v4967, 0.0
      %v5277 = vadd.f32 %v5275, %v5276
      %v5278 = vsel %vm2588, %v4968, 0.0
      %v5279 = vadd.f32 %v5277, %v5278
      %v5280 = vsel %vm2588, %v4969, 0.0
      %v5281 = vadd.f32 %v5279, %v5280
      %v5282 = vsel %vm2588, %v4970, 0.0
      %v5283 = vadd.f32 %v5281, %v5282
      %v5284 = vsel %vm2588, %v4971, 0.0
      %v5285 = vadd.f32 %v5283, %v5284
      %v5286 = vsel %vm2588, %v4972, 0.0
      %v5287 = vadd.f32 %v5285, %v5286
      %v5288 = vsel %vm2588, %v4973, 0.0
      %v5289 = vadd.f32 %v5287, %v5288
      %v5290 = vsel %vm2588, %v4974, 0.0
      %v5291 = vadd.f32 %v5289, %v5290
      %v5292 = vsel %vm2588, %v4975, 0.0
      %v5293 = vadd.f32 %v5291, %v5292
      %v5294 = vsel %vm2588, %v4976, 0.0
      %v5295 = vadd.f32 %v5293, %v5294
      %v5296 = vsel %vm2588, %v4977, 0.0
      %v5297 = vadd.f32 %v5295, %v5296
      %v5298 = vsel %vm2588, %v4978, 0.0
      %v5299 = vadd.f32 %v5297, %v5298
      %v5300 = vsel %vm2588, %v4979, 0.0
      %v5301 = vadd.f32 %v5299, %v5300
      %v5302 = vsel %vm2588, %v4980, 0.0
      %v5303 = vadd.f32 %v5301, %v5302
      %v5304 = vsel %vm2588, %v4981, 0.0
      %v5305 = vadd.f32 %v5303, %v5304
      %v5306 = vrot.slane %v5305, 4
      %v5307 = vadd.f32 %v5305, %v5306
      %v5308 = vrot.slane %v5307, 2
      %v5309 = vadd.f32 %v5307, %v5308
      %v5310 = vrot.slane %v5309, 1
      %v5311 = vadd.f32 %v5309, %v5310
      %v5312 = vsel %vm2588, %v4982, 0.0
      %v5313 = vsel %vm2588, %v4983, 0.0
      %v5314 = vadd.f32 %v5312, %v5313
      %v5315 = vsel %vm2588, %v4984, 0.0
      %v5316 = vadd.f32 %v5314, %v5315
      %v5317 = vsel %vm2588, %v4985, 0.0
      %v5318 = vadd.f32 %v5316, %v5317
      %v5319 = vsel %vm2588, %v4986, 0.0
      %v5320 = vadd.f32 %v5318, %v5319
      %v5321 = vsel %vm2588, %v4987, 0.0
      %v5322 = vadd.f32 %v5320, %v5321
      %v5323 = vsel %vm2588, %v4988, 0.0
      %v5324 = vadd.f32 %v5322, %v5323
      %v5325 = vsel %vm2588, %v4989, 0.0
      %v5326 = vadd.f32 %v5324, %v5325
      %v5327 = vsel %vm2588, %v4990, 0.0
      %v5328 = vadd.f32 %v5326, %v5327
      %v5329 = vsel %vm2588, %v4991, 0.0
      %v5330 = vadd.f32 %v5328, %v5329
      %v5331 = vsel %vm2588, %v4992, 0.0
      %v5332 = vadd.f32 %v5330, %v5331
      %v5333 = vsel %vm2588, %v4993, 0.0
      %v5334 = vadd.f32 %v5332, %v5333
      %v5335 = vsel %vm2588, %v4994, 0.0
      %v5336 = vadd.f32 %v5334, %v5335
      %v5337 = vsel %vm2588, %v4995, 0.0
      %v5338 = vadd.f32 %v5336, %v5337
      %v5339 = vsel %vm2588, %v4996, 0.0
      %v5340 = vadd.f32 %v5338, %v5339
      %v5341 = vsel %vm2588, %v4997, 0.0
      %v5342 = vadd.f32 %v5340, %v5341
      %v5343 = vsel %vm2588, %v4998, 0.0
      %v5344 = vadd.f32 %v5342, %v5343
      %v5345 = vsel %vm2588, %v4999, 0.0
      %v5346 = vadd.f32 %v5344, %v5345
      %v5347 = vsel %vm2588, %v5000, 0.0
      %v5348 = vadd.f32 %v5346, %v5347
      %v5349 = vsel %vm2588, %v5001, 0.0
      %v5350 = vadd.f32 %v5348, %v5349
      %v5351 = vsel %vm2588, %v5002, 0.0
      %v5352 = vadd.f32 %v5350, %v5351
      %v5353 = vsel %vm2588, %v5003, 0.0
      %v5354 = vadd.f32 %v5352, %v5353
      %v5355 = vsel %vm2588, %v5004, 0.0
      %v5356 = vadd.f32 %v5354, %v5355
      %v5357 = vsel %vm2588, %v5005, 0.0
      %v5358 = vadd.f32 %v5356, %v5357
      %v5359 = vsel %vm2588, %v5006, 0.0
      %v5360 = vadd.f32 %v5358, %v5359
      %v5361 = vsel %vm2588, %v5007, 0.0
      %v5362 = vadd.f32 %v5360, %v5361
      %v5363 = vsel %vm2588, %v5008, 0.0
      %v5364 = vadd.f32 %v5362, %v5363
      %v5365 = vsel %vm2588, %v5009, 0.0
      %v5366 = vadd.f32 %v5364, %v5365
      %v5367 = vsel %vm2588, %v5010, 0.0
      %v5368 = vadd.f32 %v5366, %v5367
      %v5369 = vsel %vm2588, %v5011, 0.0
      %v5370 = vadd.f32 %v5368, %v5369
      %v5371 = vsel %vm2588, %v5012, 0.0
      %v5372 = vadd.f32 %v5370, %v5371
      %v5373 = vsel %vm2588, %v5013, 0.0
      %v5374 = vadd.f32 %v5372, %v5373
      %v5375 = vrot.slane %v5374, 4
      %v5376 = vadd.f32 %v5374, %v5375
      %v5377 = vrot.slane %v5376, 2
      %v5378 = vadd.f32 %v5376, %v5377
      %v5379 = vrot.slane %v5378, 1
      %v5380 = vadd.f32 %v5378, %v5379
      %v5381 = vsel %vm2588, %v5014, 0.0
      %v5382 = vsel %vm2588, %v5015, 0.0
      %v5383 = vadd.f32 %v5381, %v5382
      %v5384 = vsel %vm2588, %v5016, 0.0
      %v5385 = vadd.f32 %v5383, %v5384
      %v5386 = vsel %vm2588, %v5017, 0.0
      %v5387 = vadd.f32 %v5385, %v5386
      %v5388 = vsel %vm2588, %v5018, 0.0
      %v5389 = vadd.f32 %v5387, %v5388
      %v5390 = vsel %vm2588, %v5019, 0.0
      %v5391 = vadd.f32 %v5389, %v5390
      %v5392 = vsel %vm2588, %v5020, 0.0
      %v5393 = vadd.f32 %v5391, %v5392
      %v5394 = vsel %vm2588, %v5021, 0.0
      %v5395 = vadd.f32 %v5393, %v5394
      %v5396 = vsel %vm2588, %v5022, 0.0
      %v5397 = vadd.f32 %v5395, %v5396
      %v5398 = vsel %vm2588, %v5023, 0.0
      %v5399 = vadd.f32 %v5397, %v5398
      %v5400 = vsel %vm2588, %v5024, 0.0
      %v5401 = vadd.f32 %v5399, %v5400
      %v5402 = vsel %vm2588, %v5025, 0.0
      %v5403 = vadd.f32 %v5401, %v5402
      %v5404 = vsel %vm2588, %v5026, 0.0
      %v5405 = vadd.f32 %v5403, %v5404
      %v5406 = vsel %vm2588, %v5027, 0.0
      %v5407 = vadd.f32 %v5405, %v5406
      %v5408 = vsel %vm2588, %v5028, 0.0
      %v5409 = vadd.f32 %v5407, %v5408
      %v5410 = vsel %vm2588, %v5029, 0.0
      %v5411 = vadd.f32 %v5409, %v5410
      %v5412 = vsel %vm2588, %v5030, 0.0
      %v5413 = vadd.f32 %v5411, %v5412
      %v5414 = vsel %vm2588, %v5031, 0.0
      %v5415 = vadd.f32 %v5413, %v5414
      %v5416 = vsel %vm2588, %v5032, 0.0
      %v5417 = vadd.f32 %v5415, %v5416
      %v5418 = vsel %vm2588, %v5033, 0.0
      %v5419 = vadd.f32 %v5417, %v5418
      %v5420 = vsel %vm2588, %v5034, 0.0
      %v5421 = vadd.f32 %v5419, %v5420
      %v5422 = vsel %vm2588, %v5035, 0.0
      %v5423 = vadd.f32 %v5421, %v5422
      %v5424 = vsel %vm2588, %v5036, 0.0
      %v5425 = vadd.f32 %v5423, %v5424
      %v5426 = vsel %vm2588, %v5037, 0.0
      %v5427 = vadd.f32 %v5425, %v5426
      %v5428 = vsel %vm2588, %v5038, 0.0
      %v5429 = vadd.f32 %v5427, %v5428
      %v5430 = vsel %vm2588, %v5039, 0.0
      %v5431 = vadd.f32 %v5429, %v5430
      %v5432 = vsel %vm2588, %v5040, 0.0
      %v5433 = vadd.f32 %v5431, %v5432
      %v5434 = vsel %vm2588, %v5041, 0.0
      %v5435 = vadd.f32 %v5433, %v5434
      %v5436 = vsel %vm2588, %v5042, 0.0
      %v5437 = vadd.f32 %v5435, %v5436
      %v5438 = vsel %vm2588, %v5043, 0.0
      %v5439 = vadd.f32 %v5437, %v5438
      %v5440 = vsel %vm2588, %v5044, 0.0
      %v5441 = vadd.f32 %v5439, %v5440
      %v5442 = vsel %vm2588, %v5045, 0.0
      %v5443 = vadd.f32 %v5441, %v5442
      %v5444 = vrot.slane %v5443, 4
      %v5445 = vadd.f32 %v5443, %v5444
      %v5446 = vrot.slane %v5445, 2
      %v5447 = vadd.f32 %v5445, %v5446
      %v5448 = vrot.slane %v5447, 1
      %v5449 = vadd.f32 %v5447, %v5448
      %v5450 = vsel %vm2588, %v5046, 0.0
      %v5451 = vsel %vm2588, %v5047, 0.0
      %v5452 = vadd.f32 %v5450, %v5451
      %v5453 = vsel %vm2588, %v5048, 0.0
      %v5454 = vadd.f32 %v5452, %v5453
      %v5455 = vsel %vm2588, %v5049, 0.0
      %v5456 = vadd.f32 %v5454, %v5455
      %v5457 = vsel %vm2588, %v5050, 0.0
      %v5458 = vadd.f32 %v5456, %v5457
      %v5459 = vsel %vm2588, %v5051, 0.0
      %v5460 = vadd.f32 %v5458, %v5459
      %v5461 = vsel %vm2588, %v5052, 0.0
      %v5462 = vadd.f32 %v5460, %v5461
      %v5463 = vsel %vm2588, %v5053, 0.0
      %v5464 = vadd.f32 %v5462, %v5463
      %v5465 = vsel %vm2588, %v5054, 0.0
      %v5466 = vadd.f32 %v5464, %v5465
      %v5467 = vsel %vm2588, %v5055, 0.0
      %v5468 = vadd.f32 %v5466, %v5467
      %v5469 = vsel %vm2588, %v5056, 0.0
      %v5470 = vadd.f32 %v5468, %v5469
      %v5471 = vsel %vm2588, %v5057, 0.0
      %v5472 = vadd.f32 %v5470, %v5471
      %v5473 = vsel %vm2588, %v5058, 0.0
      %v5474 = vadd.f32 %v5472, %v5473
      %v5475 = vsel %vm2588, %v5059, 0.0
      %v5476 = vadd.f32 %v5474, %v5475
      %v5477 = vsel %vm2588, %v5060, 0.0
      %v5478 = vadd.f32 %v5476, %v5477
      %v5479 = vsel %vm2588, %v5061, 0.0
      %v5480 = vadd.f32 %v5478, %v5479
      %v5481 = vsel %vm2588, %v5062, 0.0
      %v5482 = vadd.f32 %v5480, %v5481
      %v5483 = vsel %vm2588, %v5063, 0.0
      %v5484 = vadd.f32 %v5482, %v5483
      %v5485 = vsel %vm2588, %v5064, 0.0
      %v5486 = vadd.f32 %v5484, %v5485
      %v5487 = vsel %vm2588, %v5065, 0.0
      %v5488 = vadd.f32 %v5486, %v5487
      %v5489 = vsel %vm2588, %v5066, 0.0
      %v5490 = vadd.f32 %v5488, %v5489
      %v5491 = vsel %vm2588, %v5067, 0.0
      %v5492 = vadd.f32 %v5490, %v5491
      %v5493 = vsel %vm2588, %v5068, 0.0
      %v5494 = vadd.f32 %v5492, %v5493
      %v5495 = vsel %vm2588, %v5069, 0.0
      %v5496 = vadd.f32 %v5494, %v5495
      %v5497 = vsel %vm2588, %v5070, 0.0
      %v5498 = vadd.f32 %v5496, %v5497
      %v5499 = vsel %vm2588, %v5071, 0.0
      %v5500 = vadd.f32 %v5498, %v5499
      %v5501 = vsel %vm2588, %v5072, 0.0
      %v5502 = vadd.f32 %v5500, %v5501
      %v5503 = vsel %vm2588, %v5073, 0.0
      %v5504 = vadd.f32 %v5502, %v5503
      %v5505 = vsel %vm2588, %v5074, 0.0
      %v5506 = vadd.f32 %v5504, %v5505
      %v5507 = vsel %vm2588, %v5075, 0.0
      %v5508 = vadd.f32 %v5506, %v5507
      %v5509 = vsel %vm2588, %v5076, 0.0
      %v5510 = vadd.f32 %v5508, %v5509
      %v5511 = vsel %vm2588, %v5077, 0.0
      %v5512 = vadd.f32 %v5510, %v5511
      %v5513 = vrot.slane %v5512, 4
      %v5514 = vadd.f32 %v5512, %v5513
      %v5515 = vrot.slane %v5514, 2
      %v5516 = vadd.f32 %v5514, %v5515
      %v5517 = vrot.slane %v5516, 1
      %v5518 = vadd.f32 %v5516, %v5517
      %v5519 = vsel %vm2588, %v5078, 0.0
      %v5520 = vsel %vm2588, %v5079, 0.0
      %v5521 = vadd.f32 %v5519, %v5520
      %v5522 = vsel %vm2588, %v5080, 0.0
      %v5523 = vadd.f32 %v5521, %v5522
      %v5524 = vsel %vm2588, %v5081, 0.0
      %v5525 = vadd.f32 %v5523, %v5524
      %v5526 = vsel %vm2588, %v5082, 0.0
      %v5527 = vadd.f32 %v5525, %v5526
      %v5528 = vsel %vm2588, %v5083, 0.0
      %v5529 = vadd.f32 %v5527, %v5528
      %v5530 = vsel %vm2588, %v5084, 0.0
      %v5531 = vadd.f32 %v5529, %v5530
      %v5532 = vsel %vm2588, %v5085, 0.0
      %v5533 = vadd.f32 %v5531, %v5532
      %v5534 = vsel %vm2588, %v5086, 0.0
      %v5535 = vadd.f32 %v5533, %v5534
      %v5536 = vsel %vm2588, %v5087, 0.0
      %v5537 = vadd.f32 %v5535, %v5536
      %v5538 = vsel %vm2588, %v5088, 0.0
      %v5539 = vadd.f32 %v5537, %v5538
      %v5540 = vsel %vm2588, %v5089, 0.0
      %v5541 = vadd.f32 %v5539, %v5540
      %v5542 = vsel %vm2588, %v5090, 0.0
      %v5543 = vadd.f32 %v5541, %v5542
      %v5544 = vsel %vm2588, %v5091, 0.0
      %v5545 = vadd.f32 %v5543, %v5544
      %v5546 = vsel %vm2588, %v5092, 0.0
      %v5547 = vadd.f32 %v5545, %v5546
      %v5548 = vsel %vm2588, %v5093, 0.0
      %v5549 = vadd.f32 %v5547, %v5548
      %v5550 = vsel %vm2588, %v5094, 0.0
      %v5551 = vadd.f32 %v5549, %v5550
      %v5552 = vsel %vm2588, %v5095, 0.0
      %v5553 = vadd.f32 %v5551, %v5552
      %v5554 = vsel %vm2588, %v5096, 0.0
      %v5555 = vadd.f32 %v5553, %v5554
      %v5556 = vsel %vm2588, %v5097, 0.0
      %v5557 = vadd.f32 %v5555, %v5556
      %v5558 = vsel %vm2588, %v5098, 0.0
      %v5559 = vadd.f32 %v5557, %v5558
      %v5560 = vsel %vm2588, %v5099, 0.0
      %v5561 = vadd.f32 %v5559, %v5560
      %v5562 = vsel %vm2588, %v5100, 0.0
      %v5563 = vadd.f32 %v5561, %v5562
      %v5564 = vsel %vm2588, %v5101, 0.0
      %v5565 = vadd.f32 %v5563, %v5564
      %v5566 = vsel %vm2588, %v5102, 0.0
      %v5567 = vadd.f32 %v5565, %v5566
      %v5568 = vsel %vm2588, %v5103, 0.0
      %v5569 = vadd.f32 %v5567, %v5568
      %v5570 = vsel %vm2588, %v5104, 0.0
      %v5571 = vadd.f32 %v5569, %v5570
      %v5572 = vsel %vm2588, %v5105, 0.0
      %v5573 = vadd.f32 %v5571, %v5572
      %v5574 = vsel %vm2588, %v5106, 0.0
      %v5575 = vadd.f32 %v5573, %v5574
      %v5576 = vsel %vm2588, %v5107, 0.0
      %v5577 = vadd.f32 %v5575, %v5576
      %v5578 = vsel %vm2588, %v5108, 0.0
      %v5579 = vadd.f32 %v5577, %v5578
      %v5580 = vsel %vm2588, %v5109, 0.0
      %v5581 = vadd.f32 %v5579, %v5580
      %v5582 = vrot.slane %v5581, 4
      %v5583 = vadd.f32 %v5581, %v5582
      %v5584 = vrot.slane %v5583, 2
      %v5585 = vadd.f32 %v5583, %v5584
      %v5586 = vrot.slane %v5585, 1
      %v5587 = vadd.f32 %v5585, %v5586
      %v5588 = vsel %vm2588, %v5110, 0.0
      %v5589 = vsel %vm2588, %v5111, 0.0
      %v5590 = vadd.f32 %v5588, %v5589
      %v5591 = vsel %vm2588, %v5112, 0.0
      %v5592 = vadd.f32 %v5590, %v5591
      %v5593 = vsel %vm2588, %v5113, 0.0
      %v5594 = vadd.f32 %v5592, %v5593
      %v5595 = vsel %vm2588, %v5114, 0.0
      %v5596 = vadd.f32 %v5594, %v5595
      %v5597 = vsel %vm2588, %v5115, 0.0
      %v5598 = vadd.f32 %v5596, %v5597
      %v5599 = vsel %vm2588, %v5116, 0.0
      %v5600 = vadd.f32 %v5598, %v5599
      %v5601 = vsel %vm2588, %v5117, 0.0
      %v5602 = vadd.f32 %v5600, %v5601
      %v5603 = vsel %vm2588, %v5118, 0.0
      %v5604 = vadd.f32 %v5602, %v5603
      %v5605 = vsel %vm2588, %v5119, 0.0
      %v5606 = vadd.f32 %v5604, %v5605
      %v5607 = vsel %vm2588, %v5120, 0.0
      %v5608 = vadd.f32 %v5606, %v5607
      %v5609 = vsel %vm2588, %v5121, 0.0
      %v5610 = vadd.f32 %v5608, %v5609
      %v5611 = vsel %vm2588, %v5122, 0.0
      %v5612 = vadd.f32 %v5610, %v5611
      %v5613 = vsel %vm2588, %v5123, 0.0
      %v5614 = vadd.f32 %v5612, %v5613
      %v5615 = vsel %vm2588, %v5124, 0.0
      %v5616 = vadd.f32 %v5614, %v5615
      %v5617 = vsel %vm2588, %v5125, 0.0
      %v5618 = vadd.f32 %v5616, %v5617
      %v5619 = vsel %vm2588, %v5126, 0.0
      %v5620 = vadd.f32 %v5618, %v5619
      %v5621 = vsel %vm2588, %v5127, 0.0
      %v5622 = vadd.f32 %v5620, %v5621
      %v5623 = vsel %vm2588, %v5128, 0.0
      %v5624 = vadd.f32 %v5622, %v5623
      %v5625 = vsel %vm2588, %v5129, 0.0
      %v5626 = vadd.f32 %v5624, %v5625
      %v5627 = vsel %vm2588, %v5130, 0.0
      %v5628 = vadd.f32 %v5626, %v5627
      %v5629 = vsel %vm2588, %v5131, 0.0
      %v5630 = vadd.f32 %v5628, %v5629
      %v5631 = vsel %vm2588, %v5132, 0.0
      %v5632 = vadd.f32 %v5630, %v5631
      %v5633 = vsel %vm2588, %v5133, 0.0
      %v5634 = vadd.f32 %v5632, %v5633
      %v5635 = vsel %vm2588, %v5134, 0.0
      %v5636 = vadd.f32 %v5634, %v5635
      %v5637 = vsel %vm2588, %v5135, 0.0
      %v5638 = vadd.f32 %v5636, %v5637
      %v5639 = vsel %vm2588, %v5136, 0.0
      %v5640 = vadd.f32 %v5638, %v5639
      %v5641 = vsel %vm2588, %v5137, 0.0
      %v5642 = vadd.f32 %v5640, %v5641
      %v5643 = vsel %vm2588, %v5138, 0.0
      %v5644 = vadd.f32 %v5642, %v5643
      %v5645 = vsel %vm2588, %v5139, 0.0
      %v5646 = vadd.f32 %v5644, %v5645
      %v5647 = vsel %vm2588, %v5140, 0.0
      %v5648 = vadd.f32 %v5646, %v5647
      %v5649 = vsel %vm2588, %v5141, 0.0
      %v5650 = vadd.f32 %v5648, %v5649
      %v5651 = vrot.slane %v5650, 4
      %v5652 = vadd.f32 %v5650, %v5651
      %v5653 = vrot.slane %v5652, 2
      %v5654 = vadd.f32 %v5652, %v5653
      %v5655 = vrot.slane %v5654, 1
      %v5656 = vadd.f32 %v5654, %v5655
      %v5657 = vsel %vm2588, %v5142, 0.0
      %v5658 = vsel %vm2588, %v5143, 0.0
      %v5659 = vadd.f32 %v5657, %v5658
      %v5660 = vsel %vm2588, %v5144, 0.0
      %v5661 = vadd.f32 %v5659, %v5660
      %v5662 = vsel %vm2588, %v5145, 0.0
      %v5663 = vadd.f32 %v5661, %v5662
      %v5664 = vsel %vm2588, %v5146, 0.0
      %v5665 = vadd.f32 %v5663, %v5664
      %v5666 = vsel %vm2588, %v5147, 0.0
      %v5667 = vadd.f32 %v5665, %v5666
      %v5668 = vsel %vm2588, %v5148, 0.0
      %v5669 = vadd.f32 %v5667, %v5668
      %v5670 = vsel %vm2588, %v5149, 0.0
      %v5671 = vadd.f32 %v5669, %v5670
      %v5672 = vsel %vm2588, %v5150, 0.0
      %v5673 = vadd.f32 %v5671, %v5672
      %v5674 = vsel %vm2588, %v5151, 0.0
      %v5675 = vadd.f32 %v5673, %v5674
      %v5676 = vsel %vm2588, %v5152, 0.0
      %v5677 = vadd.f32 %v5675, %v5676
      %v5678 = vsel %vm2588, %v5153, 0.0
      %v5679 = vadd.f32 %v5677, %v5678
      %v5680 = vsel %vm2588, %v5154, 0.0
      %v5681 = vadd.f32 %v5679, %v5680
      %v5682 = vsel %vm2588, %v5155, 0.0
      %v5683 = vadd.f32 %v5681, %v5682
      %v5684 = vsel %vm2588, %v5156, 0.0
      %v5685 = vadd.f32 %v5683, %v5684
      %v5686 = vsel %vm2588, %v5157, 0.0
      %v5687 = vadd.f32 %v5685, %v5686
      %v5688 = vsel %vm2588, %v5158, 0.0
      %v5689 = vadd.f32 %v5687, %v5688
      %v5690 = vsel %vm2588, %v5159, 0.0
      %v5691 = vadd.f32 %v5689, %v5690
      %v5692 = vsel %vm2588, %v5160, 0.0
      %v5693 = vadd.f32 %v5691, %v5692
      %v5694 = vsel %vm2588, %v5161, 0.0
      %v5695 = vadd.f32 %v5693, %v5694
      %v5696 = vsel %vm2588, %v5162, 0.0
      %v5697 = vadd.f32 %v5695, %v5696
      %v5698 = vsel %vm2588, %v5163, 0.0
      %v5699 = vadd.f32 %v5697, %v5698
      %v5700 = vsel %vm2588, %v5164, 0.0
      %v5701 = vadd.f32 %v5699, %v5700
      %v5702 = vsel %vm2588, %v5165, 0.0
      %v5703 = vadd.f32 %v5701, %v5702
      %v5704 = vsel %vm2588, %v5166, 0.0
      %v5705 = vadd.f32 %v5703, %v5704
      %v5706 = vsel %vm2588, %v5167, 0.0
      %v5707 = vadd.f32 %v5705, %v5706
      %v5708 = vsel %vm2588, %v5168, 0.0
      %v5709 = vadd.f32 %v5707, %v5708
      %v5710 = vsel %vm2588, %v5169, 0.0
      %v5711 = vadd.f32 %v5709, %v5710
      %v5712 = vsel %vm2588, %v5170, 0.0
      %v5713 = vadd.f32 %v5711, %v5712
      %v5714 = vsel %vm2588, %v5171, 0.0
      %v5715 = vadd.f32 %v5713, %v5714
      %v5716 = vsel %vm2588, %v5172, 0.0
      %v5717 = vadd.f32 %v5715, %v5716
      %v5718 = vsel %vm2588, %v5173, 0.0
      %v5719 = vadd.f32 %v5717, %v5718
      %v5720 = vrot.slane %v5719, 4
      %v5721 = vadd.f32 %v5719, %v5720
      %v5722 = vrot.slane %v5721, 2
      %v5723 = vadd.f32 %v5721, %v5722
      %v5724 = vrot.slane %v5723, 1
      %v5725 = vadd.f32 %v5723, %v5724
      %v5726 = vrcp.pop 256.0
      %v5727 = vmul.f32 %v5242, %v5726
      %v5728 = vmul.f32 %v5311, %v5726
      %v5729 = vmul.f32 %v5380, %v5726
      %v5730 = vmul.f32 %v5449, %v5726
      %v5731 = vmul.f32 %v5518, %v5726
      %v5732 = vmul.f32 %v5587, %v5726
      %v5733 = vmul.f32 %v5656, %v5726
      %v5734 = vmul.f32 %v5725, %v5726
      %v5735 = vpack.c.bf16 %v5727, %v5727
      %v5736 = vpack.c.bf16 %v5728, %v5728
      %v5737 = vpack.c.bf16 %v5729, %v5729
      %v5738 = vpack.c.bf16 %v5730, %v5730
      %v5739 = vpack.c.bf16 %v5731, %v5731
      %v5740 = vpack.c.bf16 %v5732, %v5732
      %v5741 = vpack.c.bf16 %v5733, %v5733
      %v5742 = vpack.c.bf16 %v5734, %v5734
      %v5743 = vld [vmem:[%s2] sm:$0xf]
      %v5744 = vld [vmem:[%s2 + $0x4] sm:$0xf]
      %v5745 = vld [vmem:[%s2 + $0x8] sm:$0xf]
      %v5746 = vld [vmem:[%s2 + $0xc] sm:$0xf]
      %v5747 = vld [vmem:[%s2 + $0x10] sm:$0xf]
      %v5748 = vld [vmem:[%s2 + $0x14] sm:$0xf]
      %v5749 = vld [vmem:[%s2 + $0x18] sm:$0xf]
      %v5750 = vld [vmem:[%s2 + $0x1c] sm:$0xf]
      %v5759 = vunpack.c.l.b16 %v5735
      %v5760 = vunpack.c.l.b16 %v5736
      %v5761 = vunpack.c.l.b16 %v5737
      %v5762 = vunpack.c.l.b16 %v5738
      %v5763 = vunpack.c.l.b16 %v5739
      %v5764 = vunpack.c.l.b16 %v5740
      %v5765 = vunpack.c.l.b16 %v5741
      %v5766 = vunpack.c.l.b16 %v5742
      %vm5767 = vcmask 1041409
      %v5768 = vsel %vm5767, %v5760, %v5759
      %vm5769 = vcmask 1042434
      %v5770 = vsel %vm5769, %v5761, %v5768
      %vm5771 = vcmask 1043459
      %v5772 = vsel %vm5771, %v5762, %v5770
      %vm5773 = vcmask 1044484
      %v5774 = vsel %vm5773, %v5763, %v5772
      %vm5775 = vcmask 1045509
      %v5776 = vsel %vm5775, %v5764, %v5774
      %vm5777 = vcmask 1046534
      %v5778 = vsel %vm5777, %v5765, %v5776
      %vm5779 = vcmask 1047559
      %v5780 = vsel %vm5779, %v5766, %v5778
      %v5781 = vpack.c.b16 %v5780, %v5780
      %v5790 = vunpack.c.l.b16 %v5743
      %v5791 = vunpack.c.l.b16 %v5744
      %v5792 = vunpack.c.l.b16 %v5745
      %v5793 = vunpack.c.l.b16 %v5746
      %v5794 = vunpack.c.l.b16 %v5747
      %v5795 = vunpack.c.l.b16 %v5748
      %v5796 = vunpack.c.l.b16 %v5749
      %v5797 = vunpack.c.l.b16 %v5750
      %v5798 = vpack.c.b16 %v5791, %v5790
      %v5799 = vpack.c.b16 %v5793, %v5792
      %v5800 = vpack.c.b16 %v5795, %v5794
      %v5801 = vpack.c.b16 %v5797, %v5796
      %v5807 = vsel %vm2588, %v5781, 0
      %5809 = vmatprep.subr.bf16.mxu0 0
      %5810 = vmatpush1.bf16.msra.mxu0 %v5798
      %5811 = vmatprep.subr.bf16.mxu0 0
      %5812 = vmatpush1.bf16.msra.mxu0 %v5799
      %5813 = vmatprep.subr.bf16.mxu0 0
      %5814 = vmatpush1.bf16.msra.mxu0 %v5800
      %5815 = vmatprep.subr.bf16.mxu0 0
      %5816 = vmatpush1.bf16.msra.mxu0 %v5801
      %5817 = vmatprep.subr.bf16.mxu0 0
      %5818 = vmatpush1.bf16.msra.mxu0 0
      %5819 = vmatprep.subr.bf16.mxu0 0
      %5820 = vmatpush1.bf16.msra.mxu0 0
      %5821 = vmatprep.subr.bf16.mxu0 0
      %5822 = vmatpush1.bf16.msra.mxu0 0
      %5823 = vmatprep.subr.bf16.mxu0 0
      %5824 = vmatpush1.bf16.msra.mxu0 0
      %5825 = vmatprep.subr.bf16.mxu0 0
      %5826 = vmatpush1.bf16.msra.mxu0 0
      %5827 = vmatprep.subr.bf16.mxu0 0
      %5828 = vmatpush1.bf16.msra.mxu0 0
      %5829 = vmatprep.subr.bf16.mxu0 0
      %5830 = vmatpush1.bf16.msra.mxu0 0
      %5831 = vmatprep.subr.bf16.mxu0 0
      %5832 = vmatpush1.bf16.msra.mxu0 0
      %5833 = vmatprep.subr.bf16.mxu0 0
      %5834 = vmatpush1.bf16.msra.mxu0 0
      %5835 = vmatprep.subr.bf16.mxu0 0
      %5836 = vmatpush1.bf16.msra.mxu0 0
      %5837 = vmatprep.subr.bf16.mxu0 0
      %5838 = vmatpush1.bf16.msra.mxu0 0
      %5839 = vmatprep.subr.bf16.mxu0 0
      %5840 = vmatpush1.bf16.msra.mxu0 0
      %5841 = vmatprep.mubr.bf16.mxu0 0
      %5842 = vmatmul.mubr.bf16.gmra.mrb[0].mxu0 %v5807
      %v5843 = vpop.f32.mrb[0].mxu0
      %v5844 = vadd.f32 0.0, %v5843
      %v5845 = vpop.f32.mrb[0].mxu0
      %v5846 = vpop.f32.mrb[0].mxu0
      %v5847 = vpop.f32.mrb[0].mxu0
      %5848 = vdwg.mxu0
      %v5849 = vrot.slane %v5844, 4
      %v5850 = vadd.f32 %v5844, %v5849
      %v5851 = vrot.slane %v5850, 2
      %v5852 = vadd.f32 %v5850, %v5851
      %v5853 = vrot.slane %v5852, 1
      %v5854 = vadd.f32 %v5852, %v5853
      %v5855 = vrcp.pop 8.0
      %v5856 = vmul.f32 %v5854, %v5855
      %v5857 = vmul.f32 %v5844, %v5844
      %v5858 = vrot.slane %v5857, 4
      %v5859 = vadd.f32 %v5857, %v5858
      %v5860 = vrot.slane %v5859, 2
      %v5861 = vadd.f32 %v5859, %v5860
      %v5862 = vrot.slane %v5861, 1
      %v5863 = vadd.f32 %v5861, %v5862
      %v5864 = vmul.f32 %v5863, %v5855
      %v5865 = vmul.f32 %v5856, %v5856
      %v5866 = vsub.f32 %v5864, %v5865
      %v5867 = vsub.f32 %v5844, %v5856
      %v5868 = vadd.f32 %v5866, 1e-05
      %v5869 = vrsqrt.pop %v5868
      %v5870 = vmul.f32 %v5867, %v5869
      %v5871 = vlaneseq
      %v5872 = vshrl.u32 %v5871, 7
      %v5873 = vsub.s32 2, %v5872
      %v5874 = vrot.slane %v224, %v5873
      %v5875 = vmul.f32 %v5870, %v5874
      %v5876 = vlaneseq
      %v5877 = vshrl.u32 %v5876, 7
      %v5878 = vsub.s32 3, %v5877
      %v5879 = vrot.slane %v224, %v5878
      %v5880 = vadd.f32 %v5875, %v5879
      %v5881 = vmax.f32 %v5880, 0.0
      %v5882 = vpack.c.bf16 %v5881, %v5881
      %v5883 = vld [vmem:[%s2 + $0x20] sm:$0xf]
      %v5884 = vld [vmem:[%s2 + $0x24] sm:$0xf]
      %v5885 = vld [vmem:[%s2 + $0x28] sm:$0xf]
      %v5886 = vld [vmem:[%s2 + $0x2c] sm:$0xf]
      %v5887 = vld [vmem:[%s2 + $0x30] sm:$0xf]
      %v5888 = vld [vmem:[%s2 + $0x34] sm:$0xf]
      %v5889 = vld [vmem:[%s2 + $0x38] sm:$0xf]
      %v5890 = vld [vmem:[%s2 + $0x3c] sm:$0xf]
      %v5891 = vld [vmem:[%s2 + $0x40] sm:$0xf]
      %v5892 = vld [vmem:[%s2 + $0x44] sm:$0xf]
      %v5893 = vld [vmem:[%s2 + $0x48] sm:$0xf]
      %v5894 = vld [vmem:[%s2 + $0x4c] sm:$0xf]
      %v5895 = vld [vmem:[%s2 + $0x50] sm:$0xf]
      %v5896 = vld [vmem:[%s2 + $0x54] sm:$0xf]
      %v5897 = vld [vmem:[%s2 + $0x58] sm:$0xf]
      %v5898 = vld [vmem:[%s2 + $0x5c] sm:$0xf]
      %v5915 = vunpack.c.l.b16 %v5883
      %v5916 = vunpack.c.l.b16 %v5884
      %v5917 = vunpack.c.l.b16 %v5885
      %v5918 = vunpack.c.l.b16 %v5886
      %v5919 = vunpack.c.l.b16 %v5887
      %v5920 = vunpack.c.l.b16 %v5888
      %v5921 = vunpack.c.l.b16 %v5889
      %v5922 = vunpack.c.l.b16 %v5890
      %v5923 = vunpack.c.l.b16 %v5891
      %v5924 = vunpack.c.l.b16 %v5892
      %v5925 = vunpack.c.l.b16 %v5893
      %v5926 = vunpack.c.l.b16 %v5894
      %v5927 = vunpack.c.l.b16 %v5895
      %v5928 = vunpack.c.l.b16 %v5896
      %v5929 = vunpack.c.l.b16 %v5897
      %v5930 = vunpack.c.l.b16 %v5898
      %v5931 = vpack.c.b16 %v5916, %v5915
      %v5932 = vpack.c.b16 %v5918, %v5917
      %v5933 = vpack.c.b16 %v5920, %v5919
      %v5934 = vpack.c.b16 %v5922, %v5921
      %v5935 = vpack.c.b16 %v5924, %v5923
      %v5936 = vpack.c.b16 %v5926, %v5925
      %v5937 = vpack.c.b16 %v5928, %v5927
      %v5938 = vpack.c.b16 %v5930, %v5929
      %5947 = vmatprep.subr.bf16.mxu0 0
      %5948 = vmatpush1.bf16.msra.mxu0 %v5931
      %5949 = vmatprep.subr.bf16.mxu0 0
      %5950 = vmatpush1.bf16.msra.mxu0 %v5932
      %5951 = vmatprep.subr.bf16.mxu0 0
      %5952 = vmatpush1.bf16.msra.mxu0 %v5933
      %5953 = vmatprep.subr.bf16.mxu0 0
      %5954 = vmatpush1.bf16.msra.mxu0 %v5934
      %5955 = vmatprep.subr.bf16.mxu0 0
      %5956 = vmatpush1.bf16.msra.mxu0 %v5935
      %5957 = vmatprep.subr.bf16.mxu0 0
      %5958 = vmatpush1.bf16.msra.mxu0 %v5936
      %5959 = vmatprep.subr.bf16.mxu0 0
      %5960 = vmatpush1.bf16.msra.mxu0 %v5937
      %5961 = vmatprep.subr.bf16.mxu0 0
      %5962 = vmatpush1.bf16.msra.mxu0 %v5938
      %5963 = vmatprep.subr.bf16.mxu0 0
      %5964 = vmatpush1.bf16.msra.mxu0 0
      %5965 = vmatprep.subr.bf16.mxu0 0
      %5966 = vmatpush1.bf16.msra.mxu0 0
      %5967 = vmatprep.subr.bf16.mxu0 0
      %5968 = vmatpush1.bf16.msra.mxu0 0
      %5969 = vmatprep.subr.bf16.mxu0 0
      %5970 = vmatpush1.bf16.msra.mxu0 0
      %5971 = vmatprep.subr.bf16.mxu0 0
      %5972 = vmatpush1.bf16.msra.mxu0 0
      %5973 = vmatprep.subr.bf16.mxu0 0
      %5974 = vmatpush1.bf16.msra.mxu0 0
      %5975 = vmatprep.subr.bf16.mxu0 0
      %5976 = vmatpush1.bf16.msra.mxu0 0
      %5977 = vmatprep.subr.bf16.mxu0 0
      %5978 = vmatpush1.bf16.msra.mxu0 0
      %5979 = vmatprep.mubr.bf16.mxu0 0
      %5980 = vmatmul.mubr.bf16.gmra.mrb[0].mxu0 %v5882
      %v5981 = vpop.f32.mrb[0].mxu0
      %v5982 = vadd.f32 0.0, %v5981
      %v5983 = vpop.f32.mrb[0].mxu0
      %v5984 = vpop.f32.mrb[0].mxu0
      %v5985 = vpop.f32.mrb[0].mxu0
      %5986 = vdwg.mxu0
      %v5987 = vrot.slane %v5982, 4
      %v5988 = vadd.f32 %v5982, %v5987
      %v5989 = vrot.slane %v5988, 2
      %v5990 = vadd.f32 %v5988, %v5989
      %v5991 = vrot.slane %v5990, 1
      %v5992 = vadd.f32 %v5990, %v5991
      %v5993 = vmul.f32 %v5992, %v5855
      %v5994 = vmul.f32 %v5982, %v5982
      %v5995 = vrot.slane %v5994, 4
      %v5996 = vadd.f32 %v5994, %v5995
      %v5997 = vrot.slane %v5996, 2
      %v5998 = vadd.f32 %v5996, %v5997
      %v5999 = vrot.slane %v5998, 1
      %v6000 = vadd.f32 %v5998, %v5999
      %v6001 = vmul.f32 %v6000, %v5855
      %v6002 = vmul.f32 %v5993, %v5993
      %v6003 = vsub.f32 %v6001, %v6002
      %v6004 = vsub.f32 %v5982, %v5993
      %v6005 = vadd.f32 %v6003, 1e-05
      %v6006 = vrsqrt.pop %v6005
      %v6007 = vmul.f32 %v6004, %v6006
      %v6008 = vlaneseq
      %v6009 = vshrl.u32 %v6008, 7
      %v6010 = vsub.s32 4, %v6009
      %v6011 = vrot.slane %v224, %v6010
      %v6012 = vmul.f32 %v6007, %v6011
      %v6013 = vlaneseq
      %v6014 = vshrl.u32 %v6013, 7
      %v6015 = vsub.s32 5, %v6014
      %v6016 = vrot.slane %v224, %v6015
      %v6017 = vadd.f32 %v6012, %v6016
      %v6018 = vmax.f32 %v6017, 0.0
      %v6019 = vpack.c.bf16 %v6018, %v6018
      %v6020 = vld [vmem:[%s2 + $0x60] sm:$0xf]
      %v6021 = vld [vmem:[%s2 + $0x64] sm:$0xf]
      %v6022 = vld [vmem:[%s2 + $0x68] sm:$0xf]
      %v6023 = vld [vmem:[%s2 + $0x6c] sm:$0xf]
      %v6024 = vld [vmem:[%s2 + $0x70] sm:$0xf]
      %v6025 = vld [vmem:[%s2 + $0x74] sm:$0xf]
      %v6026 = vld [vmem:[%s2 + $0x78] sm:$0xf]
      %v6027 = vld [vmem:[%s2 + $0x7c] sm:$0xf]
      %v6028 = vld [vmem:[%s2 + $0x80] sm:$0xf]
      %v6029 = vld [vmem:[%s2 + $0x84] sm:$0xf]
      %v6030 = vld [vmem:[%s2 + $0x88] sm:$0xf]
      %v6031 = vld [vmem:[%s2 + $0x8c] sm:$0xf]
      %v6032 = vld [vmem:[%s2 + $0x90] sm:$0xf]
      %v6033 = vld [vmem:[%s2 + $0x94] sm:$0xf]
      %v6034 = vld [vmem:[%s2 + $0x98] sm:$0xf]
      %v6035 = vld [vmem:[%s2 + $0x9c] sm:$0xf]
      %v6052 = vunpack.c.l.b16 %v6020
      %v6053 = vunpack.c.l.b16 %v6021
      %v6054 = vunpack.c.l.b16 %v6022
      %v6055 = vunpack.c.l.b16 %v6023
      %v6056 = vunpack.c.l.b16 %v6024
      %v6057 = vunpack.c.l.b16 %v6025
      %v6058 = vunpack.c.l.b16 %v6026
      %v6059 = vunpack.c.l.b16 %v6027
      %v6060 = vunpack.c.l.b16 %v6028
      %v6061 = vunpack.c.l.b16 %v6029
      %v6062 = vunpack.c.l.b16 %v6030
      %v6063 = vunpack.c.l.b16 %v6031
      %v6064 = vunpack.c.l.b16 %v6032
      %v6065 = vunpack.c.l.b16 %v6033
      %v6066 = vunpack.c.l.b16 %v6034
      %v6067 = vunpack.c.l.b16 %v6035
      %v6068 = vpack.c.b16 %v6053, %v6052
      %v6069 = vpack.c.b16 %v6055, %v6054
      %v6070 = vpack.c.b16 %v6057, %v6056
      %v6071 = vpack.c.b16 %v6059, %v6058
      %v6072 = vpack.c.b16 %v6061, %v6060
      %v6073 = vpack.c.b16 %v6063, %v6062
      %v6074 = vpack.c.b16 %v6065, %v6064
      %v6075 = vpack.c.b16 %v6067, %v6066
      %6084 = vmatprep.subr.bf16.mxu0 0
      %6085 = vmatpush1.bf16.msra.mxu0 %v6068
      %6086 = vmatprep.subr.bf16.mxu0 0
      %6087 = vmatpush1.bf16.msra.mxu0 %v6069
      %6088 = vmatprep.subr.bf16.mxu0 0
      %6089 = vmatpush1.bf16.msra.mxu0 %v6070
      %6090 = vmatprep.subr.bf16.mxu0 0
      %6091 = vmatpush1.bf16.msra.mxu0 %v6071
      %6092 = vmatprep.subr.bf16.mxu0 0
      %6093 = vmatpush1.bf16.msra.mxu0 %v6072
      %6094 = vmatprep.subr.bf16.mxu0 0
      %6095 = vmatpush1.bf16.msra.mxu0 %v6073
      %6096 = vmatprep.subr.bf16.mxu0 0
      %6097 = vmatpush1.bf16.msra.mxu0 %v6074
      %6098 = vmatprep.subr.bf16.mxu0 0
      %6099 = vmatpush1.bf16.msra.mxu0 %v6075
      %6100 = vmatprep.subr.bf16.mxu0 0
      %6101 = vmatpush1.bf16.msra.mxu0 0
      %6102 = vmatprep.subr.bf16.mxu0 0
      %6103 = vmatpush1.bf16.msra.mxu0 0
      %6104 = vmatprep.subr.bf16.mxu0 0
      %6105 = vmatpush1.bf16.msra.mxu0 0
      %6106 = vmatprep.subr.bf16.mxu0 0
      %6107 = vmatpush1.bf16.msra.mxu0 0
      %6108 = vmatprep.subr.bf16.mxu0 0
      %6109 = vmatpush1.bf16.msra.mxu0 0
      %6110 = vmatprep.subr.bf16.mxu0 0
      %6111 = vmatpush1.bf16.msra.mxu0 0
      %6112 = vmatprep.subr.bf16.mxu0 0
      %6113 = vmatpush1.bf16.msra.mxu0 0
      %6114 = vmatprep.subr.bf16.mxu0 0
      %6115 = vmatpush1.bf16.msra.mxu0 0
      %6116 = vmatprep.mubr.bf16.mxu0 0
      %6117 = vmatmul.mubr.bf16.gmra.mrb[0].mxu0 %v6019
      %v6118 = vpop.f32.mrb[0].mxu0
      %v6119 = vadd.f32 0.0, %v6118
      %v6120 = vpop.f32.mrb[0].mxu0
      %v6121 = vpop.f32.mrb[0].mxu0
      %v6122 = vpop.f32.mrb[0].mxu0
      %6123 = vdwg.mxu0
      %v6124 = vpack.c.bf16 %v6119, %v6119
      %v6125 = vld [vmem:[%s3] sm:$0xf]
      %v6126 = vld [vmem:[%s3 + $0x4] sm:$0xf]
      %v6127 = vld [vmem:[%s3 + $0x8] sm:$0xf]
      %v6128 = vld [vmem:[%s3 + $0xc] sm:$0xf]
      %v6129 = vld [vmem:[%s3 + $0x10] sm:$0xf]
      %v6130 = vld [vmem:[%s3 + $0x14] sm:$0xf]
      %v6131 = vld [vmem:[%s3 + $0x18] sm:$0xf]
      %v6132 = vld [vmem:[%s3 + $0x1c] sm:$0xf]
      %v6141 = vunpack.c.l.b16 %v6125
      %v6142 = vunpack.c.l.b16 %v6126
      %v6143 = vunpack.c.l.b16 %v6127
      %v6144 = vunpack.c.l.b16 %v6128
      %v6145 = vunpack.c.l.b16 %v6129
      %v6146 = vunpack.c.l.b16 %v6130
      %v6147 = vunpack.c.l.b16 %v6131
      %v6148 = vunpack.c.l.b16 %v6132
      %v6149 = vpack.c.b16 %v6142, %v6141
      %v6150 = vpack.c.b16 %v6144, %v6143
      %v6151 = vpack.c.b16 %v6146, %v6145
      %v6152 = vpack.c.b16 %v6148, %v6147
      %v6158 = vsel %vm2588, %v6124, 0
      %6160 = vmatprep.subr.bf16.mxu0 0
      %6161 = vmatpush1.bf16.msra.mxu0 %v6149
      %6162 = vmatprep.subr.bf16.mxu0 0
      %6163 = vmatpush1.bf16.msra.mxu0 %v6150
      %6164 = vmatprep.subr.bf16.mxu0 0
      %6165 = vmatpush1.bf16.msra.mxu0 %v6151
      %6166 = vmatprep.subr.bf16.mxu0 0
      %6167 = vmatpush1.bf16.msra.mxu0 %v6152
      %6168 = vmatprep.subr.bf16.mxu0 0
      %6169 = vmatpush1.bf16.msra.mxu0 0
      %6170 = vmatprep.subr.bf16.mxu0 0
      %6171 = vmatpush1.bf16.msra.mxu0 0
      %6172 = vmatprep.subr.bf16.mxu0 0
      %6173 = vmatpush1.bf16.msra.mxu0 0
      %6174 = vmatprep.subr.bf16.mxu0 0
      %6175 = vmatpush1.bf16.msra.mxu0 0
      %6176 = vmatprep.subr.bf16.mxu0 0
      %6177 = vmatpush1.bf16.msra.mxu0 0
      %6178 = vmatprep.subr.bf16.mxu0 0
      %6179 = vmatpush1.bf16.msra.mxu0 0
      %6180 = vmatprep.subr.bf16.mxu0 0
      %6181 = vmatpush1.bf16.msra.mxu0 0
      %6182 = vmatprep.subr.bf16.mxu0 0
      %6183 = vmatpush1.bf16.msra.mxu0 0
      %6184 = vmatprep.subr.bf16.mxu0 0
      %6185 = vmatpush1.bf16.msra.mxu0 0
      %6186 = vmatprep.subr.bf16.mxu0 0
      %6187 = vmatpush1.bf16.msra.mxu0 0
      %6188 = vmatprep.subr.bf16.mxu0 0
      %6189 = vmatpush1.bf16.msra.mxu0 0
      %6190 = vmatprep.subr.bf16.mxu0 0
      %6191 = vmatpush1.bf16.msra.mxu0 0
      %6192 = vmatprep.mubr.bf16.mxu0 0
      %6193 = vmatmul.mubr.bf16.gmra.mrb[0].mxu0 %v6158
      %v6194 = vpop.f32.mrb[0].mxu0
      %v6195 = vadd.f32 0.0, %v6194
      %v6196 = vpop.f32.mrb[0].mxu0
      %v6197 = vpop.f32.mrb[0].mxu0
      %v6198 = vpop.f32.mrb[0].mxu0
      %6199 = vdwg.mxu0
      %v6200 = vsel %vm2588, %v6195, 0.0
      %v6201 = vrot.slane %v6200, 4
      %v6202 = vadd.f32 %v6200, %v6201
      %v6203 = vrot.slane %v6202, 2
      %v6204 = vadd.f32 %v6202, %v6203
      %v6205 = vrot.slane %v6204, 1
      %v6206 = vadd.f32 %v6204, %v6205
      %v6207 = vmul.f32 %v6206, %v5855
      %v6208 = vmul.f32 %v6195, %v6195
      %v6209 = vsel %vm2588, %v6208, 0.0
      %v6210 = vrot.slane %v6209, 4
      %v6211 = vadd.f32 %v6209, %v6210
      %v6212 = vrot.slane %v6211, 2
      %v6213 = vadd.f32 %v6211, %v6212
      %v6214 = vrot.slane %v6213, 1
      %v6215 = vadd.f32 %v6213, %v6214
      %v6216 = vmul.f32 %v6215, %v5855
      %v6217 = vmul.f32 %v6207, %v6207
      %v6218 = vsub.f32 %v6216, %v6217
      %v6219 = vsub.f32 %v6195, %v6207
      %v6220 = vadd.f32 %v6218, 1e-05
      %v6221 = vrsqrt.pop %v6220
      %v6222 = vmul.f32 %v6219, %v6221
      %v6223 = vlaneseq
      %v6224 = vshrl.u32 %v6223, 7
      %v6225 = vsub.s32 6, %v6224
      %v6226 = vrot.slane %v224, %v6225
      %v6227 = vmul.f32 %v6222, %v6226
      %v6228 = vlaneseq
      %v6229 = vshrl.u32 %v6228, 7
      %v6230 = vsub.s32 7, %v6229
      %v6231 = vrot.slane %v224, %v6230
      %v6232 = vadd.f32 %v6227, %v6231
      %v6233 = vmax.f32 %v6232, 0.0
      %v6234 = vpack.c.bf16 %v6233, %v6233
      %v6235 = vld [vmem:[%s3 + $0x20] sm:$0xf]
      %v6236 = vld [vmem:[%s3 + $0x24] sm:$0xf]
      %v6237 = vld [vmem:[%s3 + $0x28] sm:$0xf]
      %v6238 = vld [vmem:[%s3 + $0x2c] sm:$0xf]
      %v6239 = vld [vmem:[%s3 + $0x30] sm:$0xf]
      %v6240 = vld [vmem:[%s3 + $0x34] sm:$0xf]
      %v6241 = vld [vmem:[%s3 + $0x38] sm:$0xf]
      %v6242 = vld [vmem:[%s3 + $0x3c] sm:$0xf]
      %v6243 = vlaneseq
      %v6244 = vshrl.u32 %v6243, 7
      %v6245 = vsub.s32 0, %v6244
      %v6246 = vrot.slane %v225, %v6245
      %v6255 = vunpack.c.l.b16 %v6235
      %v6256 = vunpack.c.l.b16 %v6236
      %v6257 = vunpack.c.l.b16 %v6237
      %v6258 = vunpack.c.l.b16 %v6238
      %v6259 = vunpack.c.l.b16 %v6239
      %v6260 = vunpack.c.l.b16 %v6240
      %v6261 = vunpack.c.l.b16 %v6241
      %v6262 = vunpack.c.l.b16 %v6242
      %v6263 = vpack.c.b16 %v6256, %v6255
      %v6264 = vpack.c.b16 %v6258, %v6257
      %v6265 = vpack.c.b16 %v6260, %v6259
      %v6266 = vpack.c.b16 %v6262, %v6261
      %v6272 = vsel %vm2588, %v6234, 0
      %6274 = vmatprep.subr.bf16.mxu0 0
      %6275 = vmatpush1.bf16.msra.mxu0 %v6263
      %6276 = vmatprep.subr.bf16.mxu0 0
      %6277 = vmatpush1.bf16.msra.mxu0 %v6264
      %6278 = vmatprep.subr.bf16.mxu0 0
      %6279 = vmatpush1.bf16.msra.mxu0 %v6265
      %6280 = vmatprep.subr.bf16.mxu0 0
      %6281 = vmatpush1.bf16.msra.mxu0 %v6266
      %6282 = vmatprep.subr.bf16.mxu0 0
      %6283 = vmatpush1.bf16.msra.mxu0 0
      %6284 = vmatprep.subr.bf16.mxu0 0
      %6285 = vmatpush1.bf16.msra.mxu0 0
      %6286 = vmatprep.subr.bf16.mxu0 0
      %6287 = vmatpush1.bf16.msra.mxu0 0
      %6288 = vmatprep.subr.bf16.mxu0 0
      %6289 = vmatpush1.bf16.msra.mxu0 0
      %6290 = vmatprep.subr.bf16.mxu0 0
      %6291 = vmatpush1.bf16.msra.mxu0 0
      %6292 = vmatprep.subr.bf16.mxu0 0
      %6293 = vmatpush1.bf16.msra.mxu0 0
      %6294 = vmatprep.subr.bf16.mxu0 0
      %6295 = vmatpush1.bf16.msra.mxu0 0
      %6296 = vmatprep.subr.bf16.mxu0 0
      %6297 = vmatpush1.bf16.msra.mxu0 0
      %6298 = vmatprep.subr.bf16.mxu0 0
      %6299 = vmatpush1.bf16.msra.mxu0 0
      %6300 = vmatprep.subr.bf16.mxu0 0
      %6301 = vmatpush1.bf16.msra.mxu0 0
      %6302 = vmatprep.subr.bf16.mxu0 0
      %6303 = vmatpush1.bf16.msra.mxu0 0
      %6304 = vmatprep.subr.bf16.mxu0 0
      %6305 = vmatpush1.bf16.msra.mxu0 0
      %6306 = vmatprep.mubr.bf16.mxu0 0
      %6307 = vmatmul.mubr.bf16.gmra.mrb[0].mxu0 %v6272
      %v6308 = vpop.f32.mrb[0].mxu0
      %v6309 = vadd.f32 %v6246, %v6308
      %v6310 = vpop.f32.mrb[0].mxu0
      %v6311 = vpop.f32.mrb[0].mxu0
      %v6312 = vpop.f32.mrb[0].mxu0
      %6313 = vdwg.mxu0
      %v6314 = vsel %vm2588, %v6309, %v6119
      %6315 = vst [vmem:[%s222] sm:$0xff] %v6314
      %p6316 = scmp.lt.s32.totalorder %s16, 1
      %s6317 = scalar_select %p6316, %s16, 1
      %s6318 = smul.addr %s6317, 8
      %s6319 = scalar_lea.vmem %s5, %s6318
      // Predicated region
      $region41: #{fedi_forward.1} parent=39 // pred_check
        %p6320 = pneg %p144
      $region42: #{fedi_forward.1} parent=39 // pred_check_branch
        %6322 = sbr.rel (%p6320) target = $region44
      $region43: #{fedi_forward.1} parent=39 // pred_region
        _
      $region44: #{fedi_forward.1} parent=39 // pred_fallthru
        _
    $region40: #{fedi_forward.1} parent=5 // pred_fallthru
      _
    %p6323 = scmp.le.s32.totalorder 2, %s11
    // Predicated region
    $region45: #{fedi_forward.1} parent=5 // pred_check
      %p6324 = pneg %p6323
    $region46: #{fedi_forward.1} parent=5 // pred_check_branch
      %6326 = sbr.rel (%p6324) target = $region48
    $region47: #{fedi_forward.1} parent=5 // pred_region
      %s6327 = ssub.s32 %s11, 2
      // Predicated region
      $region49: #{fedi_forward.1} parent=47 // pred_check
        %p6328 = pneg %p150
      $region50: #{fedi_forward.1} parent=47 // pred_check_branch
        %6330 = sbr.rel (%p6328) target = $region52
      $region51: #{fedi_forward.1} parent=47 // pred_region
        %p6331 = scmp.lt.s32.totalorder %s17, 1
        %s6332 = scalar_select %p6331, %s17, 1
        %s6333 = smul.addr %s6332, 8
        %s6334 = scalar_lea.vmem %s5, %s6333
      $region52: #{fedi_forward.1} parent=47 // pred_fallthru
        _
    $region48: #{fedi_forward.1} parent=5 // pred_fallthru
      _
  $region6: #{fedi_forward.1} parent=0 // loop_footer
    %s15 = sadd.s32 1, %s11
  $region7: #{fedi_forward.1} parent=0 // loop_footer_branch
    %10 = sbr.rel target = $region3
  $region8: #{fedi_forward.1} parent=0 // loop_exit
    _

</llo_original>
